<compile_context>
chip_gen: v7x
topology: tpu7x:2x2x1
jax: 0.10.0
libtpu: 0.0.40
codegen_flags: <defaults>
</compile_context>

<pallas_src>
import functools

import jax
import jax.numpy as jnp
from jax import lax
from jax.experimental import pallas as pl
from jax.experimental.pallas import tpu as pltpu

NEG_SLOPE = 0.01   # F.leaky_relu default
BN_EPS = 1e-5

_VMEM = pl.BlockSpec(memory_space=pltpu.MemorySpace.VMEM)


def _leaky_relu(x):
    return jnp.where(x >= 0, x, NEG_SLOPE * x)


def _sigmoid(x):
    # numerically stable sigmoid via tanh (single EUP op, no overflow)
    return 0.5 * (jnp.tanh(0.5 * x) + 1.0)


# --------------------------------------------------------------------------
# Fused kernel: GCN1 -> GCN2(+residual) -> Set2Set -> MLP head.
# All operands live in VMEM; at N=16, H=32, B=2 everything fits easily.
# --------------------------------------------------------------------------
def fused_forward_kernel(a_ref, x_ref, w1_ref, b1_ref, w2_ref, b2_ref,
                         m_ref, wq_ref, wr_ref, lb_ref,
                         wl1q_ref, wl1r_ref, bl1_ref, wl2_ref, bl2_ref,
                         out_ref, *, steps, hidden):
    f32 = jnp.float32
    bf16 = jnp.bfloat16

    a = a_ref[...]                      # [N, N]   bf16 (normalized adjacency)
    x = x_ref[...]                      # [N, Cin] bf16

    # ---- GCN layer 1 (BN already folded into W1/b1): leaky_relu(A @ (X@W1) + b1)
    xw1 = jnp.dot(x, w1_ref[...], preferred_element_type=f32)
    agg1 = jnp.dot(a, xw1.astype(bf16), preferred_element_type=f32)
    h1 = _leaky_relu(agg1 + b1_ref[...])                       # [N, H] f32

    # ---- GCN layer 2 + residual: leaky_relu(A @ (h1@W2) + b2 + h1)
    xw2 = jnp.dot(h1.astype(bf16), w2_ref[...], preferred_element_type=f32)
    agg2 = jnp.dot(a, xw2.astype(bf16), preferred_element_type=f32)
    h = _leaky_relu(agg2 + b2_ref[...] + h1)                   # [N, H] f32

    # ---- Set2Set pooling (f32 throughout for numerical fidelity) ----
    m = m_ref[...]                      # [B, N] one-hot membership
    wq = wq_ref[...]                    # [H, 4H]  (= W_ih[:, :H].T + W_hh.T, folded)
    wr = wr_ref[...]                    # [H, 4H]  (= W_ih[:, H:].T)
    lb = lb_ref[...]                    # [1, 4H]  (= b_ih + b_hh)
    bsz = m.shape[0]

    ht = h.T                            # [H, N] — hoisted out of the loop

    c = jnp.zeros((bsz, hidden), f32)
    q = jnp.zeros((bsz, hidden), f32)   # LSTM hidden == first half of q_star
    r = jnp.zeros((bsz, hidden), f32)   # attention readout == second half of q_star

    # steps is a static Python int -> fully unrolled (same effect as
    # lax.fori_loop(..., unroll=True), but guaranteed to lower).
    for _ in range(steps):
        gates = (jnp.dot(q, wq, preferred_element_type=f32)
                 + jnp.dot(r, wr, preferred_element_type=f32)
                 + lb)                                          # [B, 4H] (4H = 128 lanes)
        i_g = _sigmoid(gates[:, 0 * hidden:1 * hidden])
        f_g = _sigmoid(gates[:, 1 * hidden:2 * hidden])
        g_g = jnp.tanh(gates[:, 2 * hidden:3 * hidden])
        o_g = _sigmoid(gates[:, 3 * hidden:4 * hidden])
        c = f_g * c + i_g * g_g
        q = o_g * jnp.tanh(c)                                   # [B, H] new LSTM hidden

        # attention logits e[b,n] = <q_b, h_n>, softmax restricted to graph b
        e = jnp.dot(q, ht, preferred_element_type=f32)          # [B, N]
        e = jnp.where(m > 0, e, -1e30)
        e = e - jnp.max(e, axis=1, keepdims=True)
        p = jnp.exp(e) * m
        denom = jnp.maximum(jnp.sum(p, axis=1, keepdims=True), 1e-30)  # empty-graph guard
        att = p * pl.reciprocal(denom, approx=True)             # [B, N]
        r = jnp.dot(att, h, preferred_element_type=f32)         # [B, H]

    # ---- MLP head on q_star = [q, r] (no concat: lin1 weight pre-split) ----
    hq = _leaky_relu(jnp.dot(q, wl1q_ref[...], preferred_element_type=f32)
                     + jnp.dot(r, wl1r_ref[...], preferred_element_type=f32)
                     + bl1_ref[...])
    # F.dropout(p=0.3, training=False) == identity at inference.
    out_ref[...] = (jnp.dot(hq, wl2_ref[...], preferred_element_type=f32)
                    + bl2_ref[...])


# --------------------------------------------------------------------------
# Glue (plain JAX): dense GCN-normalized adjacency with self-loops + weights.
# --------------------------------------------------------------------------
def gcn_norm_dense(edge_index, edge_weight, num_nodes):
    row, col = edge_index[0], edge_index[1]            # src, dst
    loop = jnp.arange(num_nodes, dtype=row.dtype)
    row = jnp.concatenate([row, loop])
    col = jnp.concatenate([col, loop])
    w = jnp.concatenate(
        [edge_weight, jnp.ones((num_nodes,), edge_weight.dtype)])
    deg = jnp.zeros((num_nodes,), jnp.float32).at[col].add(w)
    dinv = jnp.where(deg > 0, lax.rsqrt(deg), 0.0)
    norm = dinv[row] * w * dinv[col]
    a = jnp.zeros((num_nodes, num_nodes), jnp.float32).at[col, row].add(norm)
    return a


# --------------------------------------------------------------------------
# Full forward pass of ConvModel (num_layers = 2, inference mode).
# --------------------------------------------------------------------------
def conv_model_forward(params, x, edge_index, edge_weight, batch_idx,
                       num_graphs, *, lstm_steps):
    n = x.shape[0]
    hidden = params["w_gcn1"].shape[1]
    c_out = params["w_lin2"].shape[1]

    a_hat = gcn_norm_dense(edge_index, edge_weight, n)
    m = (batch_idx[None, :] == jnp.arange(num_graphs)[:, None]).astype(jnp.float32)

    # Fold eval-mode BatchNorm into the GCN weight/bias (scale commutes through
    # A_hat @ (X @ W) because it is per output channel).
    def fold_bn(w, b, gamma, beta, mean, var):
        scale = gamma * lax.rsqrt(var + BN_EPS)        # [1, H]
        return w * scale, (b - mean) * scale + beta

    w1f, b1f = fold_bn(params["w_gcn1"], params["b_gcn1"],
                       params["bn1_gamma"], params["bn1_beta"],
                       params["bn1_mean"], params["bn1_var"])
    w2f, b2f = fold_bn(params["w_gcn2"], params["b_gcn2"],
                       params["bn2_gamma"], params["bn2_beta"],
                       params["bn2_mean"], params["bn2_var"])

    # Set2Set LSTM weight prep: input is q_star = [q, r]; the LSTM hidden is
    # always equal to q, so W_hh folds into the q-half of W_ih.
    wih_t = params["lstm_w_ih"].T                      # [2H, 4H]
    whh_t = params["lstm_w_hh"].T                      # [H, 4H]
    wq = wih_t[:hidden] + whh_t                        # [H, 4H]
    wr = wih_t[hidden:]                                # [H, 4H]
    lbias = (params["lstm_b_ih"] + params["lstm_b_hh"]).reshape(1, -1)

    # Head lin1 split into the q / r halves (avoids concat in the kernel).
    wl1_q = params["w_lin1"][:hidden]                  # [H, H]
    wl1_r = params["w_lin1"][hidden:]                  # [H, H]

    kern = functools.partial(fused_forward_kernel,
                             steps=lstm_steps, hidden=hidden)
    return pl.pallas_call(
        kern,
        out_shape=jax.ShapeDtypeStruct((num_graphs, c_out), jnp.float32),
        in_specs=[_VMEM] * 15,
        out_specs=_VMEM,
    )(a_hat.astype(jnp.bfloat16), x.astype(jnp.bfloat16),
      w1f.astype(jnp.bfloat16), b1f,
      w2f.astype(jnp.bfloat16), b2f,
      m, wq, wr, lbias,
      wl1_q, wl1_r, params["b_lin1"], params["w_lin2"], params["b_lin2"])


if __name__ == "__main__":
    # ---- sizes implied by the module ----
    c_in, c_hidden, c_out = 8, 32, 4
    num_layers, lstm_steps = 2, 10
    N, B = 16, 2          # N nodes across B graphs
    E_per_graph = 20

    key = jax.random.PRNGKey(0)
    ks = jax.random.split(key, 20)

    # node features + graph structure
    x = jax.random.normal(ks[0], (N, c_in), jnp.float32)
    half = N // 2
    src0 = jax.random.randint(ks[1], (E_per_graph,), 0, half)
    dst0 = jax.random.randint(ks[2], (E_per_graph,), 0, half)
    src1 = jax.random.randint(ks[3], (E_per_graph,), half, N)
    dst1 = jax.random.randint(ks[4], (E_per_graph,), half, N)
    edge_index = jnp.stack([jnp.concatenate([src0, src1]),
                            jnp.concatenate([dst0, dst1])]).astype(jnp.int32)
    edge_weight = jax.random.uniform(ks[5], (2 * E_per_graph,),
                                     minval=0.1, maxval=1.0)
    batch_idx = jnp.concatenate([jnp.zeros((half,), jnp.int32),
                                 jnp.ones((N - half,), jnp.int32)])

    # ---- deterministic parameter init (shapes from __init__) ----
    def uni(k, shape, scale):
        return jax.random.uniform(k, shape, jnp.float32, -scale, scale)

    params = {
        # GCNConv(c_in, c_hidden)
        "w_gcn1": uni(ks[6], (c_in, c_hidden), (6.0 / (c_in + c_hidden)) ** 0.5),
        "b_gcn1": jnp.zeros((1, c_hidden), jnp.float32),
        # GCNConv(c_hidden, c_hidden)
        "w_gcn2": uni(ks[7], (c_hidden, c_hidden), (6.0 / (2 * c_hidden)) ** 0.5),
        "b_gcn2": jnp.zeros((1, c_hidden), jnp.float32),
        # BatchNorm(c_hidden) x2, eval-mode running stats (PyTorch defaults)
        "bn1_gamma": jnp.ones((1, c_hidden), jnp.float32),
        "bn1_beta": jnp.zeros((1, c_hidden), jnp.float32),
        "bn1_mean": jnp.zeros((1, c_hidden), jnp.float32),
        "bn1_var": jnp.ones((1, c_hidden), jnp.float32),
        "bn2_gamma": jnp.ones((1, c_hidden), jnp.float32),
        "bn2_beta": jnp.zeros((1, c_hidden), jnp.float32),
        "bn2_mean": jnp.zeros((1, c_hidden), jnp.float32),
        "bn2_var": jnp.ones((1, c_hidden), jnp.float32),
        # Set2Set LSTM: input 2*c_hidden, hidden c_hidden
        "lstm_w_ih": uni(ks[8], (4 * c_hidden, 2 * c_hidden), 1.0 / c_hidden ** 0.5),
        "lstm_w_hh": uni(ks[9], (4 * c_hidden, c_hidden), 1.0 / c_hidden ** 0.5),
        "lstm_b_ih": uni(ks[10], (4 * c_hidden,), 1.0 / c_hidden ** 0.5),
        "lstm_b_hh": uni(ks[11], (4 * c_hidden,), 1.0 / c_hidden ** 0.5),
        # lin1: 2*c_hidden -> c_hidden ; lin2: c_hidden -> c_out
        "w_lin1": uni(ks[12], (2 * c_hidden, c_hidden), 1.0 / (2 * c_hidden) ** 0.5),
        "b_lin1": uni(ks[13], (1, c_hidden), 1.0 / (2 * c_hidden) ** 0.5),
        "w_lin2": uni(ks[14], (c_hidden, c_out), 1.0 / c_hidden ** 0.5),
        "b_lin2": uni(ks[15], (1, c_out), 1.0 / c_hidden ** 0.5),
    }

    # TODO(synk): training-mode BatchNorm statistic updates and stochastic
    # dropout are not reproduced (inference semantics only). If N is scaled up,
    # the dense A_hat needs a row-tiled grid (parallel semantics, explicit
    # vmem_limit_bytes) instead of the whole-array-in-VMEM design used here.
    out = conv_model_forward(params, x, edge_index, edge_weight, batch_idx, B,
                             lstm_steps=lstm_steps)
    out = jax.block_until_ready(out)
    assert out.shape == (B, c_out) and jnp.all(jnp.isfinite(out))
    print("KERNEL_OK")
</pallas_src>

<mosaic_0001>
module attributes {stable_mosaic.version = 11 : i64} {
  func.func @fused_forward_kernel(%arg0: memref<16x16xbf16, #tpu.memory_space<vmem>>, %arg1: memref<16x8xbf16, #tpu.memory_space<vmem>>, %arg2: memref<8x32xbf16, #tpu.memory_space<vmem>>, %arg3: memref<1x32xf32, #tpu.memory_space<vmem>>, %arg4: memref<32x32xbf16, #tpu.memory_space<vmem>>, %arg5: memref<1x32xf32, #tpu.memory_space<vmem>>, %arg6: memref<2x16xf32, #tpu.memory_space<vmem>>, %arg7: memref<32x128xf32, #tpu.memory_space<vmem>>, %arg8: memref<32x128xf32, #tpu.memory_space<vmem>>, %arg9: memref<1x128xf32, #tpu.memory_space<vmem>>, %arg10: memref<32x32xf32, #tpu.memory_space<vmem>>, %arg11: memref<32x32xf32, #tpu.memory_space<vmem>>, %arg12: memref<1x32xf32, #tpu.memory_space<vmem>>, %arg13: memref<32x4xf32, #tpu.memory_space<vmem>>, %arg14: memref<1x4xf32, #tpu.memory_space<vmem>>, %arg15: memref<2x4xf32, #tpu.memory_space<vmem>>) attributes {dimension_semantics = [], scalar_prefetch = 0 : i64, scratch_operands = 0 : i64, tpu.core_type = #tpu.core_type<tc>} {
    %c0 = arith.constant 0 : index
    %c0_0 = arith.constant 0 : index
    %0 = vector.load %arg0[%c0, %c0_0] : memref<16x16xbf16, #tpu.memory_space<vmem>>, vector<16x16xbf16>
    %c0_1 = arith.constant 0 : index
    %c0_2 = arith.constant 0 : index
    %1 = vector.load %arg1[%c0_1, %c0_2] : memref<16x8xbf16, #tpu.memory_space<vmem>>, vector<16x8xbf16>
    %c0_3 = arith.constant 0 : index
    %c0_4 = arith.constant 0 : index
    %2 = vector.load %arg2[%c0_3, %c0_4] : memref<8x32xbf16, #tpu.memory_space<vmem>>, vector<8x32xbf16>
    %cst = arith.constant dense<0.000000e+00> : vector<16x32xf32>
    %3 = tpu.matmul %1, %2, %cst {dimension_numbers = #tpu.dot_dimension_numbers<[1], [0], [0], [1], [0, 0, 1, 1], [], []>} : vector<16x8xbf16>, vector<8x32xbf16>, vector<16x32xf32> -> vector<16x32xf32>
    %4 = arith.truncf %3 : vector<16x32xf32> to vector<16x32xbf16>
    %cst_5 = arith.constant dense<0.000000e+00> : vector<16x32xf32>
    %5 = tpu.matmul %0, %4, %cst_5 {dimension_numbers = #tpu.dot_dimension_numbers<[1], [0], [0], [1], [0, 0, 1, 1], [], []>} : vector<16x16xbf16>, vector<16x32xbf16>, vector<16x32xf32> -> vector<16x32xf32>
    %c0_6 = arith.constant 0 : index
    %c0_7 = arith.constant 0 : index
    %6 = vector.load %arg3[%c0_6, %c0_7] : memref<1x32xf32, #tpu.memory_space<vmem>>, vector<1x32xf32>
    %7 = vector.broadcast %6 : vector<1x32xf32> to vector<16x32xf32>
    %8 = arith.addf %5, %7 : vector<16x32xf32>
    %cst_8 = arith.constant 0.000000e+00 : f32
    %9 = vector.broadcast %cst_8 : f32 to vector<16x32xf32>
    %10 = arith.cmpf oge, %8, %9 : vector<16x32xf32>
    %cst_9 = arith.constant 0.00999999977 : f32
    %11 = vector.broadcast %cst_9 : f32 to vector<16x32xf32>
    %12 = arith.mulf %11, %8 : vector<16x32xf32>
    %13 = arith.select %10, %8, %12 : vector<16x32xi1>, vector<16x32xf32>
    %14 = arith.truncf %13 : vector<16x32xf32> to vector<16x32xbf16>
    %c0_10 = arith.constant 0 : index
    %c0_11 = arith.constant 0 : index
    %15 = vector.load %arg4[%c0_10, %c0_11] : memref<32x32xbf16, #tpu.memory_space<vmem>>, vector<32x32xbf16>
    %cst_12 = arith.constant dense<0.000000e+00> : vector<16x32xf32>
    %16 = tpu.matmul %14, %15, %cst_12 {dimension_numbers = #tpu.dot_dimension_numbers<[1], [0], [0], [1], [0, 0, 1, 1], [], []>} : vector<16x32xbf16>, vector<32x32xbf16>, vector<16x32xf32> -> vector<16x32xf32>
    %17 = arith.truncf %16 : vector<16x32xf32> to vector<16x32xbf16>
    %cst_13 = arith.constant dense<0.000000e+00> : vector<16x32xf32>
    %18 = tpu.matmul %0, %17, %cst_13 {dimension_numbers = #tpu.dot_dimension_numbers<[1], [0], [0], [1], [0, 0, 1, 1], [], []>} : vector<16x16xbf16>, vector<16x32xbf16>, vector<16x32xf32> -> vector<16x32xf32>
    %c0_14 = arith.constant 0 : index
    %c0_15 = arith.constant 0 : index
    %19 = vector.load %arg5[%c0_14, %c0_15] : memref<1x32xf32, #tpu.memory_space<vmem>>, vector<1x32xf32>
    %20 = vector.broadcast %19 : vector<1x32xf32> to vector<16x32xf32>
    %21 = arith.addf %18, %20 : vector<16x32xf32>
    %22 = arith.addf %21, %13 : vector<16x32xf32>
    %cst_16 = arith.constant 0.000000e+00 : f32
    %23 = vector.broadcast %cst_16 : f32 to vector<16x32xf32>
    %24 = arith.cmpf oge, %22, %23 : vector<16x32xf32>
    %cst_17 = arith.constant 0.00999999977 : f32
    %25 = vector.broadcast %cst_17 : f32 to vector<16x32xf32>
    %26 = arith.mulf %25, %22 : vector<16x32xf32>
    %27 = arith.select %24, %22, %26 : vector<16x32xi1>, vector<16x32xf32>
    %c0_18 = arith.constant 0 : index
    %c0_19 = arith.constant 0 : index
    %28 = vector.load %arg6[%c0_18, %c0_19] : memref<2x16xf32, #tpu.memory_space<vmem>>, vector<2x16xf32>
    %c0_20 = arith.constant 0 : index
    %c0_21 = arith.constant 0 : index
    %29 = vector.load %arg7[%c0_20, %c0_21] : memref<32x128xf32, #tpu.memory_space<vmem>>, vector<32x128xf32>
    %c0_22 = arith.constant 0 : index
    %c0_23 = arith.constant 0 : index
    %30 = vector.load %arg8[%c0_22, %c0_23] : memref<32x128xf32, #tpu.memory_space<vmem>>, vector<32x128xf32>
    %c0_24 = arith.constant 0 : index
    %c0_25 = arith.constant 0 : index
    %31 = vector.load %arg9[%c0_24, %c0_25] : memref<1x128xf32, #tpu.memory_space<vmem>>, vector<1x128xf32>
    %32 = tpu.transpose %27, [1, 0] : vector<16x32xf32> -> vector<32x16xf32>
    %cst_26 = arith.constant 0.000000e+00 : f32
    %33 = vector.broadcast %cst_26 : f32 to vector<2x32xf32>
    %cst_27 = arith.constant 0.000000e+00 : f32
    %34 = vector.broadcast %cst_27 : f32 to vector<2x32xf32>
    %cst_28 = arith.constant 0.000000e+00 : f32
    %35 = vector.broadcast %cst_28 : f32 to vector<2x32xf32>
    %cst_29 = arith.constant dense<0.000000e+00> : vector<2x128xf32>
    %36 = tpu.matmul %34, %29, %cst_29 {dimension_numbers = #tpu.dot_dimension_numbers<[1], [0], [0], [1], [0, 0, 1, 1], [], []>} : vector<2x32xf32>, vector<32x128xf32>, vector<2x128xf32> -> vector<2x128xf32>
    %cst_30 = arith.constant dense<0.000000e+00> : vector<2x128xf32>
    %37 = tpu.matmul %35, %30, %cst_30 {dimension_numbers = #tpu.dot_dimension_numbers<[1], [0], [0], [1], [0, 0, 1, 1], [], []>} : vector<2x32xf32>, vector<32x128xf32>, vector<2x128xf32> -> vector<2x128xf32>
    %38 = arith.addf %36, %37 : vector<2x128xf32>
    %39 = vector.broadcast %31 : vector<1x128xf32> to vector<2x128xf32>
    %40 = arith.addf %38, %39 : vector<2x128xf32>
    %41 = vector.extract_strided_slice %40 {offsets = [0, 0], sizes = [2, 32], strides = [1, 1]} : vector<2x128xf32> to vector<2x32xf32>
    %cst_31 = arith.constant 5.000000e-01 : f32
    %42 = vector.broadcast %cst_31 : f32 to vector<2x32xf32>
    %43 = arith.mulf %42, %41 : vector<2x32xf32>
    %44 = math.tanh %43 : vector<2x32xf32>
    %cst_32 = arith.constant 1.000000e+00 : f32
    %45 = vector.broadcast %cst_32 : f32 to vector<2x32xf32>
    %46 = arith.addf %44, %45 : vector<2x32xf32>
    %cst_33 = arith.constant 5.000000e-01 : f32
    %47 = vector.broadcast %cst_33 : f32 to vector<2x32xf32>
    %48 = arith.mulf %47, %46 : vector<2x32xf32>
    %49 = vector.extract_strided_slice %40 {offsets = [0, 32], sizes = [2, 32], strides = [1, 1]} : vector<2x128xf32> to vector<2x32xf32>
    %cst_34 = arith.constant 5.000000e-01 : f32
    %50 = vector.broadcast %cst_34 : f32 to vector<2x32xf32>
    %51 = arith.mulf %50, %49 : vector<2x32xf32>
    %52 = math.tanh %51 : vector<2x32xf32>
    %cst_35 = arith.constant 1.000000e+00 : f32
    %53 = vector.broadcast %cst_35 : f32 to vector<2x32xf32>
    %54 = arith.addf %52, %53 : vector<2x32xf32>
    %cst_36 = arith.constant 5.000000e-01 : f32
    %55 = vector.broadcast %cst_36 : f32 to vector<2x32xf32>
    %56 = arith.mulf %55, %54 : vector<2x32xf32>
    %57 = vector.extract_strided_slice %40 {offsets = [0, 64], sizes = [2, 32], strides = [1, 1]} : vector<2x128xf32> to vector<2x32xf32>
    %58 = math.tanh %57 : vector<2x32xf32>
    %59 = vector.extract_strided_slice %40 {offsets = [0, 96], sizes = [2, 32], strides = [1, 1]} : vector<2x128xf32> to vector<2x32xf32>
    %cst_37 = arith.constant 5.000000e-01 : f32
    %60 = vector.broadcast %cst_37 : f32 to vector<2x32xf32>
    %61 = arith.mulf %60, %59 : vector<2x32xf32>
    %62 = math.tanh %61 : vector<2x32xf32>
    %cst_38 = arith.constant 1.000000e+00 : f32
    %63 = vector.broadcast %cst_38 : f32 to vector<2x32xf32>
    %64 = arith.addf %62, %63 : vector<2x32xf32>
    %cst_39 = arith.constant 5.000000e-01 : f32
    %65 = vector.broadcast %cst_39 : f32 to vector<2x32xf32>
    %66 = arith.mulf %65, %64 : vector<2x32xf32>
    %67 = arith.mulf %56, %33 : vector<2x32xf32>
    %68 = arith.mulf %48, %58 : vector<2x32xf32>
    %69 = arith.addf %67, %68 : vector<2x32xf32>
    %70 = math.tanh %69 : vector<2x32xf32>
    %71 = arith.mulf %66, %70 : vector<2x32xf32>
    %cst_40 = arith.constant dense<0.000000e+00> : vector<2x16xf32>
    %72 = tpu.matmul %71, %32, %cst_40 {dimension_numbers = #tpu.dot_dimension_numbers<[1], [0], [0], [1], [0, 0, 1, 1], [], []>} : vector<2x32xf32>, vector<32x16xf32>, vector<2x16xf32> -> vector<2x16xf32>
    %cst_41 = arith.constant 0.000000e+00 : f32
    %73 = vector.broadcast %cst_41 : f32 to vector<2x16xf32>
    %74 = arith.cmpf ogt, %28, %73 : vector<2x16xf32>
    %cst_42 = arith.constant -1.000000e+30 : f32
    %75 = vector.broadcast %cst_42 : f32 to vector<2x16xf32>
    %76 = arith.select %74, %72, %75 : vector<2x16xi1>, vector<2x16xf32>
    %cst_43 = arith.constant dense<0xFF800000> : vector<2xf32>
    %77 = vector.multi_reduction <maximumf>, %76, %cst_43 [1] : vector<2x16xf32> to vector<2xf32>
    %78 = vector.shape_cast %77 : vector<2xf32> to vector<2x1xf32>
    %79 = vector.broadcast %78 : vector<2x1xf32> to vector<2x16xf32>
    %80 = arith.subf %76, %79 : vector<2x16xf32>
    %81 = math.exp %80 : vector<2x16xf32>
    %82 = arith.mulf %81, %28 : vector<2x16xf32>
    %cst_44 = arith.constant dense<0.000000e+00> : vector<2xf32>
    %83 = vector.multi_reduction <add>, %82, %cst_44 [1] : vector<2x16xf32> to vector<2xf32>
    %84 = vector.shape_cast %83 : vector<2xf32> to vector<2x1xf32>
    %cst_45 = arith.constant 1.000000e-30 : f32
    %85 = vector.broadcast %cst_45 : f32 to vector<2x1xf32>
    %86 = arith.maximumf %84, %85 : vector<2x1xf32>
    %87 = tpu.reciprocal %86 {approx = true} : vector<2x1xf32> -> vector<2x1xf32>
    %88 = vector.broadcast %87 : vector<2x1xf32> to vector<2x16xf32>
    %89 = arith.mulf %82, %88 : vector<2x16xf32>
    %cst_46 = arith.constant dense<0.000000e+00> : vector<2x32xf32>
    %90 = tpu.matmul %89, %27, %cst_46 {dimension_numbers = #tpu.dot_dimension_numbers<[1], [0], [0], [1], [0, 0, 1, 1], [], []>} : vector<2x16xf32>, vector<16x32xf32>, vector<2x32xf32> -> vector<2x32xf32>
    %cst_47 = arith.constant dense<0.000000e+00> : vector<2x128xf32>
    %91 = tpu.matmul %71, %29, %cst_47 {dimension_numbers = #tpu.dot_dimension_numbers<[1], [0], [0], [1], [0, 0, 1, 1], [], []>} : vector<2x32xf32>, vector<32x128xf32>, vector<2x128xf32> -> vector<2x128xf32>
    %cst_48 = arith.constant dense<0.000000e+00> : vector<2x128xf32>
    %92 = tpu.matmul %90, %30, %cst_48 {dimension_numbers = #tpu.dot_dimension_numbers<[1], [0], [0], [1], [0, 0, 1, 1], [], []>} : vector<2x32xf32>, vector<32x128xf32>, vector<2x128xf32> -> vector<2x128xf32>
    %93 = arith.addf %91, %92 : vector<2x128xf32>
    %94 = vector.broadcast %31 : vector<1x128xf32> to vector<2x128xf32>
    %95 = arith.addf %93, %94 : vector<2x128xf32>
    %96 = vector.extract_strided_slice %95 {offsets = [0, 0], sizes = [2, 32], strides = [1, 1]} : vector<2x128xf32> to vector<2x32xf32>
    %cst_49 = arith.constant 5.000000e-01 : f32
    %97 = vector.broadcast %cst_49 : f32 to vector<2x32xf32>
    %98 = arith.mulf %97, %96 : vector<2x32xf32>
    %99 = math.tanh %98 : vector<2x32xf32>
    %cst_50 = arith.constant 1.000000e+00 : f32
    %100 = vector.broadcast %cst_50 : f32 to vector<2x32xf32>
    %101 = arith.addf %99, %100 : vector<2x32xf32>
    %cst_51 = arith.constant 5.000000e-01 : f32
    %102 = vector.broadcast %cst_51 : f32 to vector<2x32xf32>
    %103 = arith.mulf %102, %101 : vector<2x32xf32>
    %104 = vector.extract_strided_slice %95 {offsets = [0, 32], sizes = [2, 32], strides = [1, 1]} : vector<2x128xf32> to vector<2x32xf32>
    %cst_52 = arith.constant 5.000000e-01 : f32
    %105 = vector.broadcast %cst_52 : f32 to vector<2x32xf32>
    %106 = arith.mulf %105, %104 : vector<2x32xf32>
    %107 = math.tanh %106 : vector<2x32xf32>
    %cst_53 = arith.constant 1.000000e+00 : f32
    %108 = vector.broadcast %cst_53 : f32 to vector<2x32xf32>
    %109 = arith.addf %107, %108 : vector<2x32xf32>
    %cst_54 = arith.constant 5.000000e-01 : f32
    %110 = vector.broadcast %cst_54 : f32 to vector<2x32xf32>
    %111 = arith.mulf %110, %109 : vector<2x32xf32>
    %112 = vector.extract_strided_slice %95 {offsets = [0, 64], sizes = [2, 32], strides = [1, 1]} : vector<2x128xf32> to vector<2x32xf32>
    %113 = math.tanh %112 : vector<2x32xf32>
    %114 = vector.extract_strided_slice %95 {offsets = [0, 96], sizes = [2, 32], strides = [1, 1]} : vector<2x128xf32> to vector<2x32xf32>
    %cst_55 = arith.constant 5.000000e-01 : f32
    %115 = vector.broadcast %cst_55 : f32 to vector<2x32xf32>
    %116 = arith.mulf %115, %114 : vector<2x32xf32>
    %117 = math.tanh %116 : vector<2x32xf32>
    %cst_56 = arith.constant 1.000000e+00 : f32
    %118 = vector.broadcast %cst_56 : f32 to vector<2x32xf32>
    %119 = arith.addf %117, %118 : vector<2x32xf32>
    %cst_57 = arith.constant 5.000000e-01 : f32
    %120 = vector.broadcast %cst_57 : f32 to vector<2x32xf32>
    %121 = arith.mulf %120, %119 : vector<2x32xf32>
    %122 = arith.mulf %111, %69 : vector<2x32xf32>
    %123 = arith.mulf %103, %113 : vector<2x32xf32>
    %124 = arith.addf %122, %123 : vector<2x32xf32>
    %125 = math.tanh %124 : vector<2x32xf32>
    %126 = arith.mulf %121, %125 : vector<2x32xf32>
    %cst_58 = arith.constant dense<0.000000e+00> : vector<2x16xf32>
    %127 = tpu.matmul %126, %32, %cst_58 {dimension_numbers = #tpu.dot_dimension_numbers<[1], [0], [0], [1], [0, 0, 1, 1], [], []>} : vector<2x32xf32>, vector<32x16xf32>, vector<2x16xf32> -> vector<2x16xf32>
    %cst_59 = arith.constant 0.000000e+00 : f32
    %128 = vector.broadcast %cst_59 : f32 to vector<2x16xf32>
    %129 = arith.cmpf ogt, %28, %128 : vector<2x16xf32>
    %cst_60 = arith.constant -1.000000e+30 : f32
    %130 = vector.broadcast %cst_60 : f32 to vector<2x16xf32>
    %131 = arith.select %129, %127, %130 : vector<2x16xi1>, vector<2x16xf32>
    %cst_61 = arith.constant dense<0xFF800000> : vector<2xf32>
    %132 = vector.multi_reduction <maximumf>, %131, %cst_61 [1] : vector<2x16xf32> to vector<2xf32>
    %133 = vector.shape_cast %132 : vector<2xf32> to vector<2x1xf32>
    %134 = vector.broadcast %133 : vector<2x1xf32> to vector<2x16xf32>
    %135 = arith.subf %131, %134 : vector<2x16xf32>
    %136 = math.exp %135 : vector<2x16xf32>
    %137 = arith.mulf %136, %28 : vector<2x16xf32>
    %cst_62 = arith.constant dense<0.000000e+00> : vector<2xf32>
    %138 = vector.multi_reduction <add>, %137, %cst_62 [1] : vector<2x16xf32> to vector<2xf32>
    %139 = vector.shape_cast %138 : vector<2xf32> to vector<2x1xf32>
    %cst_63 = arith.constant 1.000000e-30 : f32
    %140 = vector.broadcast %cst_63 : f32 to vector<2x1xf32>
    %141 = arith.maximumf %139, %140 : vector<2x1xf32>
    %142 = tpu.reciprocal %141 {approx = true} : vector<2x1xf32> -> vector<2x1xf32>
    %143 = vector.broadcast %142 : vector<2x1xf32> to vector<2x16xf32>
    %144 = arith.mulf %137, %143 : vector<2x16xf32>
    %cst_64 = arith.constant dense<0.000000e+00> : vector<2x32xf32>
    %145 = tpu.matmul %144, %27, %cst_64 {dimension_numbers = #tpu.dot_dimension_numbers<[1], [0], [0], [1], [0, 0, 1, 1], [], []>} : vector<2x16xf32>, vector<16x32xf32>, vector<2x32xf32> -> vector<2x32xf32>
    %cst_65 = arith.constant dense<0.000000e+00> : vector<2x128xf32>
    %146 = tpu.matmul %126, %29, %cst_65 {dimension_numbers = #tpu.dot_dimension_numbers<[1], [0], [0], [1], [0, 0, 1, 1], [], []>} : vector<2x32xf32>, vector<32x128xf32>, vector<2x128xf32> -> vector<2x128xf32>
    %cst_66 = arith.constant dense<0.000000e+00> : vector<2x128xf32>
    %147 = tpu.matmul %145, %30, %cst_66 {dimension_numbers = #tpu.dot_dimension_numbers<[1], [0], [0], [1], [0, 0, 1, 1], [], []>} : vector<2x32xf32>, vector<32x128xf32>, vector<2x128xf32> -> vector<2x128xf32>
    %148 = arith.addf %146, %147 : vector<2x128xf32>
    %149 = vector.broadcast %31 : vector<1x128xf32> to vector<2x128xf32>
    %150 = arith.addf %148, %149 : vector<2x128xf32>
    %151 = vector.extract_strided_slice %150 {offsets = [0, 0], sizes = [2, 32], strides = [1, 1]} : vector<2x128xf32> to vector<2x32xf32>
    %cst_67 = arith.constant 5.000000e-01 : f32
    %152 = vector.broadcast %cst_67 : f32 to vector<2x32xf32>
    %153 = arith.mulf %152, %151 : vector<2x32xf32>
    %154 = math.tanh %153 : vector<2x32xf32>
    %cst_68 = arith.constant 1.000000e+00 : f32
    %155 = vector.broadcast %cst_68 : f32 to vector<2x32xf32>
    %156 = arith.addf %154, %155 : vector<2x32xf32>
    %cst_69 = arith.constant 5.000000e-01 : f32
    %157 = vector.broadcast %cst_69 : f32 to vector<2x32xf32>
    %158 = arith.mulf %157, %156 : vector<2x32xf32>
    %159 = vector.extract_strided_slice %150 {offsets = [0, 32], sizes = [2, 32], strides = [1, 1]} : vector<2x128xf32> to vector<2x32xf32>
    %cst_70 = arith.constant 5.000000e-01 : f32
    %160 = vector.broadcast %cst_70 : f32 to vector<2x32xf32>
    %161 = arith.mulf %160, %159 : vector<2x32xf32>
    %162 = math.tanh %161 : vector<2x32xf32>
    %cst_71 = arith.constant 1.000000e+00 : f32
    %163 = vector.broadcast %cst_71 : f32 to vector<2x32xf32>
    %164 = arith.addf %162, %163 : vector<2x32xf32>
    %cst_72 = arith.constant 5.000000e-01 : f32
    %165 = vector.broadcast %cst_72 : f32 to vector<2x32xf32>
    %166 = arith.mulf %165, %164 : vector<2x32xf32>
    %167 = vector.extract_strided_slice %150 {offsets = [0, 64], sizes = [2, 32], strides = [1, 1]} : vector<2x128xf32> to vector<2x32xf32>
    %168 = math.tanh %167 : vector<2x32xf32>
    %169 = vector.extract_strided_slice %150 {offsets = [0, 96], sizes = [2, 32], strides = [1, 1]} : vector<2x128xf32> to vector<2x32xf32>
    %cst_73 = arith.constant 5.000000e-01 : f32
    %170 = vector.broadcast %cst_73 : f32 to vector<2x32xf32>
    %171 = arith.mulf %170, %169 : vector<2x32xf32>
    %172 = math.tanh %171 : vector<2x32xf32>
    %cst_74 = arith.constant 1.000000e+00 : f32
    %173 = vector.broadcast %cst_74 : f32 to vector<2x32xf32>
    %174 = arith.addf %172, %173 : vector<2x32xf32>
    %cst_75 = arith.constant 5.000000e-01 : f32
    %175 = vector.broadcast %cst_75 : f32 to vector<2x32xf32>
    %176 = arith.mulf %175, %174 : vector<2x32xf32>
    %177 = arith.mulf %166, %124 : vector<2x32xf32>
    %178 = arith.mulf %158, %168 : vector<2x32xf32>
    %179 = arith.addf %177, %178 : vector<2x32xf32>
    %180 = math.tanh %179 : vector<2x32xf32>
    %181 = arith.mulf %176, %180 : vector<2x32xf32>
    %cst_76 = arith.constant dense<0.000000e+00> : vector<2x16xf32>
    %182 = tpu.matmul %181, %32, %cst_76 {dimension_numbers = #tpu.dot_dimension_numbers<[1], [0], [0], [1], [0, 0, 1, 1], [], []>} : vector<2x32xf32>, vector<32x16xf32>, vector<2x16xf32> -> vector<2x16xf32>
    %cst_77 = arith.constant 0.000000e+00 : f32
    %183 = vector.broadcast %cst_77 : f32 to vector<2x16xf32>
    %184 = arith.cmpf ogt, %28, %183 : vector<2x16xf32>
    %cst_78 = arith.constant -1.000000e+30 : f32
    %185 = vector.broadcast %cst_78 : f32 to vector<2x16xf32>
    %186 = arith.select %184, %182, %185 : vector<2x16xi1>, vector<2x16xf32>
    %cst_79 = arith.constant dense<0xFF800000> : vector<2xf32>
    %187 = vector.multi_reduction <maximumf>, %186, %cst_79 [1] : vector<2x16xf32> to vector<2xf32>
    %188 = vector.shape_cast %187 : vector<2xf32> to vector<2x1xf32>
    %189 = vector.broadcast %188 : vector<2x1xf32> to vector<2x16xf32>
    %190 = arith.subf %186, %189 : vector<2x16xf32>
    %191 = math.exp %190 : vector<2x16xf32>
    %192 = arith.mulf %191, %28 : vector<2x16xf32>
    %cst_80 = arith.constant dense<0.000000e+00> : vector<2xf32>
    %193 = vector.multi_reduction <add>, %192, %cst_80 [1] : vector<2x16xf32> to vector<2xf32>
    %194 = vector.shape_cast %193 : vector<2xf32> to vector<2x1xf32>
    %cst_81 = arith.constant 1.000000e-30 : f32
    %195 = vector.broadcast %cst_81 : f32 to vector<2x1xf32>
    %196 = arith.maximumf %194, %195 : vector<2x1xf32>
    %197 = tpu.reciprocal %196 {approx = true} : vector<2x1xf32> -> vector<2x1xf32>
    %198 = vector.broadcast %197 : vector<2x1xf32> to vector<2x16xf32>
    %199 = arith.mulf %192, %198 : vector<2x16xf32>
    %cst_82 = arith.constant dense<0.000000e+00> : vector<2x32xf32>
    %200 = tpu.matmul %199, %27, %cst_82 {dimension_numbers = #tpu.dot_dimension_numbers<[1], [0], [0], [1], [0, 0, 1, 1], [], []>} : vector<2x16xf32>, vector<16x32xf32>, vector<2x32xf32> -> vector<2x32xf32>
    %cst_83 = arith.constant dense<0.000000e+00> : vector<2x128xf32>
    %201 = tpu.matmul %181, %29, %cst_83 {dimension_numbers = #tpu.dot_dimension_numbers<[1], [0], [0], [1], [0, 0, 1, 1], [], []>} : vector<2x32xf32>, vector<32x128xf32>, vector<2x128xf32> -> vector<2x128xf32>
    %cst_84 = arith.constant dense<0.000000e+00> : vector<2x128xf32>
    %202 = tpu.matmul %200, %30, %cst_84 {dimension_numbers = #tpu.dot_dimension_numbers<[1], [0], [0], [1], [0, 0, 1, 1], [], []>} : vector<2x32xf32>, vector<32x128xf32>, vector<2x128xf32> -> vector<2x128xf32>
    %203 = arith.addf %201, %202 : vector<2x128xf32>
    %204 = vector.broadcast %31 : vector<1x128xf32> to vector<2x128xf32>
    %205 = arith.addf %203, %204 : vector<2x128xf32>
    %206 = vector.extract_strided_slice %205 {offsets = [0, 0], sizes = [2, 32], strides = [1, 1]} : vector<2x128xf32> to vector<2x32xf32>
    %cst_85 = arith.constant 5.000000e-01 : f32
    %207 = vector.broadcast %cst_85 : f32 to vector<2x32xf32>
    %208 = arith.mulf %207, %206 : vector<2x32xf32>
    %209 = math.tanh %208 : vector<2x32xf32>
    %cst_86 = arith.constant 1.000000e+00 : f32
    %210 = vector.broadcast %cst_86 : f32 to vector<2x32xf32>
    %211 = arith.addf %209, %210 : vector<2x32xf32>
    %cst_87 = arith.constant 5.000000e-01 : f32
    %212 = vector.broadcast %cst_87 : f32 to vector<2x32xf32>
    %213 = arith.mulf %212, %211 : vector<2x32xf32>
    %214 = vector.extract_strided_slice %205 {offsets = [0, 32], sizes = [2, 32], strides = [1, 1]} : vector<2x128xf32> to vector<2x32xf32>
    %cst_88 = arith.constant 5.000000e-01 : f32
    %215 = vector.broadcast %cst_88 : f32 to vector<2x32xf32>
    %216 = arith.mulf %215, %214 : vector<2x32xf32>
    %217 = math.tanh %216 : vector<2x32xf32>
    %cst_89 = arith.constant 1.000000e+00 : f32
    %218 = vector.broadcast %cst_89 : f32 to vector<2x32xf32>
    %219 = arith.addf %217, %218 : vector<2x32xf32>
    %cst_90 = arith.constant 5.000000e-01 : f32
    %220 = vector.broadcast %cst_90 : f32 to vector<2x32xf32>
    %221 = arith.mulf %220, %219 : vector<2x32xf32>
    %222 = vector.extract_strided_slice %205 {offsets = [0, 64], sizes = [2, 32], strides = [1, 1]} : vector<2x128xf32> to vector<2x32xf32>
    %223 = math.tanh %222 : vector<2x32xf32>
    %224 = vector.extract_strided_slice %205 {offsets = [0, 96], sizes = [2, 32], strides = [1, 1]} : vector<2x128xf32> to vector<2x32xf32>
    %cst_91 = arith.constant 5.000000e-01 : f32
    %225 = vector.broadcast %cst_91 : f32 to vector<2x32xf32>
    %226 = arith.mulf %225, %224 : vector<2x32xf32>
    %227 = math.tanh %226 : vector<2x32xf32>
    %cst_92 = arith.constant 1.000000e+00 : f32
    %228 = vector.broadcast %cst_92 : f32 to vector<2x32xf32>
    %229 = arith.addf %227, %228 : vector<2x32xf32>
    %cst_93 = arith.constant 5.000000e-01 : f32
    %230 = vector.broadcast %cst_93 : f32 to vector<2x32xf32>
    %231 = arith.mulf %230, %229 : vector<2x32xf32>
    %232 = arith.mulf %221, %179 : vector<2x32xf32>
    %233 = arith.mulf %213, %223 : vector<2x32xf32>
    %234 = arith.addf %232, %233 : vector<2x32xf32>
    %235 = math.tanh %234 : vector<2x32xf32>
    %236 = arith.mulf %231, %235 : vector<2x32xf32>
    %cst_94 = arith.constant dense<0.000000e+00> : vector<2x16xf32>
    %237 = tpu.matmul %236, %32, %cst_94 {dimension_numbers = #tpu.dot_dimension_numbers<[1], [0], [0], [1], [0, 0, 1, 1], [], []>} : vector<2x32xf32>, vector<32x16xf32>, vector<2x16xf32> -> vector<2x16xf32>
    %cst_95 = arith.constant 0.000000e+00 : f32
    %238 = vector.broadcast %cst_95 : f32 to vector<2x16xf32>
    %239 = arith.cmpf ogt, %28, %238 : vector<2x16xf32>
    %cst_96 = arith.constant -1.000000e+30 : f32
    %240 = vector.broadcast %cst_96 : f32 to vector<2x16xf32>
    %241 = arith.select %239, %237, %240 : vector<2x16xi1>, vector<2x16xf32>
    %cst_97 = arith.constant dense<0xFF800000> : vector<2xf32>
    %242 = vector.multi_reduction <maximumf>, %241, %cst_97 [1] : vector<2x16xf32> to vector<2xf32>
    %243 = vector.shape_cast %242 : vector<2xf32> to vector<2x1xf32>
    %244 = vector.broadcast %243 : vector<2x1xf32> to vector<2x16xf32>
    %245 = arith.subf %241, %244 : vector<2x16xf32>
    %246 = math.exp %245 : vector<2x16xf32>
    %247 = arith.mulf %246, %28 : vector<2x16xf32>
    %cst_98 = arith.constant dense<0.000000e+00> : vector<2xf32>
    %248 = vector.multi_reduction <add>, %247, %cst_98 [1] : vector<2x16xf32> to vector<2xf32>
    %249 = vector.shape_cast %248 : vector<2xf32> to vector<2x1xf32>
    %cst_99 = arith.constant 1.000000e-30 : f32
    %250 = vector.broadcast %cst_99 : f32 to vector<2x1xf32>
    %251 = arith.maximumf %249, %250 : vector<2x1xf32>
    %252 = tpu.reciprocal %251 {approx = true} : vector<2x1xf32> -> vector<2x1xf32>
    %253 = vector.broadcast %252 : vector<2x1xf32> to vector<2x16xf32>
    %254 = arith.mulf %247, %253 : vector<2x16xf32>
    %cst_100 = arith.constant dense<0.000000e+00> : vector<2x32xf32>
    %255 = tpu.matmul %254, %27, %cst_100 {dimension_numbers = #tpu.dot_dimension_numbers<[1], [0], [0], [1], [0, 0, 1, 1], [], []>} : vector<2x16xf32>, vector<16x32xf32>, vector<2x32xf32> -> vector<2x32xf32>
    %cst_101 = arith.constant dense<0.000000e+00> : vector<2x128xf32>
    %256 = tpu.matmul %236, %29, %cst_101 {dimension_numbers = #tpu.dot_dimension_numbers<[1], [0], [0], [1], [0, 0, 1, 1], [], []>} : vector<2x32xf32>, vector<32x128xf32>, vector<2x128xf32> -> vector<2x128xf32>
    %cst_102 = arith.constant dense<0.000000e+00> : vector<2x128xf32>
    %257 = tpu.matmul %255, %30, %cst_102 {dimension_numbers = #tpu.dot_dimension_numbers<[1], [0], [0], [1], [0, 0, 1, 1], [], []>} : vector<2x32xf32>, vector<32x128xf32>, vector<2x128xf32> -> vector<2x128xf32>
    %258 = arith.addf %256, %257 : vector<2x128xf32>
    %259 = vector.broadcast %31 : vector<1x128xf32> to vector<2x128xf32>
    %260 = arith.addf %258, %259 : vector<2x128xf32>
    %261 = vector.extract_strided_slice %260 {offsets = [0, 0], sizes = [2, 32], strides = [1, 1]} : vector<2x128xf32> to vector<2x32xf32>
    %cst_103 = arith.constant 5.000000e-01 : f32
    %262 = vector.broadcast %cst_103 : f32 to vector<2x32xf32>
    %263 = arith.mulf %262, %261 : vector<2x32xf32>
    %264 = math.tanh %263 : vector<2x32xf32>
    %cst_104 = arith.constant 1.000000e+00 : f32
    %265 = vector.broadcast %cst_104 : f32 to vector<2x32xf32>
    %266 = arith.addf %264, %265 : vector<2x32xf32>
    %cst_105 = arith.constant 5.000000e-01 : f32
    %267 = vector.broadcast %cst_105 : f32 to vector<2x32xf32>
    %268 = arith.mulf %267, %266 : vector<2x32xf32>
    %269 = vector.extract_strided_slice %260 {offsets = [0, 32], sizes = [2, 32], strides = [1, 1]} : vector<2x128xf32> to vector<2x32xf32>
    %cst_106 = arith.constant 5.000000e-01 : f32
    %270 = vector.broadcast %cst_106 : f32 to vector<2x32xf32>
    %271 = arith.mulf %270, %269 : vector<2x32xf32>
    %272 = math.tanh %271 : vector<2x32xf32>
    %cst_107 = arith.constant 1.000000e+00 : f32
    %273 = vector.broadcast %cst_107 : f32 to vector<2x32xf32>
    %274 = arith.addf %272, %273 : vector<2x32xf32>
    %cst_108 = arith.constant 5.000000e-01 : f32
    %275 = vector.broadcast %cst_108 : f32 to vector<2x32xf32>
    %276 = arith.mulf %275, %274 : vector<2x32xf32>
    %277 = vector.extract_strided_slice %260 {offsets = [0, 64], sizes = [2, 32], strides = [1, 1]} : vector<2x128xf32> to vector<2x32xf32>
    %278 = math.tanh %277 : vector<2x32xf32>
    %279 = vector.extract_strided_slice %260 {offsets = [0, 96], sizes = [2, 32], strides = [1, 1]} : vector<2x128xf32> to vector<2x32xf32>
    %cst_109 = arith.constant 5.000000e-01 : f32
    %280 = vector.broadcast %cst_109 : f32 to vector<2x32xf32>
    %281 = arith.mulf %280, %279 : vector<2x32xf32>
    %282 = math.tanh %281 : vector<2x32xf32>
    %cst_110 = arith.constant 1.000000e+00 : f32
    %283 = vector.broadcast %cst_110 : f32 to vector<2x32xf32>
    %284 = arith.addf %282, %283 : vector<2x32xf32>
    %cst_111 = arith.constant 5.000000e-01 : f32
    %285 = vector.broadcast %cst_111 : f32 to vector<2x32xf32>
    %286 = arith.mulf %285, %284 : vector<2x32xf32>
    %287 = arith.mulf %276, %234 : vector<2x32xf32>
    %288 = arith.mulf %268, %278 : vector<2x32xf32>
    %289 = arith.addf %287, %288 : vector<2x32xf32>
    %290 = math.tanh %289 : vector<2x32xf32>
    %291 = arith.mulf %286, %290 : vector<2x32xf32>
    %cst_112 = arith.constant dense<0.000000e+00> : vector<2x16xf32>
    %292 = tpu.matmul %291, %32, %cst_112 {dimension_numbers = #tpu.dot_dimension_numbers<[1], [0], [0], [1], [0, 0, 1, 1], [], []>} : vector<2x32xf32>, vector<32x16xf32>, vector<2x16xf32> -> vector<2x16xf32>
    %cst_113 = arith.constant 0.000000e+00 : f32
    %293 = vector.broadcast %cst_113 : f32 to vector<2x16xf32>
    %294 = arith.cmpf ogt, %28, %293 : vector<2x16xf32>
    %cst_114 = arith.constant -1.000000e+30 : f32
    %295 = vector.broadcast %cst_114 : f32 to vector<2x16xf32>
    %296 = arith.select %294, %292, %295 : vector<2x16xi1>, vector<2x16xf32>
    %cst_115 = arith.constant dense<0xFF800000> : vector<2xf32>
    %297 = vector.multi_reduction <maximumf>, %296, %cst_115 [1] : vector<2x16xf32> to vector<2xf32>
    %298 = vector.shape_cast %297 : vector<2xf32> to vector<2x1xf32>
    %299 = vector.broadcast %298 : vector<2x1xf32> to vector<2x16xf32>
    %300 = arith.subf %296, %299 : vector<2x16xf32>
    %301 = math.exp %300 : vector<2x16xf32>
    %302 = arith.mulf %301, %28 : vector<2x16xf32>
    %cst_116 = arith.constant dense<0.000000e+00> : vector<2xf32>
    %303 = vector.multi_reduction <add>, %302, %cst_116 [1] : vector<2x16xf32> to vector<2xf32>
    %304 = vector.shape_cast %303 : vector<2xf32> to vector<2x1xf32>
    %cst_117 = arith.constant 1.000000e-30 : f32
    %305 = vector.broadcast %cst_117 : f32 to vector<2x1xf32>
    %306 = arith.maximumf %304, %305 : vector<2x1xf32>
    %307 = tpu.reciprocal %306 {approx = true} : vector<2x1xf32> -> vector<2x1xf32>
    %308 = vector.broadcast %307 : vector<2x1xf32> to vector<2x16xf32>
    %309 = arith.mulf %302, %308 : vector<2x16xf32>
    %cst_118 = arith.constant dense<0.000000e+00> : vector<2x32xf32>
    %310 = tpu.matmul %309, %27, %cst_118 {dimension_numbers = #tpu.dot_dimension_numbers<[1], [0], [0], [1], [0, 0, 1, 1], [], []>} : vector<2x16xf32>, vector<16x32xf32>, vector<2x32xf32> -> vector<2x32xf32>
    %cst_119 = arith.constant dense<0.000000e+00> : vector<2x128xf32>
    %311 = tpu.matmul %291, %29, %cst_119 {dimension_numbers = #tpu.dot_dimension_numbers<[1], [0], [0], [1], [0, 0, 1, 1], [], []>} : vector<2x32xf32>, vector<32x128xf32>, vector<2x128xf32> -> vector<2x128xf32>
    %cst_120 = arith.constant dense<0.000000e+00> : vector<2x128xf32>
    %312 = tpu.matmul %310, %30, %cst_120 {dimension_numbers = #tpu.dot_dimension_numbers<[1], [0], [0], [1], [0, 0, 1, 1], [], []>} : vector<2x32xf32>, vector<32x128xf32>, vector<2x128xf32> -> vector<2x128xf32>
    %313 = arith.addf %311, %312 : vector<2x128xf32>
    %314 = vector.broadcast %31 : vector<1x128xf32> to vector<2x128xf32>
    %315 = arith.addf %313, %314 : vector<2x128xf32>
    %316 = vector.extract_strided_slice %315 {offsets = [0, 0], sizes = [2, 32], strides = [1, 1]} : vector<2x128xf32> to vector<2x32xf32>
    %cst_121 = arith.constant 5.000000e-01 : f32
    %317 = vector.broadcast %cst_121 : f32 to vector<2x32xf32>
    %318 = arith.mulf %317, %316 : vector<2x32xf32>
    %319 = math.tanh %318 : vector<2x32xf32>
    %cst_122 = arith.constant 1.000000e+00 : f32
    %320 = vector.broadcast %cst_122 : f32 to vector<2x32xf32>
    %321 = arith.addf %319, %320 : vector<2x32xf32>
    %cst_123 = arith.constant 5.000000e-01 : f32
    %322 = vector.broadcast %cst_123 : f32 to vector<2x32xf32>
    %323 = arith.mulf %322, %321 : vector<2x32xf32>
    %324 = vector.extract_strided_slice %315 {offsets = [0, 32], sizes = [2, 32], strides = [1, 1]} : vector<2x128xf32> to vector<2x32xf32>
    %cst_124 = arith.constant 5.000000e-01 : f32
    %325 = vector.broadcast %cst_124 : f32 to vector<2x32xf32>
    %326 = arith.mulf %325, %324 : vector<2x32xf32>
    %327 = math.tanh %326 : vector<2x32xf32>
    %cst_125 = arith.constant 1.000000e+00 : f32
    %328 = vector.broadcast %cst_125 : f32 to vector<2x32xf32>
    %329 = arith.addf %327, %328 : vector<2x32xf32>
    %cst_126 = arith.constant 5.000000e-01 : f32
    %330 = vector.broadcast %cst_126 : f32 to vector<2x32xf32>
    %331 = arith.mulf %330, %329 : vector<2x32xf32>
    %332 = vector.extract_strided_slice %315 {offsets = [0, 64], sizes = [2, 32], strides = [1, 1]} : vector<2x128xf32> to vector<2x32xf32>
    %333 = math.tanh %332 : vector<2x32xf32>
    %334 = vector.extract_strided_slice %315 {offsets = [0, 96], sizes = [2, 32], strides = [1, 1]} : vector<2x128xf32> to vector<2x32xf32>
    %cst_127 = arith.constant 5.000000e-01 : f32
    %335 = vector.broadcast %cst_127 : f32 to vector<2x32xf32>
    %336 = arith.mulf %335, %334 : vector<2x32xf32>
    %337 = math.tanh %336 : vector<2x32xf32>
    %cst_128 = arith.constant 1.000000e+00 : f32
    %338 = vector.broadcast %cst_128 : f32 to vector<2x32xf32>
    %339 = arith.addf %337, %338 : vector<2x32xf32>
    %cst_129 = arith.constant 5.000000e-01 : f32
    %340 = vector.broadcast %cst_129 : f32 to vector<2x32xf32>
    %341 = arith.mulf %340, %339 : vector<2x32xf32>
    %342 = arith.mulf %331, %289 : vector<2x32xf32>
    %343 = arith.mulf %323, %333 : vector<2x32xf32>
    %344 = arith.addf %342, %343 : vector<2x32xf32>
    %345 = math.tanh %344 : vector<2x32xf32>
    %346 = arith.mulf %341, %345 : vector<2x32xf32>
    %cst_130 = arith.constant dense<0.000000e+00> : vector<2x16xf32>
    %347 = tpu.matmul %346, %32, %cst_130 {dimension_numbers = #tpu.dot_dimension_numbers<[1], [0], [0], [1], [0, 0, 1, 1], [], []>} : vector<2x32xf32>, vector<32x16xf32>, vector<2x16xf32> -> vector<2x16xf32>
    %cst_131 = arith.constant 0.000000e+00 : f32
    %348 = vector.broadcast %cst_131 : f32 to vector<2x16xf32>
    %349 = arith.cmpf ogt, %28, %348 : vector<2x16xf32>
    %cst_132 = arith.constant -1.000000e+30 : f32
    %350 = vector.broadcast %cst_132 : f32 to vector<2x16xf32>
    %351 = arith.select %349, %347, %350 : vector<2x16xi1>, vector<2x16xf32>
    %cst_133 = arith.constant dense<0xFF800000> : vector<2xf32>
    %352 = vector.multi_reduction <maximumf>, %351, %cst_133 [1] : vector<2x16xf32> to vector<2xf32>
    %353 = vector.shape_cast %352 : vector<2xf32> to vector<2x1xf32>
    %354 = vector.broadcast %353 : vector<2x1xf32> to vector<2x16xf32>
    %355 = arith.subf %351, %354 : vector<2x16xf32>
    %356 = math.exp %355 : vector<2x16xf32>
    %357 = arith.mulf %356, %28 : vector<2x16xf32>
    %cst_134 = arith.constant dense<0.000000e+00> : vector<2xf32>
    %358 = vector.multi_reduction <add>, %357, %cst_134 [1] : vector<2x16xf32> to vector<2xf32>
    %359 = vector.shape_cast %358 : vector<2xf32> to vector<2x1xf32>
    %cst_135 = arith.constant 1.000000e-30 : f32
    %360 = vector.broadcast %cst_135 : f32 to vector<2x1xf32>
    %361 = arith.maximumf %359, %360 : vector<2x1xf32>
    %362 = tpu.reciprocal %361 {approx = true} : vector<2x1xf32> -> vector<2x1xf32>
    %363 = vector.broadcast %362 : vector<2x1xf32> to vector<2x16xf32>
    %364 = arith.mulf %357, %363 : vector<2x16xf32>
    %cst_136 = arith.constant dense<0.000000e+00> : vector<2x32xf32>
    %365 = tpu.matmul %364, %27, %cst_136 {dimension_numbers = #tpu.dot_dimension_numbers<[1], [0], [0], [1], [0, 0, 1, 1], [], []>} : vector<2x16xf32>, vector<16x32xf32>, vector<2x32xf32> -> vector<2x32xf32>
    %cst_137 = arith.constant dense<0.000000e+00> : vector<2x128xf32>
    %366 = tpu.matmul %346, %29, %cst_137 {dimension_numbers = #tpu.dot_dimension_numbers<[1], [0], [0], [1], [0, 0, 1, 1], [], []>} : vector<2x32xf32>, vector<32x128xf32>, vector<2x128xf32> -> vector<2x128xf32>
    %cst_138 = arith.constant dense<0.000000e+00> : vector<2x128xf32>
    %367 = tpu.matmul %365, %30, %cst_138 {dimension_numbers = #tpu.dot_dimension_numbers<[1], [0], [0], [1], [0, 0, 1, 1], [], []>} : vector<2x32xf32>, vector<32x128xf32>, vector<2x128xf32> -> vector<2x128xf32>
    %368 = arith.addf %366, %367 : vector<2x128xf32>
    %369 = vector.broadcast %31 : vector<1x128xf32> to vector<2x128xf32>
    %370 = arith.addf %368, %369 : vector<2x128xf32>
    %371 = vector.extract_strided_slice %370 {offsets = [0, 0], sizes = [2, 32], strides = [1, 1]} : vector<2x128xf32> to vector<2x32xf32>
    %cst_139 = arith.constant 5.000000e-01 : f32
    %372 = vector.broadcast %cst_139 : f32 to vector<2x32xf32>
    %373 = arith.mulf %372, %371 : vector<2x32xf32>
    %374 = math.tanh %373 : vector<2x32xf32>
    %cst_140 = arith.constant 1.000000e+00 : f32
    %375 = vector.broadcast %cst_140 : f32 to vector<2x32xf32>
    %376 = arith.addf %374, %375 : vector<2x32xf32>
    %cst_141 = arith.constant 5.000000e-01 : f32
    %377 = vector.broadcast %cst_141 : f32 to vector<2x32xf32>
    %378 = arith.mulf %377, %376 : vector<2x32xf32>
    %379 = vector.extract_strided_slice %370 {offsets = [0, 32], sizes = [2, 32], strides = [1, 1]} : vector<2x128xf32> to vector<2x32xf32>
    %cst_142 = arith.constant 5.000000e-01 : f32
    %380 = vector.broadcast %cst_142 : f32 to vector<2x32xf32>
    %381 = arith.mulf %380, %379 : vector<2x32xf32>
    %382 = math.tanh %381 : vector<2x32xf32>
    %cst_143 = arith.constant 1.000000e+00 : f32
    %383 = vector.broadcast %cst_143 : f32 to vector<2x32xf32>
    %384 = arith.addf %382, %383 : vector<2x32xf32>
    %cst_144 = arith.constant 5.000000e-01 : f32
    %385 = vector.broadcast %cst_144 : f32 to vector<2x32xf32>
    %386 = arith.mulf %385, %384 : vector<2x32xf32>
    %387 = vector.extract_strided_slice %370 {offsets = [0, 64], sizes = [2, 32], strides = [1, 1]} : vector<2x128xf32> to vector<2x32xf32>
    %388 = math.tanh %387 : vector<2x32xf32>
    %389 = vector.extract_strided_slice %370 {offsets = [0, 96], sizes = [2, 32], strides = [1, 1]} : vector<2x128xf32> to vector<2x32xf32>
    %cst_145 = arith.constant 5.000000e-01 : f32
    %390 = vector.broadcast %cst_145 : f32 to vector<2x32xf32>
    %391 = arith.mulf %390, %389 : vector<2x32xf32>
    %392 = math.tanh %391 : vector<2x32xf32>
    %cst_146 = arith.constant 1.000000e+00 : f32
    %393 = vector.broadcast %cst_146 : f32 to vector<2x32xf32>
    %394 = arith.addf %392, %393 : vector<2x32xf32>
    %cst_147 = arith.constant 5.000000e-01 : f32
    %395 = vector.broadcast %cst_147 : f32 to vector<2x32xf32>
    %396 = arith.mulf %395, %394 : vector<2x32xf32>
    %397 = arith.mulf %386, %344 : vector<2x32xf32>
    %398 = arith.mulf %378, %388 : vector<2x32xf32>
    %399 = arith.addf %397, %398 : vector<2x32xf32>
    %400 = math.tanh %399 : vector<2x32xf32>
    %401 = arith.mulf %396, %400 : vector<2x32xf32>
    %cst_148 = arith.constant dense<0.000000e+00> : vector<2x16xf32>
    %402 = tpu.matmul %401, %32, %cst_148 {dimension_numbers = #tpu.dot_dimension_numbers<[1], [0], [0], [1], [0, 0, 1, 1], [], []>} : vector<2x32xf32>, vector<32x16xf32>, vector<2x16xf32> -> vector<2x16xf32>
    %cst_149 = arith.constant 0.000000e+00 : f32
    %403 = vector.broadcast %cst_149 : f32 to vector<2x16xf32>
    %404 = arith.cmpf ogt, %28, %403 : vector<2x16xf32>
    %cst_150 = arith.constant -1.000000e+30 : f32
    %405 = vector.broadcast %cst_150 : f32 to vector<2x16xf32>
    %406 = arith.select %404, %402, %405 : vector<2x16xi1>, vector<2x16xf32>
    %cst_151 = arith.constant dense<0xFF800000> : vector<2xf32>
    %407 = vector.multi_reduction <maximumf>, %406, %cst_151 [1] : vector<2x16xf32> to vector<2xf32>
    %408 = vector.shape_cast %407 : vector<2xf32> to vector<2x1xf32>
    %409 = vector.broadcast %408 : vector<2x1xf32> to vector<2x16xf32>
    %410 = arith.subf %406, %409 : vector<2x16xf32>
    %411 = math.exp %410 : vector<2x16xf32>
    %412 = arith.mulf %411, %28 : vector<2x16xf32>
    %cst_152 = arith.constant dense<0.000000e+00> : vector<2xf32>
    %413 = vector.multi_reduction <add>, %412, %cst_152 [1] : vector<2x16xf32> to vector<2xf32>
    %414 = vector.shape_cast %413 : vector<2xf32> to vector<2x1xf32>
    %cst_153 = arith.constant 1.000000e-30 : f32
    %415 = vector.broadcast %cst_153 : f32 to vector<2x1xf32>
    %416 = arith.maximumf %414, %415 : vector<2x1xf32>
    %417 = tpu.reciprocal %416 {approx = true} : vector<2x1xf32> -> vector<2x1xf32>
    %418 = vector.broadcast %417 : vector<2x1xf32> to vector<2x16xf32>
    %419 = arith.mulf %412, %418 : vector<2x16xf32>
    %cst_154 = arith.constant dense<0.000000e+00> : vector<2x32xf32>
    %420 = tpu.matmul %419, %27, %cst_154 {dimension_numbers = #tpu.dot_dimension_numbers<[1], [0], [0], [1], [0, 0, 1, 1], [], []>} : vector<2x16xf32>, vector<16x32xf32>, vector<2x32xf32> -> vector<2x32xf32>
    %cst_155 = arith.constant dense<0.000000e+00> : vector<2x128xf32>
    %421 = tpu.matmul %401, %29, %cst_155 {dimension_numbers = #tpu.dot_dimension_numbers<[1], [0], [0], [1], [0, 0, 1, 1], [], []>} : vector<2x32xf32>, vector<32x128xf32>, vector<2x128xf32> -> vector<2x128xf32>
    %cst_156 = arith.constant dense<0.000000e+00> : vector<2x128xf32>
    %422 = tpu.matmul %420, %30, %cst_156 {dimension_numbers = #tpu.dot_dimension_numbers<[1], [0], [0], [1], [0, 0, 1, 1], [], []>} : vector<2x32xf32>, vector<32x128xf32>, vector<2x128xf32> -> vector<2x128xf32>
    %423 = arith.addf %421, %422 : vector<2x128xf32>
    %424 = vector.broadcast %31 : vector<1x128xf32> to vector<2x128xf32>
    %425 = arith.addf %423, %424 : vector<2x128xf32>
    %426 = vector.extract_strided_slice %425 {offsets = [0, 0], sizes = [2, 32], strides = [1, 1]} : vector<2x128xf32> to vector<2x32xf32>
    %cst_157 = arith.constant 5.000000e-01 : f32
    %427 = vector.broadcast %cst_157 : f32 to vector<2x32xf32>
    %428 = arith.mulf %427, %426 : vector<2x32xf32>
    %429 = math.tanh %428 : vector<2x32xf32>
    %cst_158 = arith.constant 1.000000e+00 : f32
    %430 = vector.broadcast %cst_158 : f32 to vector<2x32xf32>
    %431 = arith.addf %429, %430 : vector<2x32xf32>
    %cst_159 = arith.constant 5.000000e-01 : f32
    %432 = vector.broadcast %cst_159 : f32 to vector<2x32xf32>
    %433 = arith.mulf %432, %431 : vector<2x32xf32>
    %434 = vector.extract_strided_slice %425 {offsets = [0, 32], sizes = [2, 32], strides = [1, 1]} : vector<2x128xf32> to vector<2x32xf32>
    %cst_160 = arith.constant 5.000000e-01 : f32
    %435 = vector.broadcast %cst_160 : f32 to vector<2x32xf32>
    %436 = arith.mulf %435, %434 : vector<2x32xf32>
    %437 = math.tanh %436 : vector<2x32xf32>
    %cst_161 = arith.constant 1.000000e+00 : f32
    %438 = vector.broadcast %cst_161 : f32 to vector<2x32xf32>
    %439 = arith.addf %437, %438 : vector<2x32xf32>
    %cst_162 = arith.constant 5.000000e-01 : f32
    %440 = vector.broadcast %cst_162 : f32 to vector<2x32xf32>
    %441 = arith.mulf %440, %439 : vector<2x32xf32>
    %442 = vector.extract_strided_slice %425 {offsets = [0, 64], sizes = [2, 32], strides = [1, 1]} : vector<2x128xf32> to vector<2x32xf32>
    %443 = math.tanh %442 : vector<2x32xf32>
    %444 = vector.extract_strided_slice %425 {offsets = [0, 96], sizes = [2, 32], strides = [1, 1]} : vector<2x128xf32> to vector<2x32xf32>
    %cst_163 = arith.constant 5.000000e-01 : f32
    %445 = vector.broadcast %cst_163 : f32 to vector<2x32xf32>
    %446 = arith.mulf %445, %444 : vector<2x32xf32>
    %447 = math.tanh %446 : vector<2x32xf32>
    %cst_164 = arith.constant 1.000000e+00 : f32
    %448 = vector.broadcast %cst_164 : f32 to vector<2x32xf32>
    %449 = arith.addf %447, %448 : vector<2x32xf32>
    %cst_165 = arith.constant 5.000000e-01 : f32
    %450 = vector.broadcast %cst_165 : f32 to vector<2x32xf32>
    %451 = arith.mulf %450, %449 : vector<2x32xf32>
    %452 = arith.mulf %441, %399 : vector<2x32xf32>
    %453 = arith.mulf %433, %443 : vector<2x32xf32>
    %454 = arith.addf %452, %453 : vector<2x32xf32>
    %455 = math.tanh %454 : vector<2x32xf32>
    %456 = arith.mulf %451, %455 : vector<2x32xf32>
    %cst_166 = arith.constant dense<0.000000e+00> : vector<2x16xf32>
    %457 = tpu.matmul %456, %32, %cst_166 {dimension_numbers = #tpu.dot_dimension_numbers<[1], [0], [0], [1], [0, 0, 1, 1], [], []>} : vector<2x32xf32>, vector<32x16xf32>, vector<2x16xf32> -> vector<2x16xf32>
    %cst_167 = arith.constant 0.000000e+00 : f32
    %458 = vector.broadcast %cst_167 : f32 to vector<2x16xf32>
    %459 = arith.cmpf ogt, %28, %458 : vector<2x16xf32>
    %cst_168 = arith.constant -1.000000e+30 : f32
    %460 = vector.broadcast %cst_168 : f32 to vector<2x16xf32>
    %461 = arith.select %459, %457, %460 : vector<2x16xi1>, vector<2x16xf32>
    %cst_169 = arith.constant dense<0xFF800000> : vector<2xf32>
    %462 = vector.multi_reduction <maximumf>, %461, %cst_169 [1] : vector<2x16xf32> to vector<2xf32>
    %463 = vector.shape_cast %462 : vector<2xf32> to vector<2x1xf32>
    %464 = vector.broadcast %463 : vector<2x1xf32> to vector<2x16xf32>
    %465 = arith.subf %461, %464 : vector<2x16xf32>
    %466 = math.exp %465 : vector<2x16xf32>
    %467 = arith.mulf %466, %28 : vector<2x16xf32>
    %cst_170 = arith.constant dense<0.000000e+00> : vector<2xf32>
    %468 = vector.multi_reduction <add>, %467, %cst_170 [1] : vector<2x16xf32> to vector<2xf32>
    %469 = vector.shape_cast %468 : vector<2xf32> to vector<2x1xf32>
    %cst_171 = arith.constant 1.000000e-30 : f32
    %470 = vector.broadcast %cst_171 : f32 to vector<2x1xf32>
    %471 = arith.maximumf %469, %470 : vector<2x1xf32>
    %472 = tpu.reciprocal %471 {approx = true} : vector<2x1xf32> -> vector<2x1xf32>
    %473 = vector.broadcast %472 : vector<2x1xf32> to vector<2x16xf32>
    %474 = arith.mulf %467, %473 : vector<2x16xf32>
    %cst_172 = arith.constant dense<0.000000e+00> : vector<2x32xf32>
    %475 = tpu.matmul %474, %27, %cst_172 {dimension_numbers = #tpu.dot_dimension_numbers<[1], [0], [0], [1], [0, 0, 1, 1], [], []>} : vector<2x16xf32>, vector<16x32xf32>, vector<2x32xf32> -> vector<2x32xf32>
    %cst_173 = arith.constant dense<0.000000e+00> : vector<2x128xf32>
    %476 = tpu.matmul %456, %29, %cst_173 {dimension_numbers = #tpu.dot_dimension_numbers<[1], [0], [0], [1], [0, 0, 1, 1], [], []>} : vector<2x32xf32>, vector<32x128xf32>, vector<2x128xf32> -> vector<2x128xf32>
    %cst_174 = arith.constant dense<0.000000e+00> : vector<2x128xf32>
    %477 = tpu.matmul %475, %30, %cst_174 {dimension_numbers = #tpu.dot_dimension_numbers<[1], [0], [0], [1], [0, 0, 1, 1], [], []>} : vector<2x32xf32>, vector<32x128xf32>, vector<2x128xf32> -> vector<2x128xf32>
    %478 = arith.addf %476, %477 : vector<2x128xf32>
    %479 = vector.broadcast %31 : vector<1x128xf32> to vector<2x128xf32>
    %480 = arith.addf %478, %479 : vector<2x128xf32>
    %481 = vector.extract_strided_slice %480 {offsets = [0, 0], sizes = [2, 32], strides = [1, 1]} : vector<2x128xf32> to vector<2x32xf32>
    %cst_175 = arith.constant 5.000000e-01 : f32
    %482 = vector.broadcast %cst_175 : f32 to vector<2x32xf32>
    %483 = arith.mulf %482, %481 : vector<2x32xf32>
    %484 = math.tanh %483 : vector<2x32xf32>
    %cst_176 = arith.constant 1.000000e+00 : f32
    %485 = vector.broadcast %cst_176 : f32 to vector<2x32xf32>
    %486 = arith.addf %484, %485 : vector<2x32xf32>
    %cst_177 = arith.constant 5.000000e-01 : f32
    %487 = vector.broadcast %cst_177 : f32 to vector<2x32xf32>
    %488 = arith.mulf %487, %486 : vector<2x32xf32>
    %489 = vector.extract_strided_slice %480 {offsets = [0, 32], sizes = [2, 32], strides = [1, 1]} : vector<2x128xf32> to vector<2x32xf32>
    %cst_178 = arith.constant 5.000000e-01 : f32
    %490 = vector.broadcast %cst_178 : f32 to vector<2x32xf32>
    %491 = arith.mulf %490, %489 : vector<2x32xf32>
    %492 = math.tanh %491 : vector<2x32xf32>
    %cst_179 = arith.constant 1.000000e+00 : f32
    %493 = vector.broadcast %cst_179 : f32 to vector<2x32xf32>
    %494 = arith.addf %492, %493 : vector<2x32xf32>
    %cst_180 = arith.constant 5.000000e-01 : f32
    %495 = vector.broadcast %cst_180 : f32 to vector<2x32xf32>
    %496 = arith.mulf %495, %494 : vector<2x32xf32>
    %497 = vector.extract_strided_slice %480 {offsets = [0, 64], sizes = [2, 32], strides = [1, 1]} : vector<2x128xf32> to vector<2x32xf32>
    %498 = math.tanh %497 : vector<2x32xf32>
    %499 = vector.extract_strided_slice %480 {offsets = [0, 96], sizes = [2, 32], strides = [1, 1]} : vector<2x128xf32> to vector<2x32xf32>
    %cst_181 = arith.constant 5.000000e-01 : f32
    %500 = vector.broadcast %cst_181 : f32 to vector<2x32xf32>
    %501 = arith.mulf %500, %499 : vector<2x32xf32>
    %502 = math.tanh %501 : vector<2x32xf32>
    %cst_182 = arith.constant 1.000000e+00 : f32
    %503 = vector.broadcast %cst_182 : f32 to vector<2x32xf32>
    %504 = arith.addf %502, %503 : vector<2x32xf32>
    %cst_183 = arith.constant 5.000000e-01 : f32
    %505 = vector.broadcast %cst_183 : f32 to vector<2x32xf32>
    %506 = arith.mulf %505, %504 : vector<2x32xf32>
    %507 = arith.mulf %496, %454 : vector<2x32xf32>
    %508 = arith.mulf %488, %498 : vector<2x32xf32>
    %509 = arith.addf %507, %508 : vector<2x32xf32>
    %510 = math.tanh %509 : vector<2x32xf32>
    %511 = arith.mulf %506, %510 : vector<2x32xf32>
    %cst_184 = arith.constant dense<0.000000e+00> : vector<2x16xf32>
    %512 = tpu.matmul %511, %32, %cst_184 {dimension_numbers = #tpu.dot_dimension_numbers<[1], [0], [0], [1], [0, 0, 1, 1], [], []>} : vector<2x32xf32>, vector<32x16xf32>, vector<2x16xf32> -> vector<2x16xf32>
    %cst_185 = arith.constant 0.000000e+00 : f32
    %513 = vector.broadcast %cst_185 : f32 to vector<2x16xf32>
    %514 = arith.cmpf ogt, %28, %513 : vector<2x16xf32>
    %cst_186 = arith.constant -1.000000e+30 : f32
    %515 = vector.broadcast %cst_186 : f32 to vector<2x16xf32>
    %516 = arith.select %514, %512, %515 : vector<2x16xi1>, vector<2x16xf32>
    %cst_187 = arith.constant dense<0xFF800000> : vector<2xf32>
    %517 = vector.multi_reduction <maximumf>, %516, %cst_187 [1] : vector<2x16xf32> to vector<2xf32>
    %518 = vector.shape_cast %517 : vector<2xf32> to vector<2x1xf32>
    %519 = vector.broadcast %518 : vector<2x1xf32> to vector<2x16xf32>
    %520 = arith.subf %516, %519 : vector<2x16xf32>
    %521 = math.exp %520 : vector<2x16xf32>
    %522 = arith.mulf %521, %28 : vector<2x16xf32>
    %cst_188 = arith.constant dense<0.000000e+00> : vector<2xf32>
    %523 = vector.multi_reduction <add>, %522, %cst_188 [1] : vector<2x16xf32> to vector<2xf32>
    %524 = vector.shape_cast %523 : vector<2xf32> to vector<2x1xf32>
    %cst_189 = arith.constant 1.000000e-30 : f32
    %525 = vector.broadcast %cst_189 : f32 to vector<2x1xf32>
    %526 = arith.maximumf %524, %525 : vector<2x1xf32>
    %527 = tpu.reciprocal %526 {approx = true} : vector<2x1xf32> -> vector<2x1xf32>
    %528 = vector.broadcast %527 : vector<2x1xf32> to vector<2x16xf32>
    %529 = arith.mulf %522, %528 : vector<2x16xf32>
    %cst_190 = arith.constant dense<0.000000e+00> : vector<2x32xf32>
    %530 = tpu.matmul %529, %27, %cst_190 {dimension_numbers = #tpu.dot_dimension_numbers<[1], [0], [0], [1], [0, 0, 1, 1], [], []>} : vector<2x16xf32>, vector<16x32xf32>, vector<2x32xf32> -> vector<2x32xf32>
    %cst_191 = arith.constant dense<0.000000e+00> : vector<2x128xf32>
    %531 = tpu.matmul %511, %29, %cst_191 {dimension_numbers = #tpu.dot_dimension_numbers<[1], [0], [0], [1], [0, 0, 1, 1], [], []>} : vector<2x32xf32>, vector<32x128xf32>, vector<2x128xf32> -> vector<2x128xf32>
    %cst_192 = arith.constant dense<0.000000e+00> : vector<2x128xf32>
    %532 = tpu.matmul %530, %30, %cst_192 {dimension_numbers = #tpu.dot_dimension_numbers<[1], [0], [0], [1], [0, 0, 1, 1], [], []>} : vector<2x32xf32>, vector<32x128xf32>, vector<2x128xf32> -> vector<2x128xf32>
    %533 = arith.addf %531, %532 : vector<2x128xf32>
    %534 = vector.broadcast %31 : vector<1x128xf32> to vector<2x128xf32>
    %535 = arith.addf %533, %534 : vector<2x128xf32>
    %536 = vector.extract_strided_slice %535 {offsets = [0, 0], sizes = [2, 32], strides = [1, 1]} : vector<2x128xf32> to vector<2x32xf32>
    %cst_193 = arith.constant 5.000000e-01 : f32
    %537 = vector.broadcast %cst_193 : f32 to vector<2x32xf32>
    %538 = arith.mulf %537, %536 : vector<2x32xf32>
    %539 = math.tanh %538 : vector<2x32xf32>
    %cst_194 = arith.constant 1.000000e+00 : f32
    %540 = vector.broadcast %cst_194 : f32 to vector<2x32xf32>
    %541 = arith.addf %539, %540 : vector<2x32xf32>
    %cst_195 = arith.constant 5.000000e-01 : f32
    %542 = vector.broadcast %cst_195 : f32 to vector<2x32xf32>
    %543 = arith.mulf %542, %541 : vector<2x32xf32>
    %544 = vector.extract_strided_slice %535 {offsets = [0, 32], sizes = [2, 32], strides = [1, 1]} : vector<2x128xf32> to vector<2x32xf32>
    %cst_196 = arith.constant 5.000000e-01 : f32
    %545 = vector.broadcast %cst_196 : f32 to vector<2x32xf32>
    %546 = arith.mulf %545, %544 : vector<2x32xf32>
    %547 = math.tanh %546 : vector<2x32xf32>
    %cst_197 = arith.constant 1.000000e+00 : f32
    %548 = vector.broadcast %cst_197 : f32 to vector<2x32xf32>
    %549 = arith.addf %547, %548 : vector<2x32xf32>
    %cst_198 = arith.constant 5.000000e-01 : f32
    %550 = vector.broadcast %cst_198 : f32 to vector<2x32xf32>
    %551 = arith.mulf %550, %549 : vector<2x32xf32>
    %552 = vector.extract_strided_slice %535 {offsets = [0, 64], sizes = [2, 32], strides = [1, 1]} : vector<2x128xf32> to vector<2x32xf32>
    %553 = math.tanh %552 : vector<2x32xf32>
    %554 = vector.extract_strided_slice %535 {offsets = [0, 96], sizes = [2, 32], strides = [1, 1]} : vector<2x128xf32> to vector<2x32xf32>
    %cst_199 = arith.constant 5.000000e-01 : f32
    %555 = vector.broadcast %cst_199 : f32 to vector<2x32xf32>
    %556 = arith.mulf %555, %554 : vector<2x32xf32>
    %557 = math.tanh %556 : vector<2x32xf32>
    %cst_200 = arith.constant 1.000000e+00 : f32
    %558 = vector.broadcast %cst_200 : f32 to vector<2x32xf32>
    %559 = arith.addf %557, %558 : vector<2x32xf32>
    %cst_201 = arith.constant 5.000000e-01 : f32
    %560 = vector.broadcast %cst_201 : f32 to vector<2x32xf32>
    %561 = arith.mulf %560, %559 : vector<2x32xf32>
    %562 = arith.mulf %551, %509 : vector<2x32xf32>
    %563 = arith.mulf %543, %553 : vector<2x32xf32>
    %564 = arith.addf %562, %563 : vector<2x32xf32>
    %565 = math.tanh %564 : vector<2x32xf32>
    %566 = arith.mulf %561, %565 : vector<2x32xf32>
    %cst_202 = arith.constant dense<0.000000e+00> : vector<2x16xf32>
    %567 = tpu.matmul %566, %32, %cst_202 {dimension_numbers = #tpu.dot_dimension_numbers<[1], [0], [0], [1], [0, 0, 1, 1], [], []>} : vector<2x32xf32>, vector<32x16xf32>, vector<2x16xf32> -> vector<2x16xf32>
    %cst_203 = arith.constant 0.000000e+00 : f32
    %568 = vector.broadcast %cst_203 : f32 to vector<2x16xf32>
    %569 = arith.cmpf ogt, %28, %568 : vector<2x16xf32>
    %cst_204 = arith.constant -1.000000e+30 : f32
    %570 = vector.broadcast %cst_204 : f32 to vector<2x16xf32>
    %571 = arith.select %569, %567, %570 : vector<2x16xi1>, vector<2x16xf32>
    %cst_205 = arith.constant dense<0xFF800000> : vector<2xf32>
    %572 = vector.multi_reduction <maximumf>, %571, %cst_205 [1] : vector<2x16xf32> to vector<2xf32>
    %573 = vector.shape_cast %572 : vector<2xf32> to vector<2x1xf32>
    %574 = vector.broadcast %573 : vector<2x1xf32> to vector<2x16xf32>
    %575 = arith.subf %571, %574 : vector<2x16xf32>
    %576 = math.exp %575 : vector<2x16xf32>
    %577 = arith.mulf %576, %28 : vector<2x16xf32>
    %cst_206 = arith.constant dense<0.000000e+00> : vector<2xf32>
    %578 = vector.multi_reduction <add>, %577, %cst_206 [1] : vector<2x16xf32> to vector<2xf32>
    %579 = vector.shape_cast %578 : vector<2xf32> to vector<2x1xf32>
    %cst_207 = arith.constant 1.000000e-30 : f32
    %580 = vector.broadcast %cst_207 : f32 to vector<2x1xf32>
    %581 = arith.maximumf %579, %580 : vector<2x1xf32>
    %582 = tpu.reciprocal %581 {approx = true} : vector<2x1xf32> -> vector<2x1xf32>
    %583 = vector.broadcast %582 : vector<2x1xf32> to vector<2x16xf32>
    %584 = arith.mulf %577, %583 : vector<2x16xf32>
    %cst_208 = arith.constant dense<0.000000e+00> : vector<2x32xf32>
    %585 = tpu.matmul %584, %27, %cst_208 {dimension_numbers = #tpu.dot_dimension_numbers<[1], [0], [0], [1], [0, 0, 1, 1], [], []>} : vector<2x16xf32>, vector<16x32xf32>, vector<2x32xf32> -> vector<2x32xf32>
    %c0_209 = arith.constant 0 : index
    %c0_210 = arith.constant 0 : index
    %586 = vector.load %arg10[%c0_209, %c0_210] : memref<32x32xf32, #tpu.memory_space<vmem>>, vector<32x32xf32>
    %cst_211 = arith.constant dense<0.000000e+00> : vector<2x32xf32>
    %587 = tpu.matmul %566, %586, %cst_211 {dimension_numbers = #tpu.dot_dimension_numbers<[1], [0], [0], [1], [0, 0, 1, 1], [], []>} : vector<2x32xf32>, vector<32x32xf32>, vector<2x32xf32> -> vector<2x32xf32>
    %c0_212 = arith.constant 0 : index
    %c0_213 = arith.constant 0 : index
    %588 = vector.load %arg11[%c0_212, %c0_213] : memref<32x32xf32, #tpu.memory_space<vmem>>, vector<32x32xf32>
    %cst_214 = arith.constant dense<0.000000e+00> : vector<2x32xf32>
    %589 = tpu.matmul %585, %588, %cst_214 {dimension_numbers = #tpu.dot_dimension_numbers<[1], [0], [0], [1], [0, 0, 1, 1], [], []>} : vector<2x32xf32>, vector<32x32xf32>, vector<2x32xf32> -> vector<2x32xf32>
    %590 = arith.addf %587, %589 : vector<2x32xf32>
    %c0_215 = arith.constant 0 : index
    %c0_216 = arith.constant 0 : index
    %591 = vector.load %arg12[%c0_215, %c0_216] : memref<1x32xf32, #tpu.memory_space<vmem>>, vector<1x32xf32>
    %592 = vector.broadcast %591 : vector<1x32xf32> to vector<2x32xf32>
    %593 = arith.addf %590, %592 : vector<2x32xf32>
    %cst_217 = arith.constant 0.000000e+00 : f32
    %594 = vector.broadcast %cst_217 : f32 to vector<2x32xf32>
    %595 = arith.cmpf oge, %593, %594 : vector<2x32xf32>
    %cst_218 = arith.constant 0.00999999977 : f32
    %596 = vector.broadcast %cst_218 : f32 to vector<2x32xf32>
    %597 = arith.mulf %596, %593 : vector<2x32xf32>
    %598 = arith.select %595, %593, %597 : vector<2x32xi1>, vector<2x32xf32>
    %c0_219 = arith.constant 0 : index
    %c0_220 = arith.constant 0 : index
    %599 = vector.load %arg13[%c0_219, %c0_220] : memref<32x4xf32, #tpu.memory_space<vmem>>, vector<32x4xf32>
    %cst_221 = arith.constant dense<0.000000e+00> : vector<2x4xf32>
    %600 = tpu.matmul %598, %599, %cst_221 {dimension_numbers = #tpu.dot_dimension_numbers<[1], [0], [0], [1], [0, 0, 1, 1], [], []>} : vector<2x32xf32>, vector<32x4xf32>, vector<2x4xf32> -> vector<2x4xf32>
    %c0_222 = arith.constant 0 : index
    %c0_223 = arith.constant 0 : index
    %601 = vector.load %arg14[%c0_222, %c0_223] : memref<1x4xf32, #tpu.memory_space<vmem>>, vector<1x4xf32>
    %602 = vector.broadcast %601 : vector<1x4xf32> to vector<2x4xf32>
    %603 = arith.addf %600, %602 : vector<2x4xf32>
    %c0_224 = arith.constant 0 : index
    %c0_225 = arith.constant 0 : index
    %604 = vector.load %arg15[%c0_224, %c0_225] : memref<2x4xf32, #tpu.memory_space<vmem>>, vector<2x4xf32>
    tpu.vector_store %arg15[%c0_224, %c0_225], %603 {strides = array<i32>} : memref<2x4xf32, #tpu.memory_space<vmem>>, vector<2x4xf32>,
    return
  }
}

</mosaic_0001>

<llo_original>
// kernel: tpu_custom_call.1
$region0: #{tpu_custom_call.1}
  #allocation0 [shape = 'u32[]', space=smem, size = 0x4, offset = 0x4, fixed_abs, tag = 'smem constant byte address 0x4 - core index']
  #allocation1 [shape = 'u32[144,128]{1,0:T(1,128)}', space=vmem, size = 0x12000, scoped, tag = 'internal scratch']
  %s0 = inlined_call_operand.hbm [shape: bf16[16,16], index: 0, kind: input, shape index: {}]
  %s1 = inlined_call_operand.vmem [shape: bf16[16,8], index: 1, kind: input, shape index: {}]
  %s2 = inlined_call_operand.hbm [shape: bf16[8,32], index: 2, kind: input, shape index: {}]
  %s3 = inlined_call_operand.hbm [shape: f32[1,32], index: 3, kind: input, shape index: {}]
  %s4 = inlined_call_operand.hbm [shape: bf16[32,32], index: 4, kind: input, shape index: {}]
  %s5 = inlined_call_operand.hbm [shape: f32[1,32], index: 5, kind: input, shape index: {}]
  %s6 = inlined_call_operand.vmem [shape: f32[2,16], index: 6, kind: input, shape index: {}]
  %s7 = inlined_call_operand.vmem [shape: f32[32,128], index: 7, kind: input, shape index: {}]
  %s8 = inlined_call_operand.vmem [shape: f32[32,128], index: 8, kind: input, shape index: {}]
  %s9 = inlined_call_operand.vmem [shape: f32[1,128], index: 9, kind: input, shape index: {}]
  %s10 = inlined_call_operand.hbm [shape: f32[32,32], index: 10, kind: input, shape index: {}]
  %s11 = inlined_call_operand.hbm [shape: f32[32,32], index: 11, kind: input, shape index: {}]
  %s12 = inlined_call_operand.vmem [shape: f32[1,32], index: 12, kind: input, shape index: {}]
  %s13 = inlined_call_operand.vmem [shape: f32[32,4], index: 13, kind: input, shape index: {}]
  %s14 = inlined_call_operand.vmem [shape: f32[1,4], index: 14, kind: input, shape index: {}]
  %s15 = inlined_call_operand.hbm [shape: f32[2,4], index: 15, kind: output, shape index: {}]
  %s16 = sld [smem:[#allocation0]]
  $region98: #{tpu_custom_call.1} parent=0
    _
  %s18 = ssub.s32 1, %s16
  %s19 = scalar_select 0, %s18, %s16
  $region1: #{tpu_custom_call.1} parent=0
    #allocation2 [shape = 'u8[4096]{0}', space=vmem, size = 0x1000, scoped, tag = 'input window, operand 0, single buffered']
    #allocation3 [shape = 's32[1]{0}', space=sflag, size = 0x4, scoped, tag = 'scoped memory for tpu_custom_call.1']
    #allocation4 [shape = 's32[1]{0}', space=sflag, size = 0x4, scoped, tag = 'scoped memory for tpu_custom_call.1']
    #allocation5 [shape = 'u8[2048]{0}', space=vmem, size = 0x800, scoped, tag = 'input window, operand 2, single buffered']
    #allocation6 [shape = 's32[1]{0}', space=sflag, size = 0x4, scoped, tag = 'scoped memory for tpu_custom_call.1']
    #allocation7 [shape = 'u8[512]{0}', space=vmem, size = 0x400, scoped, tag = 'input window, operand 3, single buffered']
    #allocation8 [shape = 'u8[8192]{0}', space=vmem, size = 0x2000, scoped, tag = 'input window, operand 4, single buffered']
    #allocation9 [shape = 's32[1]{0}', space=sflag, size = 0x4, scoped, tag = 'scoped memory for tpu_custom_call.1']
    #allocation10 [shape = 'u8[512]{0}', space=vmem, size = 0x400, scoped, tag = 'input window, operand 5, single buffered']
    #allocation11 [shape = 'u8[16384]{0}', space=vmem, size = 0x4000, scoped, tag = 'input window, operand 10, single buffered']
    #allocation12 [shape = 's32[1]{0}', space=sflag, size = 0x4, scoped, tag = 'scoped memory for tpu_custom_call.1']
    #allocation13 [shape = 'u8[16384]{0}', space=vmem, size = 0x4000, scoped, tag = 'input window, operand 11, single buffered']
    #allocation14 [shape = 'u8[1024]{0}', space=vmem, size = 0x400, scoped, tag = 'output window, operand 0, single buffered']
    %20 = vsyncpa [#allocation3], 0
    %21 = vsyncpa [#allocation6], 0
    %22 = vsyncpa [#allocation9], 0
    %23 = vsyncpa [#allocation12], 0
    %24 = vsyncpa [#allocation4], 0
    // Predicated region
    $region2: #{tpu_custom_call.1} parent=1 // pred_check
      _
    $region3: #{tpu_custom_call.1} parent=1 // pred_check_branch
      %26 = sbr.rel (0) target = $region5
    $region4: #{tpu_custom_call.1} parent=1 // pred_region
      %s28 = ssub.s32 128, 128
      %29 = vsyncadd [#allocation3], %s28
      %s30 = sshll.u32 [#allocation2], 4
      %s31 = int_to_ptr.vmem [resolvable:$true] %s30
      %36 = dma.hbm_to_vmem [thread:$0]  %s0, 128, %s31, [#allocation3], 64, 64, 4
    $region5: #{tpu_custom_call.1} parent=1 // pred_fallthru
      _
    // Predicated region
    $region6: #{tpu_custom_call.1} parent=1 // pred_check
      _
    $region7: #{tpu_custom_call.1} parent=1 // pred_check_branch
      %38 = sbr.rel (0) target = $region9
    $region8: #{tpu_custom_call.1} parent=1 // pred_region
      _
    $region9: #{tpu_custom_call.1} parent=1 // pred_fallthru
      _
    // Predicated region
    $region10: #{tpu_custom_call.1} parent=1 // pred_check
      _
    $region11: #{tpu_custom_call.1} parent=1 // pred_check_branch
      %40 = sbr.rel (0) target = $region13
    $region12: #{tpu_custom_call.1} parent=1 // pred_region
      %s42 = ssub.s32 64, 64
      %43 = vsyncadd [#allocation6], %s42
      %s45 = sshll.u32 [#allocation5], 4
      %s46 = int_to_ptr.vmem [resolvable:$true] %s45
      %48 = dma.hbm_to_vmem [thread:$0]  %s2, 64, %s46, [#allocation6]
    $region13: #{tpu_custom_call.1} parent=1 // pred_fallthru
      _
    // Predicated region
    $region14: #{tpu_custom_call.1} parent=1 // pred_check
      _
    $region15: #{tpu_custom_call.1} parent=1 // pred_check_branch
      %50 = sbr.rel (0) target = $region17
    $region16: #{tpu_custom_call.1} parent=1 // pred_region
      %s52 = ssub.s32 16, 16
      %53 = vsyncadd [#allocation6], %s52
      %s55 = sshll.u32 [#allocation7], 4
      %s56 = int_to_ptr.vmem [resolvable:$true] %s55
      %58 = dma.hbm_to_vmem [thread:$0]  %s3, 16, %s56, [#allocation6]
    $region17: #{tpu_custom_call.1} parent=1 // pred_fallthru
      _
    // Predicated region
    $region18: #{tpu_custom_call.1} parent=1 // pred_check
      _
    $region19: #{tpu_custom_call.1} parent=1 // pred_check_branch
      %60 = sbr.rel (0) target = $region21
    $region20: #{tpu_custom_call.1} parent=1 // pred_region
      %s62 = ssub.s32 256, 256
      %63 = vsyncadd [#allocation9], %s62
      %s64 = sshll.u32 [#allocation8], 4
      %s65 = int_to_ptr.vmem [resolvable:$true] %s64
      %70 = dma.hbm_to_vmem [thread:$0]  %s4, 256, %s65, [#allocation9], 64, 64, 4
    $region21: #{tpu_custom_call.1} parent=1 // pred_fallthru
      _
    // Predicated region
    $region22: #{tpu_custom_call.1} parent=1 // pred_check
      _
    $region23: #{tpu_custom_call.1} parent=1 // pred_check_branch
      %72 = sbr.rel (0) target = $region25
    $region24: #{tpu_custom_call.1} parent=1 // pred_region
      %s74 = ssub.s32 16, 16
      %75 = vsyncadd [#allocation9], %s74
      %s77 = sshll.u32 [#allocation10], 4
      %s78 = int_to_ptr.vmem [resolvable:$true] %s77
      %80 = dma.hbm_to_vmem [thread:$0]  %s5, 16, %s78, [#allocation9]
    $region25: #{tpu_custom_call.1} parent=1 // pred_fallthru
      _
    // Predicated region
    $region26: #{tpu_custom_call.1} parent=1 // pred_check
      _
    $region27: #{tpu_custom_call.1} parent=1 // pred_check_branch
      %82 = sbr.rel (0) target = $region29
    $region28: #{tpu_custom_call.1} parent=1 // pred_region
      _
    $region29: #{tpu_custom_call.1} parent=1 // pred_fallthru
      _
    // Predicated region
    $region30: #{tpu_custom_call.1} parent=1 // pred_check
      _
    $region31: #{tpu_custom_call.1} parent=1 // pred_check_branch
      %84 = sbr.rel (0) target = $region33
    $region32: #{tpu_custom_call.1} parent=1 // pred_region
      _
    $region33: #{tpu_custom_call.1} parent=1 // pred_fallthru
      _
    // Predicated region
    $region34: #{tpu_custom_call.1} parent=1 // pred_check
      _
    $region35: #{tpu_custom_call.1} parent=1 // pred_check_branch
      %86 = sbr.rel (0) target = $region37
    $region36: #{tpu_custom_call.1} parent=1 // pred_region
      _
    $region37: #{tpu_custom_call.1} parent=1 // pred_fallthru
      _
    // Predicated region
    $region38: #{tpu_custom_call.1} parent=1 // pred_check
      _
    $region39: #{tpu_custom_call.1} parent=1 // pred_check_branch
      %88 = sbr.rel (0) target = $region41
    $region40: #{tpu_custom_call.1} parent=1 // pred_region
      _
    $region41: #{tpu_custom_call.1} parent=1 // pred_fallthru
      _
    // Predicated region
    $region42: #{tpu_custom_call.1} parent=1 // pred_check
      _
    $region43: #{tpu_custom_call.1} parent=1 // pred_check_branch
      %90 = sbr.rel (0) target = $region45
    $region44: #{tpu_custom_call.1} parent=1 // pred_region
      %s92 = ssub.s32 512, 512
      %93 = vsyncadd [#allocation12], %s92
      %s94 = sshll.u32 [#allocation11], 4
      %s95 = int_to_ptr.vmem [resolvable:$true] %s94
      %100 = dma.hbm_to_vmem [thread:$0]  %s10, 512, %s95, [#allocation12], 128, 128, 8
    $region45: #{tpu_custom_call.1} parent=1 // pred_fallthru
      _
    // Predicated region
    $region46: #{tpu_custom_call.1} parent=1 // pred_check
      _
    $region47: #{tpu_custom_call.1} parent=1 // pred_check_branch
      %102 = sbr.rel (0) target = $region49
    $region48: #{tpu_custom_call.1} parent=1 // pred_region
      %s104 = ssub.s32 512, 512
      %105 = vsyncadd [#allocation12], %s104
      %s106 = sshll.u32 [#allocation13], 4
      %s107 = int_to_ptr.vmem [resolvable:$true] %s106
      %112 = dma.hbm_to_vmem [thread:$0]  %s11, 512, %s107, [#allocation12], 128, 128, 8
    $region49: #{tpu_custom_call.1} parent=1 // pred_fallthru
      _
    // Predicated region
    $region50: #{tpu_custom_call.1} parent=1 // pred_check
      _
    $region51: #{tpu_custom_call.1} parent=1 // pred_check_branch
      %114 = sbr.rel (0) target = $region53
    $region52: #{tpu_custom_call.1} parent=1 // pred_region
      _
    $region53: #{tpu_custom_call.1} parent=1 // pred_fallthru
      _
    // Predicated region
    $region54: #{tpu_custom_call.1} parent=1 // pred_check
      _
    $region55: #{tpu_custom_call.1} parent=1 // pred_check_branch
      %116 = sbr.rel (0) target = $region57
    $region56: #{tpu_custom_call.1} parent=1 // pred_region
      _
    $region57: #{tpu_custom_call.1} parent=1 // pred_fallthru
      _
    // Predicated region
    $region58: #{tpu_custom_call.1} parent=1 // pred_check
      _
    $region59: #{tpu_custom_call.1} parent=1 // pred_check_branch
      %118 = sbr.rel (0) target = $region61
    $region60: #{tpu_custom_call.1} parent=1 // pred_region
      _
    $region61: #{tpu_custom_call.1} parent=1 // pred_fallthru
      _
    // Predicated region
    $region62: #{tpu_custom_call.1} parent=1 // pred_check
      _
    $region63: #{tpu_custom_call.1} parent=1 // pred_check_branch
      %120 = sbr.rel (0) target = $region65
    $region64: #{tpu_custom_call.1} parent=1 // pred_region
      %121 = dma.done [#allocation3], 128
    $region65: #{tpu_custom_call.1} parent=1 // pred_fallthru
      _
    // Predicated region
    $region66: #{tpu_custom_call.1} parent=1 // pred_check
      _
    $region67: #{tpu_custom_call.1} parent=1 // pred_check_branch
      %123 = sbr.rel (0) target = $region69
    $region68: #{tpu_custom_call.1} parent=1 // pred_region
      %124 = dma.done [#allocation6], 64
    $region69: #{tpu_custom_call.1} parent=1 // pred_fallthru
      _
    // Predicated region
    $region70: #{tpu_custom_call.1} parent=1 // pred_check
      _
    $region71: #{tpu_custom_call.1} parent=1 // pred_check_branch
      %126 = sbr.rel (0) target = $region73
    $region72: #{tpu_custom_call.1} parent=1 // pred_region
      %127 = dma.done [#allocation6], 16
    $region73: #{tpu_custom_call.1} parent=1 // pred_fallthru
      _
    // Predicated region
    $region74: #{tpu_custom_call.1} parent=1 // pred_check
      _
    $region75: #{tpu_custom_call.1} parent=1 // pred_check_branch
      %129 = sbr.rel (0) target = $region77
    $region76: #{tpu_custom_call.1} parent=1 // pred_region
      %130 = dma.done [#allocation9], 256
    $region77: #{tpu_custom_call.1} parent=1 // pred_fallthru
      _
    // Predicated region
    $region78: #{tpu_custom_call.1} parent=1 // pred_check
      _
    $region79: #{tpu_custom_call.1} parent=1 // pred_check_branch
      %132 = sbr.rel (0) target = $region81
    $region80: #{tpu_custom_call.1} parent=1 // pred_region
      %133 = dma.done [#allocation9], 16
    $region81: #{tpu_custom_call.1} parent=1 // pred_fallthru
      _
    // Predicated region
    $region82: #{tpu_custom_call.1} parent=1 // pred_check
      _
    $region83: #{tpu_custom_call.1} parent=1 // pred_check_branch
      %135 = sbr.rel (0) target = $region85
    $region84: #{tpu_custom_call.1} parent=1 // pred_region
      %136 = dma.done [#allocation12], 512
    $region85: #{tpu_custom_call.1} parent=1 // pred_fallthru
      _
    // Predicated region
    $region86: #{tpu_custom_call.1} parent=1 // pred_check
      _
    $region87: #{tpu_custom_call.1} parent=1 // pred_check_branch
      %138 = sbr.rel (0) target = $region89
    $region88: #{tpu_custom_call.1} parent=1 // pred_region
      %139 = dma.done [#allocation12], 512
    $region89: #{tpu_custom_call.1} parent=1 // pred_fallthru
      _
    %v141 = vld [vmem:[#allocation2] sm:$0xf]
    %v142 = vld [vmem:[#allocation2 + $0x4] sm:$0xf]
    %v143 = vld [vmem:[%s1] sm:$0xf]
    %v144 = vld [vmem:[%s1 + $0x4] sm:$0xf]
    %v145 = vld [vmem:[#allocation5] sm:$0xf]
    %v148 = vunpack.c.l.b16 %v143
    %v149 = vunpack.c.l.b16 %v144
    %v150 = vpack.c.b16 %v149, %v148
    %vm151 = vcmask 64512
    %v153 = vsel %vm151, %v150, 0
    %vm155 = vcmask 1043456
    %v157 = vsel %vm155, %v145, 0
    %159 = vmatprep.subr.bf16.mxu0 0
    %160 = vmatpush1.bf16.msra.mxu0 %v157
    %161 = vmatprep.subr.bf16.mxu0 0
    %162 = vmatpush1.bf16.msra.mxu0 0
    %163 = vmatprep.subr.bf16.mxu0 0
    %164 = vmatpush1.bf16.msra.mxu0 0
    %165 = vmatprep.subr.bf16.mxu0 0
    %166 = vmatpush1.bf16.msra.mxu0 0
    %167 = vmatprep.subr.bf16.mxu0 0
    %168 = vmatpush1.bf16.msra.mxu0 0
    %169 = vmatprep.subr.bf16.mxu0 0
    %170 = vmatpush1.bf16.msra.mxu0 0
    %171 = vmatprep.subr.bf16.mxu0 0
    %172 = vmatpush1.bf16.msra.mxu0 0
    %173 = vmatprep.subr.bf16.mxu0 0
    %174 = vmatpush1.bf16.msra.mxu0 0
    %175 = vmatprep.subr.bf16.mxu0 0
    %176 = vmatpush1.bf16.msra.mxu0 0
    %177 = vmatprep.subr.bf16.mxu0 0
    %178 = vmatpush1.bf16.msra.mxu0 0
    %179 = vmatprep.subr.bf16.mxu0 0
    %180 = vmatpush1.bf16.msra.mxu0 0
    %181 = vmatprep.subr.bf16.mxu0 0
    %182 = vmatpush1.bf16.msra.mxu0 0
    %183 = vmatprep.subr.bf16.mxu0 0
    %184 = vmatpush1.bf16.msra.mxu0 0
    %185 = vmatprep.subr.bf16.mxu0 0
    %186 = vmatpush1.bf16.msra.mxu0 0
    %187 = vmatprep.subr.bf16.mxu0 0
    %188 = vmatpush1.bf16.msra.mxu0 0
    %189 = vmatprep.subr.bf16.mxu0 0
    %190 = vmatpush1.bf16.msra.mxu0 0
    %191 = vmatprep.mubr.bf16.mxu0 0
    %192 = vmatmul.mubr.bf16.gmra.mrb[0].mxu0 %v153
    %v193 = vpop.f32.mrb[0].mxu0
    %v194 = vadd.f32 0.0, %v193
    %v195 = vpop.f32.mrb[0].mxu0
    %v196 = vpop.f32.mrb[0].mxu0
    %v197 = vadd.f32 0.0, %v196
    %v198 = vpop.f32.mrb[0].mxu0
    %199 = vdwg.mxu0
    %v200 = vpack.c.bf16 %v197, %v194
    %v201 = vld [vmem:[#allocation7] sm:$0x1]
    %v203 = vlaneseq
    %v204 = vshrl.u32 %v203, 7
    %v205 = vsub.s32 0, %v204
    %v206 = vrot.slane %v201, %v205
    %v210 = vunpack.c.l.b16 %v141
    %v211 = vunpack.c.l.b16 %v142
    %v212 = vpack.c.b16 %v211, %v210
    %vm213 = vcmask 130048
    %v215 = vsel %vm213, %v212, 0
    %217 = vmatprep.subr.bf16.mxu0 0
    %218 = vmatpush1.bf16.msra.mxu0 %v200
    %219 = vmatprep.subr.bf16.mxu0 0
    %220 = vmatpush1.bf16.msra.mxu0 0
    %221 = vmatprep.subr.bf16.mxu0 0
    %222 = vmatpush1.bf16.msra.mxu0 0
    %223 = vmatprep.subr.bf16.mxu0 0
    %224 = vmatpush1.bf16.msra.mxu0 0
    %225 = vmatprep.subr.bf16.mxu0 0
    %226 = vmatpush1.bf16.msra.mxu0 0
    %227 = vmatprep.subr.bf16.mxu0 0
    %228 = vmatpush1.bf16.msra.mxu0 0
    %229 = vmatprep.subr.bf16.mxu0 0
    %230 = vmatpush1.bf16.msra.mxu0 0
    %231 = vmatprep.subr.bf16.mxu0 0
    %232 = vmatpush1.bf16.msra.mxu0 0
    %233 = vmatprep.subr.bf16.mxu0 0
    %234 = vmatpush1.bf16.msra.mxu0 0
    %235 = vmatprep.subr.bf16.mxu0 0
    %236 = vmatpush1.bf16.msra.mxu0 0
    %237 = vmatprep.subr.bf16.mxu0 0
    %238 = vmatpush1.bf16.msra.mxu0 0
    %239 = vmatprep.subr.bf16.mxu0 0
    %240 = vmatpush1.bf16.msra.mxu0 0
    %241 = vmatprep.subr.bf16.mxu0 0
    %242 = vmatpush1.bf16.msra.mxu0 0
    %243 = vmatprep.subr.bf16.mxu0 0
    %244 = vmatpush1.bf16.msra.mxu0 0
    %245 = vmatprep.subr.bf16.mxu0 0
    %246 = vmatpush1.bf16.msra.mxu0 0
    %247 = vmatprep.subr.bf16.mxu0 0
    %248 = vmatpush1.bf16.msra.mxu0 0
    %249 = vmatprep.mubr.bf16.mxu0 0
    %250 = vmatmul.mubr.bf16.gmra.mrb[0].mxu0 %v215
    %v251 = vpop.f32.mrb[0].mxu0
    %v252 = vadd.f32 %v206, %v251
    %v253 = vpop.f32.mrb[0].mxu0
    %v254 = vpop.f32.mrb[0].mxu0
    %v255 = vadd.f32 %v206, %v254
    %v256 = vpop.f32.mrb[0].mxu0
    %257 = vdwg.mxu0
    %vm258 = vcmp.ge.f32.partialorder %v252, 0.0
    %vm259 = vcmp.ge.f32.partialorder %v255, 0.0
    %v260 = vmul.f32 %v252, 0.01
    %v261 = vmul.f32 %v255, 0.01
    %v262 = vsel %vm258, %v252, %v260
    %v263 = vsel %vm259, %v255, %v261
    %v264 = vpack.c.bf16 %v263, %v262
    %v265 = vld [vmem:[#allocation8] sm:$0xf]
    %v266 = vld [vmem:[#allocation8 + $0x4] sm:$0xf]
    %v267 = vld [vmem:[#allocation8 + $0x8] sm:$0xf]
    %v268 = vld [vmem:[#allocation8 + $0xc] sm:$0xf]
    %v273 = vunpack.c.l.b16 %v265
    %v274 = vunpack.c.l.b16 %v266
    %v275 = vunpack.c.l.b16 %v267
    %v276 = vunpack.c.l.b16 %v268
    %v277 = vpack.c.b16 %v274, %v273
    %v278 = vpack.c.b16 %v276, %v275
    %vm281 = vcmask 261120
    %v283 = vsel %vm281, %v264, 0
    %285 = vmatprep.subr.bf16.mxu0 0
    %286 = vmatpush1.bf16.msra.mxu0 %v277
    %287 = vmatprep.subr.bf16.mxu0 0
    %288 = vmatpush1.bf16.msra.mxu0 %v278
    %289 = vmatprep.subr.bf16.mxu0 0
    %290 = vmatpush1.bf16.msra.mxu0 0
    %291 = vmatprep.subr.bf16.mxu0 0
    %292 = vmatpush1.bf16.msra.mxu0 0
    %293 = vmatprep.subr.bf16.mxu0 0
    %294 = vmatpush1.bf16.msra.mxu0 0
    %295 = vmatprep.subr.bf16.mxu0 0
    %296 = vmatpush1.bf16.msra.mxu0 0
    %297 = vmatprep.subr.bf16.mxu0 0
    %298 = vmatpush1.bf16.msra.mxu0 0
    %299 = vmatprep.subr.bf16.mxu0 0
    %300 = vmatpush1.bf16.msra.mxu0 0
    %301 = vmatprep.subr.bf16.mxu0 0
    %302 = vmatpush1.bf16.msra.mxu0 0
    %303 = vmatprep.subr.bf16.mxu0 0
    %304 = vmatpush1.bf16.msra.mxu0 0
    %305 = vmatprep.subr.bf16.mxu0 0
    %306 = vmatpush1.bf16.msra.mxu0 0
    %307 = vmatprep.subr.bf16.mxu0 0
    %308 = vmatpush1.bf16.msra.mxu0 0
    %309 = vmatprep.subr.bf16.mxu0 0
    %310 = vmatpush1.bf16.msra.mxu0 0
    %311 = vmatprep.subr.bf16.mxu0 0
    %312 = vmatpush1.bf16.msra.mxu0 0
    %313 = vmatprep.subr.bf16.mxu0 0
    %314 = vmatpush1.bf16.msra.mxu0 0
    %315 = vmatprep.subr.bf16.mxu0 0
    %316 = vmatpush1.bf16.msra.mxu0 0
    %317 = vmatprep.mubr.bf16.mxu0 0
    %318 = vmatmul.mubr.bf16.gmra.mrb[0].mxu0 %v283
    %v319 = vpop.f32.mrb[0].mxu0
    %v320 = vadd.f32 0.0, %v319
    %v321 = vpop.f32.mrb[0].mxu0
    %v322 = vpop.f32.mrb[0].mxu0
    %v323 = vadd.f32 0.0, %v322
    %v324 = vpop.f32.mrb[0].mxu0
    %325 = vdwg.mxu0
    %v326 = vpack.c.bf16 %v323, %v320
    %v327 = vld [vmem:[#allocation10] sm:$0x1]
    %v329 = vlaneseq
    %v330 = vshrl.u32 %v329, 7
    %v331 = vsub.s32 0, %v330
    %v332 = vrot.slane %v327, %v331
    %334 = vmatprep.subr.bf16.mxu0 0
    %335 = vmatpush1.bf16.msra.mxu0 %v326
    %336 = vmatprep.subr.bf16.mxu0 0
    %337 = vmatpush1.bf16.msra.mxu0 0
    %338 = vmatprep.subr.bf16.mxu0 0
    %339 = vmatpush1.bf16.msra.mxu0 0
    %340 = vmatprep.subr.bf16.mxu0 0
    %341 = vmatpush1.bf16.msra.mxu0 0
    %342 = vmatprep.subr.bf16.mxu0 0
    %343 = vmatpush1.bf16.msra.mxu0 0
    %344 = vmatprep.subr.bf16.mxu0 0
    %345 = vmatpush1.bf16.msra.mxu0 0
    %346 = vmatprep.subr.bf16.mxu0 0
    %347 = vmatpush1.bf16.msra.mxu0 0
    %348 = vmatprep.subr.bf16.mxu0 0
    %349 = vmatpush1.bf16.msra.mxu0 0
    %350 = vmatprep.subr.bf16.mxu0 0
    %351 = vmatpush1.bf16.msra.mxu0 0
    %352 = vmatprep.subr.bf16.mxu0 0
    %353 = vmatpush1.bf16.msra.mxu0 0
    %354 = vmatprep.subr.bf16.mxu0 0
    %355 = vmatpush1.bf16.msra.mxu0 0
    %356 = vmatprep.subr.bf16.mxu0 0
    %357 = vmatpush1.bf16.msra.mxu0 0
    %358 = vmatprep.subr.bf16.mxu0 0
    %359 = vmatpush1.bf16.msra.mxu0 0
    %360 = vmatprep.subr.bf16.mxu0 0
    %361 = vmatpush1.bf16.msra.mxu0 0
    %362 = vmatprep.subr.bf16.mxu0 0
    %363 = vmatpush1.bf16.msra.mxu0 0
    %364 = vmatprep.subr.bf16.mxu0 0
    %365 = vmatpush1.bf16.msra.mxu0 0
    %366 = vmatprep.mubr.bf16.mxu0 0
    %367 = vmatmul.mubr.bf16.gmra.mrb[0].mxu0 %v215
    %v368 = vpop.f32.mrb[0].mxu0
    %v369 = vadd.f32 %v332, %v368
    %v370 = vpop.f32.mrb[0].mxu0
    %v371 = vpop.f32.mrb[0].mxu0
    %v372 = vadd.f32 %v332, %v371
    %v373 = vpop.f32.mrb[0].mxu0
    %374 = vdwg.mxu0
    %v375 = vadd.f32 %v369, %v262
    %v376 = vadd.f32 %v372, %v263
    %vm377 = vcmp.ge.f32.partialorder %v375, 0.0
    %vm378 = vcmp.ge.f32.partialorder %v376, 0.0
    %v379 = vmul.f32 %v375, 0.01
    %v380 = vmul.f32 %v376, 0.01
    %v381 = vsel %vm377, %v375, %v379
    %v382 = vsel %vm378, %v376, %v380
    %v383 = vld [vmem:[%s6] sm:$0x3]
    %v384 = vld [vmem:[%s7] sm:$0xff]
    %v385 = vld [vmem:[%s7 + $0x8] sm:$0xff]
    %v386 = vld [vmem:[%s7 + $0x10] sm:$0xff]
    %v387 = vld [vmem:[%s7 + $0x18] sm:$0xff]
    %v388 = vld [vmem:[%s8] sm:$0xff]
    %v389 = vld [vmem:[%s8 + $0x8] sm:$0xff]
    %v390 = vld [vmem:[%s8 + $0x10] sm:$0xff]
    %v391 = vld [vmem:[%s8 + $0x18] sm:$0xff]
    %v392 = vld [vmem:[%s9] sm:$0x1]
    %v394 = vsel %vm281, 0.0, 0
    %396 = vmatprep.subr.mxu0 0.0
    %397 = vmatpush1.msra.mxu0 %v388
    %398 = vmatprep.subr.mxu0 0.0
    %399 = vmatpush1.msra.mxu0 %v389
    %400 = vmatprep.subr.mxu0 0.0
    %401 = vmatpush1.msra.mxu0 %v390
    %402 = vmatprep.subr.mxu0 0.0
    %403 = vmatpush1.msra.mxu0 %v391
    %404 = vmatprep.subr.mxu0 0.0
    %405 = vmatpush1.msra.mxu0 0.0
    %406 = vmatprep.subr.mxu0 0.0
    %407 = vmatpush1.msra.mxu0 0.0
    %408 = vmatprep.subr.mxu0 0.0
    %409 = vmatpush1.msra.mxu0 0.0
    %410 = vmatprep.subr.mxu0 0.0
    %411 = vmatpush1.msra.mxu0 0.0
    %412 = vmatprep.subr.mxu0 0.0
    %413 = vmatpush1.msra.mxu0 0.0
    %414 = vmatprep.subr.mxu0 0.0
    %415 = vmatpush1.msra.mxu0 0.0
    %416 = vmatprep.subr.mxu0 0.0
    %417 = vmatpush1.msra.mxu0 0.0
    %418 = vmatprep.subr.mxu0 0.0
    %419 = vmatpush1.msra.mxu0 0.0
    %420 = vmatprep.subr.mxu0 0.0
    %421 = vmatpush1.msra.mxu0 0.0
    %422 = vmatprep.subr.mxu0 0.0
    %423 = vmatpush1.msra.mxu0 0.0
    %424 = vmatprep.subr.mxu0 0.0
    %425 = vmatpush1.msra.mxu0 0.0
    %426 = vmatprep.subr.mxu0 0.0
    %427 = vmatpush1.msra.mxu0 0.0
    %428 = vmatprep.subr.mxu0 0.0
    %429 = vmatpush1.msra.mxu0 0.0
    %430 = vmatprep.subr.mxu0 0.0
    %431 = vmatpush1.msra.mxu0 0.0
    %432 = vmatprep.subr.mxu0 0.0
    %433 = vmatpush1.msra.mxu0 0.0
    %434 = vmatprep.subr.mxu0 0.0
    %435 = vmatpush1.msra.mxu0 0.0
    %436 = vmatprep.subr.mxu0 0.0
    %437 = vmatpush1.msra.mxu0 0.0
    %438 = vmatprep.subr.mxu0 0.0
    %439 = vmatpush1.msra.mxu0 0.0
    %440 = vmatprep.subr.mxu0 0.0
    %441 = vmatpush1.msra.mxu0 0.0
    %442 = vmatprep.subr.mxu0 0.0
    %443 = vmatpush1.msra.mxu0 0.0
    %444 = vmatprep.subr.mxu0 0.0
    %445 = vmatpush1.msra.mxu0 0.0
    %446 = vmatprep.subr.mxu0 0.0
    %447 = vmatpush1.msra.mxu0 0.0
    %448 = vmatprep.subr.mxu0 0.0
    %449 = vmatpush1.msra.mxu0 0.0
    %450 = vmatprep.subr.mxu0 0.0
    %451 = vmatpush1.msra.mxu0 0.0
    %452 = vmatprep.subr.mxu0 0.0
    %453 = vmatpush1.msra.mxu0 0.0
    %454 = vmatprep.subr.mxu0 0.0
    %455 = vmatpush1.msra.mxu0 0.0
    %456 = vmatprep.subr.mxu0 0.0
    %457 = vmatpush1.msra.mxu0 0.0
    %458 = vmatprep.subr.mxu0 0.0
    %459 = vmatpush1.msra.mxu0 0.0
    %460 = vmatprep.mubr.f32.mxu0 0.0
    %461 = vmatmul.mubr.f32.gmra.mrb[0].mxu0 %v394
    %v462 = vpop.f32.mrb[0].mxu0
    %v463 = vadd.f32 0.0, %v462
    %v464 = vpop.f32.mrb[0].mxu0
    %465 = vdwg.mxu0
    %466 = vmatprep.subr.mxu0 0.0
    %467 = vmatpush1.msra.mxu0 %v384
    %468 = vmatprep.subr.mxu0 0.0
    %469 = vmatpush1.msra.mxu0 %v385
    %470 = vmatprep.subr.mxu0 0.0
    %471 = vmatpush1.msra.mxu0 %v386
    %472 = vmatprep.subr.mxu0 0.0
    %473 = vmatpush1.msra.mxu0 %v387
    %474 = vmatprep.subr.mxu0 0.0
    %475 = vmatpush1.msra.mxu0 0.0
    %476 = vmatprep.subr.mxu0 0.0
    %477 = vmatpush1.msra.mxu0 0.0
    %478 = vmatprep.subr.mxu0 0.0
    %479 = vmatpush1.msra.mxu0 0.0
    %480 = vmatprep.subr.mxu0 0.0
    %481 = vmatpush1.msra.mxu0 0.0
    %482 = vmatprep.subr.mxu0 0.0
    %483 = vmatpush1.msra.mxu0 0.0
    %484 = vmatprep.subr.mxu0 0.0
    %485 = vmatpush1.msra.mxu0 0.0
    %486 = vmatprep.subr.mxu0 0.0
    %487 = vmatpush1.msra.mxu0 0.0
    %488 = vmatprep.subr.mxu0 0.0
    %489 = vmatpush1.msra.mxu0 0.0
    %490 = vmatprep.subr.mxu0 0.0
    %491 = vmatpush1.msra.mxu0 0.0
    %492 = vmatprep.subr.mxu0 0.0
    %493 = vmatpush1.msra.mxu0 0.0
    %494 = vmatprep.subr.mxu0 0.0
    %495 = vmatpush1.msra.mxu0 0.0
    %496 = vmatprep.subr.mxu0 0.0
    %497 = vmatpush1.msra.mxu0 0.0
    %498 = vmatprep.subr.mxu0 0.0
    %499 = vmatpush1.msra.mxu0 0.0
    %500 = vmatprep.subr.mxu0 0.0
    %501 = vmatpush1.msra.mxu0 0.0
    %502 = vmatprep.subr.mxu0 0.0
    %503 = vmatpush1.msra.mxu0 0.0
    %504 = vmatprep.subr.mxu0 0.0
    %505 = vmatpush1.msra.mxu0 0.0
    %506 = vmatprep.subr.mxu0 0.0
    %507 = vmatpush1.msra.mxu0 0.0
    %508 = vmatprep.subr.mxu0 0.0
    %509 = vmatpush1.msra.mxu0 0.0
    %510 = vmatprep.subr.mxu0 0.0
    %511 = vmatpush1.msra.mxu0 0.0
    %512 = vmatprep.subr.mxu0 0.0
    %513 = vmatpush1.msra.mxu0 0.0
    %514 = vmatprep.subr.mxu0 0.0
    %515 = vmatpush1.msra.mxu0 0.0
    %516 = vmatprep.subr.mxu0 0.0
    %517 = vmatpush1.msra.mxu0 0.0
    %518 = vmatprep.subr.mxu0 0.0
    %519 = vmatpush1.msra.mxu0 0.0
    %520 = vmatprep.subr.mxu0 0.0
    %521 = vmatpush1.msra.mxu0 0.0
    %522 = vmatprep.subr.mxu0 0.0
    %523 = vmatpush1.msra.mxu0 0.0
    %524 = vmatprep.subr.mxu0 0.0
    %525 = vmatpush1.msra.mxu0 0.0
    %526 = vmatprep.subr.mxu0 0.0
    %527 = vmatpush1.msra.mxu0 0.0
    %528 = vmatprep.subr.mxu0 0.0
    %529 = vmatpush1.msra.mxu0 0.0
    %530 = vmatprep.mubr.f32.mxu0 0.0
    %531 = vmatmul.mubr.f32.gmra.mrb[0].mxu0 %v394
    %v532 = vpop.f32.mrb[0].mxu0
    %v533 = vadd.f32 %v463, %v532
    %v534 = vpop.f32.mrb[0].mxu0
    %535 = vdwg.mxu0
    %v537 = vlaneseq
    %v538 = vshrl.u32 %v537, 7
    %v539 = vsub.s32 0, %v538
    %v540 = vrot.slane %v392, %v539
    %v542 = vadd.f32 %v533, %v540
    %v543 = vmul.f32 %v542, 0.5
    %v544 = vtanh.pop %v543
    %v545 = vadd.f32 %v544, 1.0
    %v546 = vmul.f32 %v545, 0.5
    %v547 = vtanh.pop %v542
    %v548 = vmul.f32 %v546, 0.0
    %550 = vrot.lane.b32.xlu0 %v547, 64
    %v551 = vpop.permute.xlu0 %550
    %v553 = vmul.f32 %v546, %v551
    %555 = vrot.lane.b32.xlu0 %v553, 32
    %v556 = vpop.permute.xlu0 %555
    %v558 = vadd.f32 %v548, %v556
    %v559 = vtanh.pop %v558
    %561 = vrot.lane.b32.xlu0 %v559, 64
    %v562 = vpop.permute.xlu0 %561
    %v564 = vmul.f32 %v546, %v562
    %566 = vrot.lane.b32.xlu0 %v564, 32
    %v567 = vpop.permute.xlu0 %566
    %v568 = vsel %vm281, %v567, 0
    %v571 = vsel %vm281, %v381, 0
    %v574 = vsel %vm281, %v382, 0
    %576 = vmatprep.subr.mxu0 0.0
    %577 = vmatpush1.xpose.msra.mxu0 %v571
    %578 = vmatprep.subr.mxu0 0.0
    %579 = vmatpush1.xpose.msra.mxu0 %v574
    %580 = vmatprep.subr.mxu0 0.0
    %581 = vmatpush1.xpose.msra.mxu0 0.0
    %582 = vmatprep.subr.mxu0 0.0
    %583 = vmatpush1.xpose.msra.mxu0 0.0
    %584 = vmatprep.subr.mxu0 0.0
    %585 = vmatpush1.xpose.msra.mxu0 0.0
    %586 = vmatprep.subr.mxu0 0.0
    %587 = vmatpush1.xpose.msra.mxu0 0.0
    %588 = vmatprep.subr.mxu0 0.0
    %589 = vmatpush1.xpose.msra.mxu0 0.0
    %590 = vmatprep.subr.mxu0 0.0
    %591 = vmatpush1.xpose.msra.mxu0 0.0
    %592 = vmatprep.subr.mxu0 0.0
    %593 = vmatpush1.xpose.msra.mxu0 0.0
    %594 = vmatprep.subr.mxu0 0.0
    %595 = vmatpush1.xpose.msra.mxu0 0.0
    %596 = vmatprep.subr.mxu0 0.0
    %597 = vmatpush1.xpose.msra.mxu0 0.0
    %598 = vmatprep.subr.mxu0 0.0
    %599 = vmatpush1.xpose.msra.mxu0 0.0
    %600 = vmatprep.subr.mxu0 0.0
    %601 = vmatpush1.xpose.msra.mxu0 0.0
    %602 = vmatprep.subr.mxu0 0.0
    %603 = vmatpush1.xpose.msra.mxu0 0.0
    %604 = vmatprep.subr.mxu0 0.0
    %605 = vmatpush1.xpose.msra.mxu0 0.0
    %606 = vmatprep.subr.mxu0 0.0
    %607 = vmatpush1.xpose.msra.mxu0 0.0
    %608 = vmatprep.subr.mxu0 0.0
    %609 = vmatpush1.xpose.msra.mxu0 0.0
    %610 = vmatprep.subr.mxu0 0.0
    %611 = vmatpush1.xpose.msra.mxu0 0.0
    %612 = vmatprep.subr.mxu0 0.0
    %613 = vmatpush1.xpose.msra.mxu0 0.0
    %614 = vmatprep.subr.mxu0 0.0
    %615 = vmatpush1.xpose.msra.mxu0 0.0
    %616 = vmatprep.subr.mxu0 0.0
    %617 = vmatpush1.xpose.msra.mxu0 0.0
    %618 = vmatprep.subr.mxu0 0.0
    %619 = vmatpush1.xpose.msra.mxu0 0.0
    %620 = vmatprep.subr.mxu0 0.0
    %621 = vmatpush1.xpose.msra.mxu0 0.0
    %622 = vmatprep.subr.mxu0 0.0
    %623 = vmatpush1.xpose.msra.mxu0 0.0
    %624 = vmatprep.subr.mxu0 0.0
    %625 = vmatpush1.xpose.msra.mxu0 0.0
    %626 = vmatprep.subr.mxu0 0.0
    %627 = vmatpush1.xpose.msra.mxu0 0.0
    %628 = vmatprep.subr.mxu0 0.0
    %629 = vmatpush1.xpose.msra.mxu0 0.0
    %630 = vmatprep.subr.mxu0 0.0
    %631 = vmatpush1.xpose.msra.mxu0 0.0
    %632 = vmatprep.subr.mxu0 0.0
    %633 = vmatpush1.xpose.msra.mxu0 0.0
    %634 = vmatprep.subr.mxu0 0.0
    %635 = vmatpush1.xpose.msra.mxu0 0.0
    %636 = vmatprep.subr.mxu0 0.0
    %637 = vmatpush1.xpose.msra.mxu0 0.0
    %638 = vmatprep.subr.mxu0 0.0
    %639 = vmatpush1.xpose.msra.mxu0 0.0
    %640 = vmatprep.mubr.f32.mxu0 0.0
    %641 = vmatmul.mubr.f32.gmra.mrb[0].mxu0 %v568
    %v642 = vpop.f32.mrb[0].mxu0
    %v643 = vadd.f32 0.0, %v642
    %v644 = vpop.f32.mrb[0].mxu0
    %645 = vdwg.mxu0
    %vm646 = vcmp.gt.f32.partialorder %v383, 0.0
    %v647 = vsel %vm646, %v643, -1e+30
    %vm648 = vcmask 123904
    %v649 = vsel %vm648, %v647, -inf
    %650 = vmax.xlane.f32.xlu0 %v649
    %v651 = vpop.xlane.xlu0 %650
    %v652 = vsub.f32 %v647, %v651
    %v653 = vmul.f32 %v652, 1.442695
    %v654 = vpow.pop %v653
    %v655 = vmul.f32 %v654, %v383
    %v656 = vsel %vm648, %v655, 0.0
    %657 = vadd.xlane.f32.xlu0 %v656
    %v658 = vpop.xlane.xlu0 %657
    %v659 = vmax.f32 %v658, 1e-30
    %v660 = vrcp.pop %v659
    %v661 = vmul.f32 %v655, %v660
    %v663 = vsel %vm213, %v661, 0
    %665 = vmatprep.subr.mxu0 0.0
    %666 = vmatpush1.msra.mxu0 %v381
    %667 = vmatprep.subr.mxu0 0.0
    %668 = vmatpush1.msra.mxu0 %v382
    %669 = vmatprep.subr.mxu0 0.0
    %670 = vmatpush1.msra.mxu0 0.0
    %671 = vmatprep.subr.mxu0 0.0
    %672 = vmatpush1.msra.mxu0 0.0
    %673 = vmatprep.subr.mxu0 0.0
    %674 = vmatpush1.msra.mxu0 0.0
    %675 = vmatprep.subr.mxu0 0.0
    %676 = vmatpush1.msra.mxu0 0.0
    %677 = vmatprep.subr.mxu0 0.0
    %678 = vmatpush1.msra.mxu0 0.0
    %679 = vmatprep.subr.mxu0 0.0
    %680 = vmatpush1.msra.mxu0 0.0
    %681 = vmatprep.subr.mxu0 0.0
    %682 = vmatpush1.msra.mxu0 0.0
    %683 = vmatprep.subr.mxu0 0.0
    %684 = vmatpush1.msra.mxu0 0.0
    %685 = vmatprep.subr.mxu0 0.0
    %686 = vmatpush1.msra.mxu0 0.0
    %687 = vmatprep.subr.mxu0 0.0
    %688 = vmatpush1.msra.mxu0 0.0
    %689 = vmatprep.subr.mxu0 0.0
    %690 = vmatpush1.msra.mxu0 0.0
    %691 = vmatprep.subr.mxu0 0.0
    %692 = vmatpush1.msra.mxu0 0.0
    %693 = vmatprep.subr.mxu0 0.0
    %694 = vmatpush1.msra.mxu0 0.0
    %695 = vmatprep.subr.mxu0 0.0
    %696 = vmatpush1.msra.mxu0 0.0
    %697 = vmatprep.subr.mxu0 0.0
    %698 = vmatpush1.msra.mxu0 0.0
    %699 = vmatprep.subr.mxu0 0.0
    %700 = vmatpush1.msra.mxu0 0.0
    %701 = vmatprep.subr.mxu0 0.0
    %702 = vmatpush1.msra.mxu0 0.0
    %703 = vmatprep.subr.mxu0 0.0
    %704 = vmatpush1.msra.mxu0 0.0
    %705 = vmatprep.subr.mxu0 0.0
    %706 = vmatpush1.msra.mxu0 0.0
    %707 = vmatprep.subr.mxu0 0.0
    %708 = vmatpush1.msra.mxu0 0.0
    %709 = vmatprep.subr.mxu0 0.0
    %710 = vmatpush1.msra.mxu0 0.0
    %711 = vmatprep.subr.mxu0 0.0
    %712 = vmatpush1.msra.mxu0 0.0
    %713 = vmatprep.subr.mxu0 0.0
    %714 = vmatpush1.msra.mxu0 0.0
    %715 = vmatprep.subr.mxu0 0.0
    %716 = vmatpush1.msra.mxu0 0.0
    %717 = vmatprep.subr.mxu0 0.0
    %718 = vmatpush1.msra.mxu0 0.0
    %719 = vmatprep.subr.mxu0 0.0
    %720 = vmatpush1.msra.mxu0 0.0
    %721 = vmatprep.subr.mxu0 0.0
    %722 = vmatpush1.msra.mxu0 0.0
    %723 = vmatprep.subr.mxu0 0.0
    %724 = vmatpush1.msra.mxu0 0.0
    %725 = vmatprep.subr.mxu0 0.0
    %726 = vmatpush1.msra.mxu0 0.0
    %727 = vmatprep.subr.mxu0 0.0
    %728 = vmatpush1.msra.mxu0 0.0
    %729 = vmatprep.mubr.f32.mxu0 0.0
    %730 = vmatmul.mubr.f32.gmra.mrb[0].mxu0 %v663
    %v731 = vpop.f32.mrb[0].mxu0
    %v732 = vadd.f32 0.0, %v731
    %v733 = vpop.f32.mrb[0].mxu0
    %734 = vdwg.mxu0
    %v736 = vsel %vm281, %v732, 0
    %738 = vmatprep.subr.mxu0 0.0
    %739 = vmatpush1.msra.mxu0 %v388
    %740 = vmatprep.subr.mxu0 0.0
    %741 = vmatpush1.msra.mxu0 %v389
    %742 = vmatprep.subr.mxu0 0.0
    %743 = vmatpush1.msra.mxu0 %v390
    %744 = vmatprep.subr.mxu0 0.0
    %745 = vmatpush1.msra.mxu0 %v391
    %746 = vmatprep.subr.mxu0 0.0
    %747 = vmatpush1.msra.mxu0 0.0
    %748 = vmatprep.subr.mxu0 0.0
    %749 = vmatpush1.msra.mxu0 0.0
    %750 = vmatprep.subr.mxu0 0.0
    %751 = vmatpush1.msra.mxu0 0.0
    %752 = vmatprep.subr.mxu0 0.0
    %753 = vmatpush1.msra.mxu0 0.0
    %754 = vmatprep.subr.mxu0 0.0
    %755 = vmatpush1.msra.mxu0 0.0
    %756 = vmatprep.subr.mxu0 0.0
    %757 = vmatpush1.msra.mxu0 0.0
    %758 = vmatprep.subr.mxu0 0.0
    %759 = vmatpush1.msra.mxu0 0.0
    %760 = vmatprep.subr.mxu0 0.0
    %761 = vmatpush1.msra.mxu0 0.0
    %762 = vmatprep.subr.mxu0 0.0
    %763 = vmatpush1.msra.mxu0 0.0
    %764 = vmatprep.subr.mxu0 0.0
    %765 = vmatpush1.msra.mxu0 0.0
    %766 = vmatprep.subr.mxu0 0.0
    %767 = vmatpush1.msra.mxu0 0.0
    %768 = vmatprep.subr.mxu0 0.0
    %769 = vmatpush1.msra.mxu0 0.0
    %770 = vmatprep.subr.mxu0 0.0
    %771 = vmatpush1.msra.mxu0 0.0
    %772 = vmatprep.subr.mxu0 0.0
    %773 = vmatpush1.msra.mxu0 0.0
    %774 = vmatprep.subr.mxu0 0.0
    %775 = vmatpush1.msra.mxu0 0.0
    %776 = vmatprep.subr.mxu0 0.0
    %777 = vmatpush1.msra.mxu0 0.0
    %778 = vmatprep.subr.mxu0 0.0
    %779 = vmatpush1.msra.mxu0 0.0
    %780 = vmatprep.subr.mxu0 0.0
    %781 = vmatpush1.msra.mxu0 0.0
    %782 = vmatprep.subr.mxu0 0.0
    %783 = vmatpush1.msra.mxu0 0.0
    %784 = vmatprep.subr.mxu0 0.0
    %785 = vmatpush1.msra.mxu0 0.0
    %786 = vmatprep.subr.mxu0 0.0
    %787 = vmatpush1.msra.mxu0 0.0
    %788 = vmatprep.subr.mxu0 0.0
    %789 = vmatpush1.msra.mxu0 0.0
    %790 = vmatprep.subr.mxu0 0.0
    %791 = vmatpush1.msra.mxu0 0.0
    %792 = vmatprep.subr.mxu0 0.0
    %793 = vmatpush1.msra.mxu0 0.0
    %794 = vmatprep.subr.mxu0 0.0
    %795 = vmatpush1.msra.mxu0 0.0
    %796 = vmatprep.subr.mxu0 0.0
    %797 = vmatpush1.msra.mxu0 0.0
    %798 = vmatprep.subr.mxu0 0.0
    %799 = vmatpush1.msra.mxu0 0.0
    %800 = vmatprep.subr.mxu0 0.0
    %801 = vmatpush1.msra.mxu0 0.0
    %802 = vmatprep.mubr.f32.mxu0 0.0
    %803 = vmatmul.mubr.f32.gmra.mrb[0].mxu0 %v736
    %v804 = vpop.f32.mrb[0].mxu0
    %v805 = vadd.f32 0.0, %v804
    %v806 = vpop.f32.mrb[0].mxu0
    %807 = vdwg.mxu0
    %808 = vmatprep.subr.mxu0 0.0
    %809 = vmatpush1.msra.mxu0 %v384
    %810 = vmatprep.subr.mxu0 0.0
    %811 = vmatpush1.msra.mxu0 %v385
    %812 = vmatprep.subr.mxu0 0.0
    %813 = vmatpush1.msra.mxu0 %v386
    %814 = vmatprep.subr.mxu0 0.0
    %815 = vmatpush1.msra.mxu0 %v387
    %816 = vmatprep.subr.mxu0 0.0
    %817 = vmatpush1.msra.mxu0 0.0
    %818 = vmatprep.subr.mxu0 0.0
    %819 = vmatpush1.msra.mxu0 0.0
    %820 = vmatprep.subr.mxu0 0.0
    %821 = vmatpush1.msra.mxu0 0.0
    %822 = vmatprep.subr.mxu0 0.0
    %823 = vmatpush1.msra.mxu0 0.0
    %824 = vmatprep.subr.mxu0 0.0
    %825 = vmatpush1.msra.mxu0 0.0
    %826 = vmatprep.subr.mxu0 0.0
    %827 = vmatpush1.msra.mxu0 0.0
    %828 = vmatprep.subr.mxu0 0.0
    %829 = vmatpush1.msra.mxu0 0.0
    %830 = vmatprep.subr.mxu0 0.0
    %831 = vmatpush1.msra.mxu0 0.0
    %832 = vmatprep.subr.mxu0 0.0
    %833 = vmatpush1.msra.mxu0 0.0
    %834 = vmatprep.subr.mxu0 0.0
    %835 = vmatpush1.msra.mxu0 0.0
    %836 = vmatprep.subr.mxu0 0.0
    %837 = vmatpush1.msra.mxu0 0.0
    %838 = vmatprep.subr.mxu0 0.0
    %839 = vmatpush1.msra.mxu0 0.0
    %840 = vmatprep.subr.mxu0 0.0
    %841 = vmatpush1.msra.mxu0 0.0
    %842 = vmatprep.subr.mxu0 0.0
    %843 = vmatpush1.msra.mxu0 0.0
    %844 = vmatprep.subr.mxu0 0.0
    %845 = vmatpush1.msra.mxu0 0.0
    %846 = vmatprep.subr.mxu0 0.0
    %847 = vmatpush1.msra.mxu0 0.0
    %848 = vmatprep.subr.mxu0 0.0
    %849 = vmatpush1.msra.mxu0 0.0
    %850 = vmatprep.subr.mxu0 0.0
    %851 = vmatpush1.msra.mxu0 0.0
    %852 = vmatprep.subr.mxu0 0.0
    %853 = vmatpush1.msra.mxu0 0.0
    %854 = vmatprep.subr.mxu0 0.0
    %855 = vmatpush1.msra.mxu0 0.0
    %856 = vmatprep.subr.mxu0 0.0
    %857 = vmatpush1.msra.mxu0 0.0
    %858 = vmatprep.subr.mxu0 0.0
    %859 = vmatpush1.msra.mxu0 0.0
    %860 = vmatprep.subr.mxu0 0.0
    %861 = vmatpush1.msra.mxu0 0.0
    %862 = vmatprep.subr.mxu0 0.0
    %863 = vmatpush1.msra.mxu0 0.0
    %864 = vmatprep.subr.mxu0 0.0
    %865 = vmatpush1.msra.mxu0 0.0
    %866 = vmatprep.subr.mxu0 0.0
    %867 = vmatpush1.msra.mxu0 0.0
    %868 = vmatprep.subr.mxu0 0.0
    %869 = vmatpush1.msra.mxu0 0.0
    %870 = vmatprep.subr.mxu0 0.0
    %871 = vmatpush1.msra.mxu0 0.0
    %872 = vmatprep.mubr.f32.mxu0 0.0
    %873 = vmatmul.mubr.f32.gmra.mrb[0].mxu0 %v568
    %v874 = vpop.f32.mrb[0].mxu0
    %v875 = vadd.f32 %v805, %v874
    %v876 = vpop.f32.mrb[0].mxu0
    %877 = vdwg.mxu0
    %v878 = vadd.f32 %v875, %v540
    %v879 = vmul.f32 %v878, 0.5
    %v880 = vtanh.pop %v879
    %v881 = vadd.f32 %v880, 1.0
    %v882 = vmul.f32 %v881, 0.5
    %v883 = vtanh.pop %v878
    %v884 = vmul.f32 %v882, %v558
    %886 = vrot.lane.b32.xlu0 %v883, 64
    %v887 = vpop.permute.xlu0 %886
    %v889 = vmul.f32 %v882, %v887
    %891 = vrot.lane.b32.xlu0 %v889, 32
    %v892 = vpop.permute.xlu0 %891
    %v894 = vadd.f32 %v884, %v892
    %v895 = vtanh.pop %v894
    %897 = vrot.lane.b32.xlu0 %v895, 64
    %v898 = vpop.permute.xlu0 %897
    %v900 = vmul.f32 %v882, %v898
    %902 = vrot.lane.b32.xlu0 %v900, 32
    %v903 = vpop.permute.xlu0 %902
    %v904 = vsel %vm281, %v903, 0
    %906 = vmatprep.subr.mxu0 0.0
    %907 = vmatpush1.xpose.msra.mxu0 %v571
    %908 = vmatprep.subr.mxu0 0.0
    %909 = vmatpush1.xpose.msra.mxu0 %v574
    %910 = vmatprep.subr.mxu0 0.0
    %911 = vmatpush1.xpose.msra.mxu0 0.0
    %912 = vmatprep.subr.mxu0 0.0
    %913 = vmatpush1.xpose.msra.mxu0 0.0
    %914 = vmatprep.subr.mxu0 0.0
    %915 = vmatpush1.xpose.msra.mxu0 0.0
    %916 = vmatprep.subr.mxu0 0.0
    %917 = vmatpush1.xpose.msra.mxu0 0.0
    %918 = vmatprep.subr.mxu0 0.0
    %919 = vmatpush1.xpose.msra.mxu0 0.0
    %920 = vmatprep.subr.mxu0 0.0
    %921 = vmatpush1.xpose.msra.mxu0 0.0
    %922 = vmatprep.subr.mxu0 0.0
    %923 = vmatpush1.xpose.msra.mxu0 0.0
    %924 = vmatprep.subr.mxu0 0.0
    %925 = vmatpush1.xpose.msra.mxu0 0.0
    %926 = vmatprep.subr.mxu0 0.0
    %927 = vmatpush1.xpose.msra.mxu0 0.0
    %928 = vmatprep.subr.mxu0 0.0
    %929 = vmatpush1.xpose.msra.mxu0 0.0
    %930 = vmatprep.subr.mxu0 0.0
    %931 = vmatpush1.xpose.msra.mxu0 0.0
    %932 = vmatprep.subr.mxu0 0.0
    %933 = vmatpush1.xpose.msra.mxu0 0.0
    %934 = vmatprep.subr.mxu0 0.0
    %935 = vmatpush1.xpose.msra.mxu0 0.0
    %936 = vmatprep.subr.mxu0 0.0
    %937 = vmatpush1.xpose.msra.mxu0 0.0
    %938 = vmatprep.subr.mxu0 0.0
    %939 = vmatpush1.xpose.msra.mxu0 0.0
    %940 = vmatprep.subr.mxu0 0.0
    %941 = vmatpush1.xpose.msra.mxu0 0.0
    %942 = vmatprep.subr.mxu0 0.0
    %943 = vmatpush1.xpose.msra.mxu0 0.0
    %944 = vmatprep.subr.mxu0 0.0
    %945 = vmatpush1.xpose.msra.mxu0 0.0
    %946 = vmatprep.subr.mxu0 0.0
    %947 = vmatpush1.xpose.msra.mxu0 0.0
    %948 = vmatprep.subr.mxu0 0.0
    %949 = vmatpush1.xpose.msra.mxu0 0.0
    %950 = vmatprep.subr.mxu0 0.0
    %951 = vmatpush1.xpose.msra.mxu0 0.0
    %952 = vmatprep.subr.mxu0 0.0
    %953 = vmatpush1.xpose.msra.mxu0 0.0
    %954 = vmatprep.subr.mxu0 0.0
    %955 = vmatpush1.xpose.msra.mxu0 0.0
    %956 = vmatprep.subr.mxu0 0.0
    %957 = vmatpush1.xpose.msra.mxu0 0.0
    %958 = vmatprep.subr.mxu0 0.0
    %959 = vmatpush1.xpose.msra.mxu0 0.0
    %960 = vmatprep.subr.mxu0 0.0
    %961 = vmatpush1.xpose.msra.mxu0 0.0
    %962 = vmatprep.subr.mxu0 0.0
    %963 = vmatpush1.xpose.msra.mxu0 0.0
    %964 = vmatprep.subr.mxu0 0.0
    %965 = vmatpush1.xpose.msra.mxu0 0.0
    %966 = vmatprep.subr.mxu0 0.0
    %967 = vmatpush1.xpose.msra.mxu0 0.0
    %968 = vmatprep.subr.mxu0 0.0
    %969 = vmatpush1.xpose.msra.mxu0 0.0
    %970 = vmatprep.mubr.f32.mxu0 0.0
    %971 = vmatmul.mubr.f32.gmra.mrb[0].mxu0 %v904
    %v972 = vpop.f32.mrb[0].mxu0
    %v973 = vadd.f32 0.0, %v972
    %v974 = vpop.f32.mrb[0].mxu0
    %975 = vdwg.mxu0
    %v976 = vsel %vm646, %v973, -1e+30
    %v977 = vsel %vm648, %v976, -inf
    %978 = vmax.xlane.f32.xlu0 %v977
    %v979 = vpop.xlane.xlu0 %978
    %v980 = vsub.f32 %v976, %v979
    %v981 = vmul.f32 %v980, 1.442695
    %v982 = vpow.pop %v981
    %v983 = vmul.f32 %v982, %v383
    %v984 = vsel %vm648, %v983, 0.0
    %985 = vadd.xlane.f32.xlu0 %v984
    %v986 = vpop.xlane.xlu0 %985
    %v987 = vmax.f32 %v986, 1e-30
    %v988 = vrcp.pop %v987
    %v989 = vmul.f32 %v983, %v988
    %v991 = vsel %vm213, %v989, 0
    %993 = vmatprep.subr.mxu0 0.0
    %994 = vmatpush1.msra.mxu0 %v381
    %995 = vmatprep.subr.mxu0 0.0
    %996 = vmatpush1.msra.mxu0 %v382
    %997 = vmatprep.subr.mxu0 0.0
    %998 = vmatpush1.msra.mxu0 0.0
    %999 = vmatprep.subr.mxu0 0.0
    %1000 = vmatpush1.msra.mxu0 0.0
    %1001 = vmatprep.subr.mxu0 0.0
    %1002 = vmatpush1.msra.mxu0 0.0
    %1003 = vmatprep.subr.mxu0 0.0
    %1004 = vmatpush1.msra.mxu0 0.0
    %1005 = vmatprep.subr.mxu0 0.0
    %1006 = vmatpush1.msra.mxu0 0.0
    %1007 = vmatprep.subr.mxu0 0.0
    %1008 = vmatpush1.msra.mxu0 0.0
    %1009 = vmatprep.subr.mxu0 0.0
    %1010 = vmatpush1.msra.mxu0 0.0
    %1011 = vmatprep.subr.mxu0 0.0
    %1012 = vmatpush1.msra.mxu0 0.0
    %1013 = vmatprep.subr.mxu0 0.0
    %1014 = vmatpush1.msra.mxu0 0.0
    %1015 = vmatprep.subr.mxu0 0.0
    %1016 = vmatpush1.msra.mxu0 0.0
    %1017 = vmatprep.subr.mxu0 0.0
    %1018 = vmatpush1.msra.mxu0 0.0
    %1019 = vmatprep.subr.mxu0 0.0
    %1020 = vmatpush1.msra.mxu0 0.0
    %1021 = vmatprep.subr.mxu0 0.0
    %1022 = vmatpush1.msra.mxu0 0.0
    %1023 = vmatprep.subr.mxu0 0.0
    %1024 = vmatpush1.msra.mxu0 0.0
    %1025 = vmatprep.subr.mxu0 0.0
    %1026 = vmatpush1.msra.mxu0 0.0
    %1027 = vmatprep.subr.mxu0 0.0
    %1028 = vmatpush1.msra.mxu0 0.0
    %1029 = vmatprep.subr.mxu0 0.0
    %1030 = vmatpush1.msra.mxu0 0.0
    %1031 = vmatprep.subr.mxu0 0.0
    %1032 = vmatpush1.msra.mxu0 0.0
    %1033 = vmatprep.subr.mxu0 0.0
    %1034 = vmatpush1.msra.mxu0 0.0
    %1035 = vmatprep.subr.mxu0 0.0
    %1036 = vmatpush1.msra.mxu0 0.0
    %1037 = vmatprep.subr.mxu0 0.0
    %1038 = vmatpush1.msra.mxu0 0.0
    %1039 = vmatprep.subr.mxu0 0.0
    %1040 = vmatpush1.msra.mxu0 0.0
    %1041 = vmatprep.subr.mxu0 0.0
    %1042 = vmatpush1.msra.mxu0 0.0
    %1043 = vmatprep.subr.mxu0 0.0
    %1044 = vmatpush1.msra.mxu0 0.0
    %1045 = vmatprep.subr.mxu0 0.0
    %1046 = vmatpush1.msra.mxu0 0.0
    %1047 = vmatprep.subr.mxu0 0.0
    %1048 = vmatpush1.msra.mxu0 0.0
    %1049 = vmatprep.subr.mxu0 0.0
    %1050 = vmatpush1.msra.mxu0 0.0
    %1051 = vmatprep.subr.mxu0 0.0
    %1052 = vmatpush1.msra.mxu0 0.0
    %1053 = vmatprep.subr.mxu0 0.0
    %1054 = vmatpush1.msra.mxu0 0.0
    %1055 = vmatprep.subr.mxu0 0.0
    %1056 = vmatpush1.msra.mxu0 0.0
    %1057 = vmatprep.mubr.f32.mxu0 0.0
    %1058 = vmatmul.mubr.f32.gmra.mrb[0].mxu0 %v991
    %v1059 = vpop.f32.mrb[0].mxu0
    %v1060 = vadd.f32 0.0, %v1059
    %v1061 = vpop.f32.mrb[0].mxu0
    %1062 = vdwg.mxu0
    %v1064 = vsel %vm281, %v1060, 0
    %1066 = vmatprep.subr.mxu0 0.0
    %1067 = vmatpush1.msra.mxu0 %v388
    %1068 = vmatprep.subr.mxu0 0.0
    %1069 = vmatpush1.msra.mxu0 %v389
    %1070 = vmatprep.subr.mxu0 0.0
    %1071 = vmatpush1.msra.mxu0 %v390
    %1072 = vmatprep.subr.mxu0 0.0
    %1073 = vmatpush1.msra.mxu0 %v391
    %1074 = vmatprep.subr.mxu0 0.0
    %1075 = vmatpush1.msra.mxu0 0.0
    %1076 = vmatprep.subr.mxu0 0.0
    %1077 = vmatpush1.msra.mxu0 0.0
    %1078 = vmatprep.subr.mxu0 0.0
    %1079 = vmatpush1.msra.mxu0 0.0
    %1080 = vmatprep.subr.mxu0 0.0
    %1081 = vmatpush1.msra.mxu0 0.0
    %1082 = vmatprep.subr.mxu0 0.0
    %1083 = vmatpush1.msra.mxu0 0.0
    %1084 = vmatprep.subr.mxu0 0.0
    %1085 = vmatpush1.msra.mxu0 0.0
    %1086 = vmatprep.subr.mxu0 0.0
    %1087 = vmatpush1.msra.mxu0 0.0
    %1088 = vmatprep.subr.mxu0 0.0
    %1089 = vmatpush1.msra.mxu0 0.0
    %1090 = vmatprep.subr.mxu0 0.0
    %1091 = vmatpush1.msra.mxu0 0.0
    %1092 = vmatprep.subr.mxu0 0.0
    %1093 = vmatpush1.msra.mxu0 0.0
    %1094 = vmatprep.subr.mxu0 0.0
    %1095 = vmatpush1.msra.mxu0 0.0
    %1096 = vmatprep.subr.mxu0 0.0
    %1097 = vmatpush1.msra.mxu0 0.0
    %1098 = vmatprep.subr.mxu0 0.0
    %1099 = vmatpush1.msra.mxu0 0.0
    %1100 = vmatprep.subr.mxu0 0.0
    %1101 = vmatpush1.msra.mxu0 0.0
    %1102 = vmatprep.subr.mxu0 0.0
    %1103 = vmatpush1.msra.mxu0 0.0
    %1104 = vmatprep.subr.mxu0 0.0
    %1105 = vmatpush1.msra.mxu0 0.0
    %1106 = vmatprep.subr.mxu0 0.0
    %1107 = vmatpush1.msra.mxu0 0.0
    %1108 = vmatprep.subr.mxu0 0.0
    %1109 = vmatpush1.msra.mxu0 0.0
    %1110 = vmatprep.subr.mxu0 0.0
    %1111 = vmatpush1.msra.mxu0 0.0
    %1112 = vmatprep.subr.mxu0 0.0
    %1113 = vmatpush1.msra.mxu0 0.0
    %1114 = vmatprep.subr.mxu0 0.0
    %1115 = vmatpush1.msra.mxu0 0.0
    %1116 = vmatprep.subr.mxu0 0.0
    %1117 = vmatpush1.msra.mxu0 0.0
    %1118 = vmatprep.subr.mxu0 0.0
    %1119 = vmatpush1.msra.mxu0 0.0
    %1120 = vmatprep.subr.mxu0 0.0
    %1121 = vmatpush1.msra.mxu0 0.0
    %1122 = vmatprep.subr.mxu0 0.0
    %1123 = vmatpush1.msra.mxu0 0.0
    %1124 = vmatprep.subr.mxu0 0.0
    %1125 = vmatpush1.msra.mxu0 0.0
    %1126 = vmatprep.subr.mxu0 0.0
    %1127 = vmatpush1.msra.mxu0 0.0
    %1128 = vmatprep.subr.mxu0 0.0
    %1129 = vmatpush1.msra.mxu0 0.0
    %1130 = vmatprep.mubr.f32.mxu0 0.0
    %1131 = vmatmul.mubr.f32.gmra.mrb[0].mxu0 %v1064
    %v1132 = vpop.f32.mrb[0].mxu0
    %v1133 = vadd.f32 0.0, %v1132
    %v1134 = vpop.f32.mrb[0].mxu0
    %1135 = vdwg.mxu0
    %1136 = vmatprep.subr.mxu0 0.0
    %1137 = vmatpush1.msra.mxu0 %v384
    %1138 = vmatprep.subr.mxu0 0.0
    %1139 = vmatpush1.msra.mxu0 %v385
    %1140 = vmatprep.subr.mxu0 0.0
    %1141 = vmatpush1.msra.mxu0 %v386
    %1142 = vmatprep.subr.mxu0 0.0
    %1143 = vmatpush1.msra.mxu0 %v387
    %1144 = vmatprep.subr.mxu0 0.0
    %1145 = vmatpush1.msra.mxu0 0.0
    %1146 = vmatprep.subr.mxu0 0.0
    %1147 = vmatpush1.msra.mxu0 0.0
    %1148 = vmatprep.subr.mxu0 0.0
    %1149 = vmatpush1.msra.mxu0 0.0
    %1150 = vmatprep.subr.mxu0 0.0
    %1151 = vmatpush1.msra.mxu0 0.0
    %1152 = vmatprep.subr.mxu0 0.0
    %1153 = vmatpush1.msra.mxu0 0.0
    %1154 = vmatprep.subr.mxu0 0.0
    %1155 = vmatpush1.msra.mxu0 0.0
    %1156 = vmatprep.subr.mxu0 0.0
    %1157 = vmatpush1.msra.mxu0 0.0
    %1158 = vmatprep.subr.mxu0 0.0
    %1159 = vmatpush1.msra.mxu0 0.0
    %1160 = vmatprep.subr.mxu0 0.0
    %1161 = vmatpush1.msra.mxu0 0.0
    %1162 = vmatprep.subr.mxu0 0.0
    %1163 = vmatpush1.msra.mxu0 0.0
    %1164 = vmatprep.subr.mxu0 0.0
    %1165 = vmatpush1.msra.mxu0 0.0
    %1166 = vmatprep.subr.mxu0 0.0
    %1167 = vmatpush1.msra.mxu0 0.0
    %1168 = vmatprep.subr.mxu0 0.0
    %1169 = vmatpush1.msra.mxu0 0.0
    %1170 = vmatprep.subr.mxu0 0.0
    %1171 = vmatpush1.msra.mxu0 0.0
    %1172 = vmatprep.subr.mxu0 0.0
    %1173 = vmatpush1.msra.mxu0 0.0
    %1174 = vmatprep.subr.mxu0 0.0
    %1175 = vmatpush1.msra.mxu0 0.0
    %1176 = vmatprep.subr.mxu0 0.0
    %1177 = vmatpush1.msra.mxu0 0.0
    %1178 = vmatprep.subr.mxu0 0.0
    %1179 = vmatpush1.msra.mxu0 0.0
    %1180 = vmatprep.subr.mxu0 0.0
    %1181 = vmatpush1.msra.mxu0 0.0
    %1182 = vmatprep.subr.mxu0 0.0
    %1183 = vmatpush1.msra.mxu0 0.0
    %1184 = vmatprep.subr.mxu0 0.0
    %1185 = vmatpush1.msra.mxu0 0.0
    %1186 = vmatprep.subr.mxu0 0.0
    %1187 = vmatpush1.msra.mxu0 0.0
    %1188 = vmatprep.subr.mxu0 0.0
    %1189 = vmatpush1.msra.mxu0 0.0
    %1190 = vmatprep.subr.mxu0 0.0
    %1191 = vmatpush1.msra.mxu0 0.0
    %1192 = vmatprep.subr.mxu0 0.0
    %1193 = vmatpush1.msra.mxu0 0.0
    %1194 = vmatprep.subr.mxu0 0.0
    %1195 = vmatpush1.msra.mxu0 0.0
    %1196 = vmatprep.subr.mxu0 0.0
    %1197 = vmatpush1.msra.mxu0 0.0
    %1198 = vmatprep.subr.mxu0 0.0
    %1199 = vmatpush1.msra.mxu0 0.0
    %1200 = vmatprep.mubr.f32.mxu0 0.0
    %1201 = vmatmul.mubr.f32.gmra.mrb[0].mxu0 %v904
    %v1202 = vpop.f32.mrb[0].mxu0
    %v1203 = vadd.f32 %v1133, %v1202
    %v1204 = vpop.f32.mrb[0].mxu0
    %1205 = vdwg.mxu0
    %v1206 = vadd.f32 %v1203, %v540
    %v1207 = vmul.f32 %v1206, 0.5
    %v1208 = vtanh.pop %v1207
    %v1209 = vadd.f32 %v1208, 1.0
    %v1210 = vmul.f32 %v1209, 0.5
    %v1211 = vtanh.pop %v1206
    %v1212 = vmul.f32 %v1210, %v894
    %1214 = vrot.lane.b32.xlu0 %v1211, 64
    %v1215 = vpop.permute.xlu0 %1214
    %v1217 = vmul.f32 %v1210, %v1215
    %1219 = vrot.lane.b32.xlu0 %v1217, 32
    %v1220 = vpop.permute.xlu0 %1219
    %v1222 = vadd.f32 %v1212, %v1220
    %v1223 = vtanh.pop %v1222
    %1225 = vrot.lane.b32.xlu0 %v1223, 64
    %v1226 = vpop.permute.xlu0 %1225
    %v1228 = vmul.f32 %v1210, %v1226
    %1230 = vrot.lane.b32.xlu0 %v1228, 32
    %v1231 = vpop.permute.xlu0 %1230
    %v1232 = vsel %vm281, %v1231, 0
    %1234 = vmatprep.subr.mxu0 0.0
    %1235 = vmatpush1.xpose.msra.mxu0 %v571
    %1236 = vmatprep.subr.mxu0 0.0
    %1237 = vmatpush1.xpose.msra.mxu0 %v574
    %1238 = vmatprep.subr.mxu0 0.0
    %1239 = vmatpush1.xpose.msra.mxu0 0.0
    %1240 = vmatprep.subr.mxu0 0.0
    %1241 = vmatpush1.xpose.msra.mxu0 0.0
    %1242 = vmatprep.subr.mxu0 0.0
    %1243 = vmatpush1.xpose.msra.mxu0 0.0
    %1244 = vmatprep.subr.mxu0 0.0
    %1245 = vmatpush1.xpose.msra.mxu0 0.0
    %1246 = vmatprep.subr.mxu0 0.0
    %1247 = vmatpush1.xpose.msra.mxu0 0.0
    %1248 = vmatprep.subr.mxu0 0.0
    %1249 = vmatpush1.xpose.msra.mxu0 0.0
    %1250 = vmatprep.subr.mxu0 0.0
    %1251 = vmatpush1.xpose.msra.mxu0 0.0
    %1252 = vmatprep.subr.mxu0 0.0
    %1253 = vmatpush1.xpose.msra.mxu0 0.0
    %1254 = vmatprep.subr.mxu0 0.0
    %1255 = vmatpush1.xpose.msra.mxu0 0.0
    %1256 = vmatprep.subr.mxu0 0.0
    %1257 = vmatpush1.xpose.msra.mxu0 0.0
    %1258 = vmatprep.subr.mxu0 0.0
    %1259 = vmatpush1.xpose.msra.mxu0 0.0
    %1260 = vmatprep.subr.mxu0 0.0
    %1261 = vmatpush1.xpose.msra.mxu0 0.0
    %1262 = vmatprep.subr.mxu0 0.0
    %1263 = vmatpush1.xpose.msra.mxu0 0.0
    %1264 = vmatprep.subr.mxu0 0.0
    %1265 = vmatpush1.xpose.msra.mxu0 0.0
    %1266 = vmatprep.subr.mxu0 0.0
    %1267 = vmatpush1.xpose.msra.mxu0 0.0
    %1268 = vmatprep.subr.mxu0 0.0
    %1269 = vmatpush1.xpose.msra.mxu0 0.0
    %1270 = vmatprep.subr.mxu0 0.0
    %1271 = vmatpush1.xpose.msra.mxu0 0.0
    %1272 = vmatprep.subr.mxu0 0.0
    %1273 = vmatpush1.xpose.msra.mxu0 0.0
    %1274 = vmatprep.subr.mxu0 0.0
    %1275 = vmatpush1.xpose.msra.mxu0 0.0
    %1276 = vmatprep.subr.mxu0 0.0
    %1277 = vmatpush1.xpose.msra.mxu0 0.0
    %1278 = vmatprep.subr.mxu0 0.0
    %1279 = vmatpush1.xpose.msra.mxu0 0.0
    %1280 = vmatprep.subr.mxu0 0.0
    %1281 = vmatpush1.xpose.msra.mxu0 0.0
    %1282 = vmatprep.subr.mxu0 0.0
    %1283 = vmatpush1.xpose.msra.mxu0 0.0
    %1284 = vmatprep.subr.mxu0 0.0
    %1285 = vmatpush1.xpose.msra.mxu0 0.0
    %1286 = vmatprep.subr.mxu0 0.0
    %1287 = vmatpush1.xpose.msra.mxu0 0.0
    %1288 = vmatprep.subr.mxu0 0.0
    %1289 = vmatpush1.xpose.msra.mxu0 0.0
    %1290 = vmatprep.subr.mxu0 0.0
    %1291 = vmatpush1.xpose.msra.mxu0 0.0
    %1292 = vmatprep.subr.mxu0 0.0
    %1293 = vmatpush1.xpose.msra.mxu0 0.0
    %1294 = vmatprep.subr.mxu0 0.0
    %1295 = vmatpush1.xpose.msra.mxu0 0.0
    %1296 = vmatprep.subr.mxu0 0.0
    %1297 = vmatpush1.xpose.msra.mxu0 0.0
    %1298 = vmatprep.mubr.f32.mxu0 0.0
    %1299 = vmatmul.mubr.f32.gmra.mrb[0].mxu0 %v1232
    %v1300 = vpop.f32.mrb[0].mxu0
    %v1301 = vadd.f32 0.0, %v1300
    %v1302 = vpop.f32.mrb[0].mxu0
    %1303 = vdwg.mxu0
    %v1304 = vsel %vm646, %v1301, -1e+30
    %v1305 = vsel %vm648, %v1304, -inf
    %1306 = vmax.xlane.f32.xlu0 %v1305
    %v1307 = vpop.xlane.xlu0 %1306
    %v1308 = vsub.f32 %v1304, %v1307
    %v1309 = vmul.f32 %v1308, 1.442695
    %v1310 = vpow.pop %v1309
    %v1311 = vmul.f32 %v1310, %v383
    %v1312 = vsel %vm648, %v1311, 0.0
    %1313 = vadd.xlane.f32.xlu0 %v1312
    %v1314 = vpop.xlane.xlu0 %1313
    %v1315 = vmax.f32 %v1314, 1e-30
    %v1316 = vrcp.pop %v1315
    %v1317 = vmul.f32 %v1311, %v1316
    %v1319 = vsel %vm213, %v1317, 0
    %1321 = vmatprep.subr.mxu0 0.0
    %1322 = vmatpush1.msra.mxu0 %v381
    %1323 = vmatprep.subr.mxu0 0.0
    %1324 = vmatpush1.msra.mxu0 %v382
    %1325 = vmatprep.subr.mxu0 0.0
    %1326 = vmatpush1.msra.mxu0 0.0
    %1327 = vmatprep.subr.mxu0 0.0
    %1328 = vmatpush1.msra.mxu0 0.0
    %1329 = vmatprep.subr.mxu0 0.0
    %1330 = vmatpush1.msra.mxu0 0.0
    %1331 = vmatprep.subr.mxu0 0.0
    %1332 = vmatpush1.msra.mxu0 0.0
    %1333 = vmatprep.subr.mxu0 0.0
    %1334 = vmatpush1.msra.mxu0 0.0
    %1335 = vmatprep.subr.mxu0 0.0
    %1336 = vmatpush1.msra.mxu0 0.0
    %1337 = vmatprep.subr.mxu0 0.0
    %1338 = vmatpush1.msra.mxu0 0.0
    %1339 = vmatprep.subr.mxu0 0.0
    %1340 = vmatpush1.msra.mxu0 0.0
    %1341 = vmatprep.subr.mxu0 0.0
    %1342 = vmatpush1.msra.mxu0 0.0
    %1343 = vmatprep.subr.mxu0 0.0
    %1344 = vmatpush1.msra.mxu0 0.0
    %1345 = vmatprep.subr.mxu0 0.0
    %1346 = vmatpush1.msra.mxu0 0.0
    %1347 = vmatprep.subr.mxu0 0.0
    %1348 = vmatpush1.msra.mxu0 0.0
    %1349 = vmatprep.subr.mxu0 0.0
    %1350 = vmatpush1.msra.mxu0 0.0
    %1351 = vmatprep.subr.mxu0 0.0
    %1352 = vmatpush1.msra.mxu0 0.0
    %1353 = vmatprep.subr.mxu0 0.0
    %1354 = vmatpush1.msra.mxu0 0.0
    %1355 = vmatprep.subr.mxu0 0.0
    %1356 = vmatpush1.msra.mxu0 0.0
    %1357 = vmatprep.subr.mxu0 0.0
    %1358 = vmatpush1.msra.mxu0 0.0
    %1359 = vmatprep.subr.mxu0 0.0
    %1360 = vmatpush1.msra.mxu0 0.0
    %1361 = vmatprep.subr.mxu0 0.0
    %1362 = vmatpush1.msra.mxu0 0.0
    %1363 = vmatprep.subr.mxu0 0.0
    %1364 = vmatpush1.msra.mxu0 0.0
    %1365 = vmatprep.subr.mxu0 0.0
    %1366 = vmatpush1.msra.mxu0 0.0
    %1367 = vmatprep.subr.mxu0 0.0
    %1368 = vmatpush1.msra.mxu0 0.0
    %1369 = vmatprep.subr.mxu0 0.0
    %1370 = vmatpush1.msra.mxu0 0.0
    %1371 = vmatprep.subr.mxu0 0.0
    %1372 = vmatpush1.msra.mxu0 0.0
    %1373 = vmatprep.subr.mxu0 0.0
    %1374 = vmatpush1.msra.mxu0 0.0
    %1375 = vmatprep.subr.mxu0 0.0
    %1376 = vmatpush1.msra.mxu0 0.0
    %1377 = vmatprep.subr.mxu0 0.0
    %1378 = vmatpush1.msra.mxu0 0.0
    %1379 = vmatprep.subr.mxu0 0.0
    %1380 = vmatpush1.msra.mxu0 0.0
    %1381 = vmatprep.subr.mxu0 0.0
    %1382 = vmatpush1.msra.mxu0 0.0
    %1383 = vmatprep.subr.mxu0 0.0
    %1384 = vmatpush1.msra.mxu0 0.0
    %1385 = vmatprep.mubr.f32.mxu0 0.0
    %1386 = vmatmul.mubr.f32.gmra.mrb[0].mxu0 %v1319
    %v1387 = vpop.f32.mrb[0].mxu0
    %v1388 = vadd.f32 0.0, %v1387
    %v1389 = vpop.f32.mrb[0].mxu0
    %1390 = vdwg.mxu0
    %v1392 = vsel %vm281, %v1388, 0
    %1394 = vmatprep.subr.mxu0 0.0
    %1395 = vmatpush1.msra.mxu0 %v388
    %1396 = vmatprep.subr.mxu0 0.0
    %1397 = vmatpush1.msra.mxu0 %v389
    %1398 = vmatprep.subr.mxu0 0.0
    %1399 = vmatpush1.msra.mxu0 %v390
    %1400 = vmatprep.subr.mxu0 0.0
    %1401 = vmatpush1.msra.mxu0 %v391
    %1402 = vmatprep.subr.mxu0 0.0
    %1403 = vmatpush1.msra.mxu0 0.0
    %1404 = vmatprep.subr.mxu0 0.0
    %1405 = vmatpush1.msra.mxu0 0.0
    %1406 = vmatprep.subr.mxu0 0.0
    %1407 = vmatpush1.msra.mxu0 0.0
    %1408 = vmatprep.subr.mxu0 0.0
    %1409 = vmatpush1.msra.mxu0 0.0
    %1410 = vmatprep.subr.mxu0 0.0
    %1411 = vmatpush1.msra.mxu0 0.0
    %1412 = vmatprep.subr.mxu0 0.0
    %1413 = vmatpush1.msra.mxu0 0.0
    %1414 = vmatprep.subr.mxu0 0.0
    %1415 = vmatpush1.msra.mxu0 0.0
    %1416 = vmatprep.subr.mxu0 0.0
    %1417 = vmatpush1.msra.mxu0 0.0
    %1418 = vmatprep.subr.mxu0 0.0
    %1419 = vmatpush1.msra.mxu0 0.0
    %1420 = vmatprep.subr.mxu0 0.0
    %1421 = vmatpush1.msra.mxu0 0.0
    %1422 = vmatprep.subr.mxu0 0.0
    %1423 = vmatpush1.msra.mxu0 0.0
    %1424 = vmatprep.subr.mxu0 0.0
    %1425 = vmatpush1.msra.mxu0 0.0
    %1426 = vmatprep.subr.mxu0 0.0
    %1427 = vmatpush1.msra.mxu0 0.0
    %1428 = vmatprep.subr.mxu0 0.0
    %1429 = vmatpush1.msra.mxu0 0.0
    %1430 = vmatprep.subr.mxu0 0.0
    %1431 = vmatpush1.msra.mxu0 0.0
    %1432 = vmatprep.subr.mxu0 0.0
    %1433 = vmatpush1.msra.mxu0 0.0
    %1434 = vmatprep.subr.mxu0 0.0
    %1435 = vmatpush1.msra.mxu0 0.0
    %1436 = vmatprep.subr.mxu0 0.0
    %1437 = vmatpush1.msra.mxu0 0.0
    %1438 = vmatprep.subr.mxu0 0.0
    %1439 = vmatpush1.msra.mxu0 0.0
    %1440 = vmatprep.subr.mxu0 0.0
    %1441 = vmatpush1.msra.mxu0 0.0
    %1442 = vmatprep.subr.mxu0 0.0
    %1443 = vmatpush1.msra.mxu0 0.0
    %1444 = vmatprep.subr.mxu0 0.0
    %1445 = vmatpush1.msra.mxu0 0.0
    %1446 = vmatprep.subr.mxu0 0.0
    %1447 = vmatpush1.msra.mxu0 0.0
    %1448 = vmatprep.subr.mxu0 0.0
    %1449 = vmatpush1.msra.mxu0 0.0
    %1450 = vmatprep.subr.mxu0 0.0
    %1451 = vmatpush1.msra.mxu0 0.0
    %1452 = vmatprep.subr.mxu0 0.0
    %1453 = vmatpush1.msra.mxu0 0.0
    %1454 = vmatprep.subr.mxu0 0.0
    %1455 = vmatpush1.msra.mxu0 0.0
    %1456 = vmatprep.subr.mxu0 0.0
    %1457 = vmatpush1.msra.mxu0 0.0
    %1458 = vmatprep.mubr.f32.mxu0 0.0
    %1459 = vmatmul.mubr.f32.gmra.mrb[0].mxu0 %v1392
    %v1460 = vpop.f32.mrb[0].mxu0
    %v1461 = vadd.f32 0.0, %v1460
    %v1462 = vpop.f32.mrb[0].mxu0
    %1463 = vdwg.mxu0
    %1464 = vmatprep.subr.mxu0 0.0
    %1465 = vmatpush1.msra.mxu0 %v384
    %1466 = vmatprep.subr.mxu0 0.0
    %1467 = vmatpush1.msra.mxu0 %v385
    %1468 = vmatprep.subr.mxu0 0.0
    %1469 = vmatpush1.msra.mxu0 %v386
    %1470 = vmatprep.subr.mxu0 0.0
    %1471 = vmatpush1.msra.mxu0 %v387
    %1472 = vmatprep.subr.mxu0 0.0
    %1473 = vmatpush1.msra.mxu0 0.0
    %1474 = vmatprep.subr.mxu0 0.0
    %1475 = vmatpush1.msra.mxu0 0.0
    %1476 = vmatprep.subr.mxu0 0.0
    %1477 = vmatpush1.msra.mxu0 0.0
    %1478 = vmatprep.subr.mxu0 0.0
    %1479 = vmatpush1.msra.mxu0 0.0
    %1480 = vmatprep.subr.mxu0 0.0
    %1481 = vmatpush1.msra.mxu0 0.0
    %1482 = vmatprep.subr.mxu0 0.0
    %1483 = vmatpush1.msra.mxu0 0.0
    %1484 = vmatprep.subr.mxu0 0.0
    %1485 = vmatpush1.msra.mxu0 0.0
    %1486 = vmatprep.subr.mxu0 0.0
    %1487 = vmatpush1.msra.mxu0 0.0
    %1488 = vmatprep.subr.mxu0 0.0
    %1489 = vmatpush1.msra.mxu0 0.0
    %1490 = vmatprep.subr.mxu0 0.0
    %1491 = vmatpush1.msra.mxu0 0.0
    %1492 = vmatprep.subr.mxu0 0.0
    %1493 = vmatpush1.msra.mxu0 0.0
    %1494 = vmatprep.subr.mxu0 0.0
    %1495 = vmatpush1.msra.mxu0 0.0
    %1496 = vmatprep.subr.mxu0 0.0
    %1497 = vmatpush1.msra.mxu0 0.0
    %1498 = vmatprep.subr.mxu0 0.0
    %1499 = vmatpush1.msra.mxu0 0.0
    %1500 = vmatprep.subr.mxu0 0.0
    %1501 = vmatpush1.msra.mxu0 0.0
    %1502 = vmatprep.subr.mxu0 0.0
    %1503 = vmatpush1.msra.mxu0 0.0
    %1504 = vmatprep.subr.mxu0 0.0
    %1505 = vmatpush1.msra.mxu0 0.0
    %1506 = vmatprep.subr.mxu0 0.0
    %1507 = vmatpush1.msra.mxu0 0.0
    %1508 = vmatprep.subr.mxu0 0.0
    %1509 = vmatpush1.msra.mxu0 0.0
    %1510 = vmatprep.subr.mxu0 0.0
    %1511 = vmatpush1.msra.mxu0 0.0
    %1512 = vmatprep.subr.mxu0 0.0
    %1513 = vmatpush1.msra.mxu0 0.0
    %1514 = vmatprep.subr.mxu0 0.0
    %1515 = vmatpush1.msra.mxu0 0.0
    %1516 = vmatprep.subr.mxu0 0.0
    %1517 = vmatpush1.msra.mxu0 0.0
    %1518 = vmatprep.subr.mxu0 0.0
    %1519 = vmatpush1.msra.mxu0 0.0
    %1520 = vmatprep.subr.mxu0 0.0
    %1521 = vmatpush1.msra.mxu0 0.0
    %1522 = vmatprep.subr.mxu0 0.0
    %1523 = vmatpush1.msra.mxu0 0.0
    %1524 = vmatprep.subr.mxu0 0.0
    %1525 = vmatpush1.msra.mxu0 0.0
    %1526 = vmatprep.subr.mxu0 0.0
    %1527 = vmatpush1.msra.mxu0 0.0
    %1528 = vmatprep.mubr.f32.mxu0 0.0
    %1529 = vmatmul.mubr.f32.gmra.mrb[0].mxu0 %v1232
    %v1530 = vpop.f32.mrb[0].mxu0
    %v1531 = vadd.f32 %v1461, %v1530
    %v1532 = vpop.f32.mrb[0].mxu0
    %1533 = vdwg.mxu0
    %v1534 = vadd.f32 %v1531, %v540
    %v1535 = vmul.f32 %v1534, 0.5
    %v1536 = vtanh.pop %v1535
    %v1537 = vadd.f32 %v1536, 1.0
    %v1538 = vmul.f32 %v1537, 0.5
    %v1539 = vtanh.pop %v1534
    %v1540 = vmul.f32 %v1538, %v1222
    %1542 = vrot.lane.b32.xlu0 %v1539, 64
    %v1543 = vpop.permute.xlu0 %1542
    %v1545 = vmul.f32 %v1538, %v1543
    %1547 = vrot.lane.b32.xlu0 %v1545, 32
    %v1548 = vpop.permute.xlu0 %1547
    %v1550 = vadd.f32 %v1540, %v1548
    %v1551 = vtanh.pop %v1550
    %1553 = vrot.lane.b32.xlu0 %v1551, 64
    %v1554 = vpop.permute.xlu0 %1553
    %v1556 = vmul.f32 %v1538, %v1554
    %1558 = vrot.lane.b32.xlu0 %v1556, 32
    %v1559 = vpop.permute.xlu0 %1558
    %v1560 = vsel %vm281, %v1559, 0
    %1562 = vmatprep.subr.mxu0 0.0
    %1563 = vmatpush1.xpose.msra.mxu0 %v571
    %1564 = vmatprep.subr.mxu0 0.0
    %1565 = vmatpush1.xpose.msra.mxu0 %v574
    %1566 = vmatprep.subr.mxu0 0.0
    %1567 = vmatpush1.xpose.msra.mxu0 0.0
    %1568 = vmatprep.subr.mxu0 0.0
    %1569 = vmatpush1.xpose.msra.mxu0 0.0
    %1570 = vmatprep.subr.mxu0 0.0
    %1571 = vmatpush1.xpose.msra.mxu0 0.0
    %1572 = vmatprep.subr.mxu0 0.0
    %1573 = vmatpush1.xpose.msra.mxu0 0.0
    %1574 = vmatprep.subr.mxu0 0.0
    %1575 = vmatpush1.xpose.msra.mxu0 0.0
    %1576 = vmatprep.subr.mxu0 0.0
    %1577 = vmatpush1.xpose.msra.mxu0 0.0
    %1578 = vmatprep.subr.mxu0 0.0
    %1579 = vmatpush1.xpose.msra.mxu0 0.0
    %1580 = vmatprep.subr.mxu0 0.0
    %1581 = vmatpush1.xpose.msra.mxu0 0.0
    %1582 = vmatprep.subr.mxu0 0.0
    %1583 = vmatpush1.xpose.msra.mxu0 0.0
    %1584 = vmatprep.subr.mxu0 0.0
    %1585 = vmatpush1.xpose.msra.mxu0 0.0
    %1586 = vmatprep.subr.mxu0 0.0
    %1587 = vmatpush1.xpose.msra.mxu0 0.0
    %1588 = vmatprep.subr.mxu0 0.0
    %1589 = vmatpush1.xpose.msra.mxu0 0.0
    %1590 = vmatprep.subr.mxu0 0.0
    %1591 = vmatpush1.xpose.msra.mxu0 0.0
    %1592 = vmatprep.subr.mxu0 0.0
    %1593 = vmatpush1.xpose.msra.mxu0 0.0
    %1594 = vmatprep.subr.mxu0 0.0
    %1595 = vmatpush1.xpose.msra.mxu0 0.0
    %1596 = vmatprep.subr.mxu0 0.0
    %1597 = vmatpush1.xpose.msra.mxu0 0.0
    %1598 = vmatprep.subr.mxu0 0.0
    %1599 = vmatpush1.xpose.msra.mxu0 0.0
    %1600 = vmatprep.subr.mxu0 0.0
    %1601 = vmatpush1.xpose.msra.mxu0 0.0
    %1602 = vmatprep.subr.mxu0 0.0
    %1603 = vmatpush1.xpose.msra.mxu0 0.0
    %1604 = vmatprep.subr.mxu0 0.0
    %1605 = vmatpush1.xpose.msra.mxu0 0.0
    %1606 = vmatprep.subr.mxu0 0.0
    %1607 = vmatpush1.xpose.msra.mxu0 0.0
    %1608 = vmatprep.subr.mxu0 0.0
    %1609 = vmatpush1.xpose.msra.mxu0 0.0
    %1610 = vmatprep.subr.mxu0 0.0
    %1611 = vmatpush1.xpose.msra.mxu0 0.0
    %1612 = vmatprep.subr.mxu0 0.0
    %1613 = vmatpush1.xpose.msra.mxu0 0.0
    %1614 = vmatprep.subr.mxu0 0.0
    %1615 = vmatpush1.xpose.msra.mxu0 0.0
    %1616 = vmatprep.subr.mxu0 0.0
    %1617 = vmatpush1.xpose.msra.mxu0 0.0
    %1618 = vmatprep.subr.mxu0 0.0
    %1619 = vmatpush1.xpose.msra.mxu0 0.0
    %1620 = vmatprep.subr.mxu0 0.0
    %1621 = vmatpush1.xpose.msra.mxu0 0.0
    %1622 = vmatprep.subr.mxu0 0.0
    %1623 = vmatpush1.xpose.msra.mxu0 0.0
    %1624 = vmatprep.subr.mxu0 0.0
    %1625 = vmatpush1.xpose.msra.mxu0 0.0
    %1626 = vmatprep.mubr.f32.mxu0 0.0
    %1627 = vmatmul.mubr.f32.gmra.mrb[0].mxu0 %v1560
    %v1628 = vpop.f32.mrb[0].mxu0
    %v1629 = vadd.f32 0.0, %v1628
    %v1630 = vpop.f32.mrb[0].mxu0
    %1631 = vdwg.mxu0
    %v1632 = vsel %vm646, %v1629, -1e+30
    %v1633 = vsel %vm648, %v1632, -inf
    %1634 = vmax.xlane.f32.xlu0 %v1633
    %v1635 = vpop.xlane.xlu0 %1634
    %v1636 = vsub.f32 %v1632, %v1635
    %v1637 = vmul.f32 %v1636, 1.442695
    %v1638 = vpow.pop %v1637
    %v1639 = vmul.f32 %v1638, %v383
    %v1640 = vsel %vm648, %v1639, 0.0
    %1641 = vadd.xlane.f32.xlu0 %v1640
    %v1642 = vpop.xlane.xlu0 %1641
    %v1643 = vmax.f32 %v1642, 1e-30
    %v1644 = vrcp.pop %v1643
    %v1645 = vmul.f32 %v1639, %v1644
    %v1647 = vsel %vm213, %v1645, 0
    %1649 = vmatprep.subr.mxu0 0.0
    %1650 = vmatpush1.msra.mxu0 %v381
    %1651 = vmatprep.subr.mxu0 0.0
    %1652 = vmatpush1.msra.mxu0 %v382
    %1653 = vmatprep.subr.mxu0 0.0
    %1654 = vmatpush1.msra.mxu0 0.0
    %1655 = vmatprep.subr.mxu0 0.0
    %1656 = vmatpush1.msra.mxu0 0.0
    %1657 = vmatprep.subr.mxu0 0.0
    %1658 = vmatpush1.msra.mxu0 0.0
    %1659 = vmatprep.subr.mxu0 0.0
    %1660 = vmatpush1.msra.mxu0 0.0
    %1661 = vmatprep.subr.mxu0 0.0
    %1662 = vmatpush1.msra.mxu0 0.0
    %1663 = vmatprep.subr.mxu0 0.0
    %1664 = vmatpush1.msra.mxu0 0.0
    %1665 = vmatprep.subr.mxu0 0.0
    %1666 = vmatpush1.msra.mxu0 0.0
    %1667 = vmatprep.subr.mxu0 0.0
    %1668 = vmatpush1.msra.mxu0 0.0
    %1669 = vmatprep.subr.mxu0 0.0
    %1670 = vmatpush1.msra.mxu0 0.0
    %1671 = vmatprep.subr.mxu0 0.0
    %1672 = vmatpush1.msra.mxu0 0.0
    %1673 = vmatprep.subr.mxu0 0.0
    %1674 = vmatpush1.msra.mxu0 0.0
    %1675 = vmatprep.subr.mxu0 0.0
    %1676 = vmatpush1.msra.mxu0 0.0
    %1677 = vmatprep.subr.mxu0 0.0
    %1678 = vmatpush1.msra.mxu0 0.0
    %1679 = vmatprep.subr.mxu0 0.0
    %1680 = vmatpush1.msra.mxu0 0.0
    %1681 = vmatprep.subr.mxu0 0.0
    %1682 = vmatpush1.msra.mxu0 0.0
    %1683 = vmatprep.subr.mxu0 0.0
    %1684 = vmatpush1.msra.mxu0 0.0
    %1685 = vmatprep.subr.mxu0 0.0
    %1686 = vmatpush1.msra.mxu0 0.0
    %1687 = vmatprep.subr.mxu0 0.0
    %1688 = vmatpush1.msra.mxu0 0.0
    %1689 = vmatprep.subr.mxu0 0.0
    %1690 = vmatpush1.msra.mxu0 0.0
    %1691 = vmatprep.subr.mxu0 0.0
    %1692 = vmatpush1.msra.mxu0 0.0
    %1693 = vmatprep.subr.mxu0 0.0
    %1694 = vmatpush1.msra.mxu0 0.0
    %1695 = vmatprep.subr.mxu0 0.0
    %1696 = vmatpush1.msra.mxu0 0.0
    %1697 = vmatprep.subr.mxu0 0.0
    %1698 = vmatpush1.msra.mxu0 0.0
    %1699 = vmatprep.subr.mxu0 0.0
    %1700 = vmatpush1.msra.mxu0 0.0
    %1701 = vmatprep.subr.mxu0 0.0
    %1702 = vmatpush1.msra.mxu0 0.0
    %1703 = vmatprep.subr.mxu0 0.0
    %1704 = vmatpush1.msra.mxu0 0.0
    %1705 = vmatprep.subr.mxu0 0.0
    %1706 = vmatpush1.msra.mxu0 0.0
    %1707 = vmatprep.subr.mxu0 0.0
    %1708 = vmatpush1.msra.mxu0 0.0
    %1709 = vmatprep.subr.mxu0 0.0
    %1710 = vmatpush1.msra.mxu0 0.0
    %1711 = vmatprep.subr.mxu0 0.0
    %1712 = vmatpush1.msra.mxu0 0.0
    %1713 = vmatprep.mubr.f32.mxu0 0.0
    %1714 = vmatmul.mubr.f32.gmra.mrb[0].mxu0 %v1647
    %v1715 = vpop.f32.mrb[0].mxu0
    %v1716 = vadd.f32 0.0, %v1715
    %v1717 = vpop.f32.mrb[0].mxu0
    %1718 = vdwg.mxu0
    %v1720 = vsel %vm281, %v1716, 0
    %1722 = vmatprep.subr.mxu0 0.0
    %1723 = vmatpush1.msra.mxu0 %v388
    %1724 = vmatprep.subr.mxu0 0.0
    %1725 = vmatpush1.msra.mxu0 %v389
    %1726 = vmatprep.subr.mxu0 0.0
    %1727 = vmatpush1.msra.mxu0 %v390
    %1728 = vmatprep.subr.mxu0 0.0
    %1729 = vmatpush1.msra.mxu0 %v391
    %1730 = vmatprep.subr.mxu0 0.0
    %1731 = vmatpush1.msra.mxu0 0.0
    %1732 = vmatprep.subr.mxu0 0.0
    %1733 = vmatpush1.msra.mxu0 0.0
    %1734 = vmatprep.subr.mxu0 0.0
    %1735 = vmatpush1.msra.mxu0 0.0
    %1736 = vmatprep.subr.mxu0 0.0
    %1737 = vmatpush1.msra.mxu0 0.0
    %1738 = vmatprep.subr.mxu0 0.0
    %1739 = vmatpush1.msra.mxu0 0.0
    %1740 = vmatprep.subr.mxu0 0.0
    %1741 = vmatpush1.msra.mxu0 0.0
    %1742 = vmatprep.subr.mxu0 0.0
    %1743 = vmatpush1.msra.mxu0 0.0
    %1744 = vmatprep.subr.mxu0 0.0
    %1745 = vmatpush1.msra.mxu0 0.0
    %1746 = vmatprep.subr.mxu0 0.0
    %1747 = vmatpush1.msra.mxu0 0.0
    %1748 = vmatprep.subr.mxu0 0.0
    %1749 = vmatpush1.msra.mxu0 0.0
    %1750 = vmatprep.subr.mxu0 0.0
    %1751 = vmatpush1.msra.mxu0 0.0
    %1752 = vmatprep.subr.mxu0 0.0
    %1753 = vmatpush1.msra.mxu0 0.0
    %1754 = vmatprep.subr.mxu0 0.0
    %1755 = vmatpush1.msra.mxu0 0.0
    %1756 = vmatprep.subr.mxu0 0.0
    %1757 = vmatpush1.msra.mxu0 0.0
    %1758 = vmatprep.subr.mxu0 0.0
    %1759 = vmatpush1.msra.mxu0 0.0
    %1760 = vmatprep.subr.mxu0 0.0
    %1761 = vmatpush1.msra.mxu0 0.0
    %1762 = vmatprep.subr.mxu0 0.0
    %1763 = vmatpush1.msra.mxu0 0.0
    %1764 = vmatprep.subr.mxu0 0.0
    %1765 = vmatpush1.msra.mxu0 0.0
    %1766 = vmatprep.subr.mxu0 0.0
    %1767 = vmatpush1.msra.mxu0 0.0
    %1768 = vmatprep.subr.mxu0 0.0
    %1769 = vmatpush1.msra.mxu0 0.0
    %1770 = vmatprep.subr.mxu0 0.0
    %1771 = vmatpush1.msra.mxu0 0.0
    %1772 = vmatprep.subr.mxu0 0.0
    %1773 = vmatpush1.msra.mxu0 0.0
    %1774 = vmatprep.subr.mxu0 0.0
    %1775 = vmatpush1.msra.mxu0 0.0
    %1776 = vmatprep.subr.mxu0 0.0
    %1777 = vmatpush1.msra.mxu0 0.0
    %1778 = vmatprep.subr.mxu0 0.0
    %1779 = vmatpush1.msra.mxu0 0.0
    %1780 = vmatprep.subr.mxu0 0.0
    %1781 = vmatpush1.msra.mxu0 0.0
    %1782 = vmatprep.subr.mxu0 0.0
    %1783 = vmatpush1.msra.mxu0 0.0
    %1784 = vmatprep.subr.mxu0 0.0
    %1785 = vmatpush1.msra.mxu0 0.0
    %1786 = vmatprep.mubr.f32.mxu0 0.0
    %1787 = vmatmul.mubr.f32.gmra.mrb[0].mxu0 %v1720
    %v1788 = vpop.f32.mrb[0].mxu0
    %v1789 = vadd.f32 0.0, %v1788
    %v1790 = vpop.f32.mrb[0].mxu0
    %1791 = vdwg.mxu0
    %1792 = vmatprep.subr.mxu0 0.0
    %1793 = vmatpush1.msra.mxu0 %v384
    %1794 = vmatprep.subr.mxu0 0.0
    %1795 = vmatpush1.msra.mxu0 %v385
    %1796 = vmatprep.subr.mxu0 0.0
    %1797 = vmatpush1.msra.mxu0 %v386
    %1798 = vmatprep.subr.mxu0 0.0
    %1799 = vmatpush1.msra.mxu0 %v387
    %1800 = vmatprep.subr.mxu0 0.0
    %1801 = vmatpush1.msra.mxu0 0.0
    %1802 = vmatprep.subr.mxu0 0.0
    %1803 = vmatpush1.msra.mxu0 0.0
    %1804 = vmatprep.subr.mxu0 0.0
    %1805 = vmatpush1.msra.mxu0 0.0
    %1806 = vmatprep.subr.mxu0 0.0
    %1807 = vmatpush1.msra.mxu0 0.0
    %1808 = vmatprep.subr.mxu0 0.0
    %1809 = vmatpush1.msra.mxu0 0.0
    %1810 = vmatprep.subr.mxu0 0.0
    %1811 = vmatpush1.msra.mxu0 0.0
    %1812 = vmatprep.subr.mxu0 0.0
    %1813 = vmatpush1.msra.mxu0 0.0
    %1814 = vmatprep.subr.mxu0 0.0
    %1815 = vmatpush1.msra.mxu0 0.0
    %1816 = vmatprep.subr.mxu0 0.0
    %1817 = vmatpush1.msra.mxu0 0.0
    %1818 = vmatprep.subr.mxu0 0.0
    %1819 = vmatpush1.msra.mxu0 0.0
    %1820 = vmatprep.subr.mxu0 0.0
    %1821 = vmatpush1.msra.mxu0 0.0
    %1822 = vmatprep.subr.mxu0 0.0
    %1823 = vmatpush1.msra.mxu0 0.0
    %1824 = vmatprep.subr.mxu0 0.0
    %1825 = vmatpush1.msra.mxu0 0.0
    %1826 = vmatprep.subr.mxu0 0.0
    %1827 = vmatpush1.msra.mxu0 0.0
    %1828 = vmatprep.subr.mxu0 0.0
    %1829 = vmatpush1.msra.mxu0 0.0
    %1830 = vmatprep.subr.mxu0 0.0
    %1831 = vmatpush1.msra.mxu0 0.0
    %1832 = vmatprep.subr.mxu0 0.0
    %1833 = vmatpush1.msra.mxu0 0.0
    %1834 = vmatprep.subr.mxu0 0.0
    %1835 = vmatpush1.msra.mxu0 0.0
    %1836 = vmatprep.subr.mxu0 0.0
    %1837 = vmatpush1.msra.mxu0 0.0
    %1838 = vmatprep.subr.mxu0 0.0
    %1839 = vmatpush1.msra.mxu0 0.0
    %1840 = vmatprep.subr.mxu0 0.0
    %1841 = vmatpush1.msra.mxu0 0.0
    %1842 = vmatprep.subr.mxu0 0.0
    %1843 = vmatpush1.msra.mxu0 0.0
    %1844 = vmatprep.subr.mxu0 0.0
    %1845 = vmatpush1.msra.mxu0 0.0
    %1846 = vmatprep.subr.mxu0 0.0
    %1847 = vmatpush1.msra.mxu0 0.0
    %1848 = vmatprep.subr.mxu0 0.0
    %1849 = vmatpush1.msra.mxu0 0.0
    %1850 = vmatprep.subr.mxu0 0.0
    %1851 = vmatpush1.msra.mxu0 0.0
    %1852 = vmatprep.subr.mxu0 0.0
    %1853 = vmatpush1.msra.mxu0 0.0
    %1854 = vmatprep.subr.mxu0 0.0
    %1855 = vmatpush1.msra.mxu0 0.0
    %1856 = vmatprep.mubr.f32.mxu0 0.0
    %1857 = vmatmul.mubr.f32.gmra.mrb[0].mxu0 %v1560
    %v1858 = vpop.f32.mrb[0].mxu0
    %v1859 = vadd.f32 %v1789, %v1858
    %v1860 = vpop.f32.mrb[0].mxu0
    %1861 = vdwg.mxu0
    %v1862 = vadd.f32 %v1859, %v540
    %v1863 = vmul.f32 %v1862, 0.5
    %v1864 = vtanh.pop %v1863
    %v1865 = vadd.f32 %v1864, 1.0
    %v1866 = vmul.f32 %v1865, 0.5
    %v1867 = vtanh.pop %v1862
    %v1868 = vmul.f32 %v1866, %v1550
    %1870 = vrot.lane.b32.xlu0 %v1867, 64
    %v1871 = vpop.permute.xlu0 %1870
    %v1873 = vmul.f32 %v1866, %v1871
    %1875 = vrot.lane.b32.xlu0 %v1873, 32
    %v1876 = vpop.permute.xlu0 %1875
    %v1878 = vadd.f32 %v1868, %v1876
    %v1879 = vtanh.pop %v1878
    %1881 = vrot.lane.b32.xlu0 %v1879, 64
    %v1882 = vpop.permute.xlu0 %1881
    %v1884 = vmul.f32 %v1866, %v1882
    %1886 = vrot.lane.b32.xlu0 %v1884, 32
    %v1887 = vpop.permute.xlu0 %1886
    %v1888 = vsel %vm281, %v1887, 0
    %1890 = vmatprep.subr.mxu0 0.0
    %1891 = vmatpush1.xpose.msra.mxu0 %v571
    %1892 = vmatprep.subr.mxu0 0.0
    %1893 = vmatpush1.xpose.msra.mxu0 %v574
    %1894 = vmatprep.subr.mxu0 0.0
    %1895 = vmatpush1.xpose.msra.mxu0 0.0
    %1896 = vmatprep.subr.mxu0 0.0
    %1897 = vmatpush1.xpose.msra.mxu0 0.0
    %1898 = vmatprep.subr.mxu0 0.0
    %1899 = vmatpush1.xpose.msra.mxu0 0.0
    %1900 = vmatprep.subr.mxu0 0.0
    %1901 = vmatpush1.xpose.msra.mxu0 0.0
    %1902 = vmatprep.subr.mxu0 0.0
    %1903 = vmatpush1.xpose.msra.mxu0 0.0
    %1904 = vmatprep.subr.mxu0 0.0
    %1905 = vmatpush1.xpose.msra.mxu0 0.0
    %1906 = vmatprep.subr.mxu0 0.0
    %1907 = vmatpush1.xpose.msra.mxu0 0.0
    %1908 = vmatprep.subr.mxu0 0.0
    %1909 = vmatpush1.xpose.msra.mxu0 0.0
    %1910 = vmatprep.subr.mxu0 0.0
    %1911 = vmatpush1.xpose.msra.mxu0 0.0
    %1912 = vmatprep.subr.mxu0 0.0
    %1913 = vmatpush1.xpose.msra.mxu0 0.0
    %1914 = vmatprep.subr.mxu0 0.0
    %1915 = vmatpush1.xpose.msra.mxu0 0.0
    %1916 = vmatprep.subr.mxu0 0.0
    %1917 = vmatpush1.xpose.msra.mxu0 0.0
    %1918 = vmatprep.subr.mxu0 0.0
    %1919 = vmatpush1.xpose.msra.mxu0 0.0
    %1920 = vmatprep.subr.mxu0 0.0
    %1921 = vmatpush1.xpose.msra.mxu0 0.0
    %1922 = vmatprep.subr.mxu0 0.0
    %1923 = vmatpush1.xpose.msra.mxu0 0.0
    %1924 = vmatprep.subr.mxu0 0.0
    %1925 = vmatpush1.xpose.msra.mxu0 0.0
    %1926 = vmatprep.subr.mxu0 0.0
    %1927 = vmatpush1.xpose.msra.mxu0 0.0
    %1928 = vmatprep.subr.mxu0 0.0
    %1929 = vmatpush1.xpose.msra.mxu0 0.0
    %1930 = vmatprep.subr.mxu0 0.0
    %1931 = vmatpush1.xpose.msra.mxu0 0.0
    %1932 = vmatprep.subr.mxu0 0.0
    %1933 = vmatpush1.xpose.msra.mxu0 0.0
    %1934 = vmatprep.subr.mxu0 0.0
    %1935 = vmatpush1.xpose.msra.mxu0 0.0
    %1936 = vmatprep.subr.mxu0 0.0
    %1937 = vmatpush1.xpose.msra.mxu0 0.0
    %1938 = vmatprep.subr.mxu0 0.0
    %1939 = vmatpush1.xpose.msra.mxu0 0.0
    %1940 = vmatprep.subr.mxu0 0.0
    %1941 = vmatpush1.xpose.msra.mxu0 0.0
    %1942 = vmatprep.subr.mxu0 0.0
    %1943 = vmatpush1.xpose.msra.mxu0 0.0
    %1944 = vmatprep.subr.mxu0 0.0
    %1945 = vmatpush1.xpose.msra.mxu0 0.0
    %1946 = vmatprep.subr.mxu0 0.0
    %1947 = vmatpush1.xpose.msra.mxu0 0.0
    %1948 = vmatprep.subr.mxu0 0.0
    %1949 = vmatpush1.xpose.msra.mxu0 0.0
    %1950 = vmatprep.subr.mxu0 0.0
    %1951 = vmatpush1.xpose.msra.mxu0 0.0
    %1952 = vmatprep.subr.mxu0 0.0
    %1953 = vmatpush1.xpose.msra.mxu0 0.0
    %1954 = vmatprep.mubr.f32.mxu0 0.0
    %1955 = vmatmul.mubr.f32.gmra.mrb[0].mxu0 %v1888
    %v1956 = vpop.f32.mrb[0].mxu0
    %v1957 = vadd.f32 0.0, %v1956
    %v1958 = vpop.f32.mrb[0].mxu0
    %1959 = vdwg.mxu0
    %v1960 = vsel %vm646, %v1957, -1e+30
    %v1961 = vsel %vm648, %v1960, -inf
    %1962 = vmax.xlane.f32.xlu0 %v1961
    %v1963 = vpop.xlane.xlu0 %1962
    %v1964 = vsub.f32 %v1960, %v1963
    %v1965 = vmul.f32 %v1964, 1.442695
    %v1966 = vpow.pop %v1965
    %v1967 = vmul.f32 %v1966, %v383
    %v1968 = vsel %vm648, %v1967, 0.0
    %1969 = vadd.xlane.f32.xlu0 %v1968
    %v1970 = vpop.xlane.xlu0 %1969
    %v1971 = vmax.f32 %v1970, 1e-30
    %v1972 = vrcp.pop %v1971
    %v1973 = vmul.f32 %v1967, %v1972
    %v1975 = vsel %vm213, %v1973, 0
    %1977 = vmatprep.subr.mxu0 0.0
    %1978 = vmatpush1.msra.mxu0 %v381
    %1979 = vmatprep.subr.mxu0 0.0
    %1980 = vmatpush1.msra.mxu0 %v382
    %1981 = vmatprep.subr.mxu0 0.0
    %1982 = vmatpush1.msra.mxu0 0.0
    %1983 = vmatprep.subr.mxu0 0.0
    %1984 = vmatpush1.msra.mxu0 0.0
    %1985 = vmatprep.subr.mxu0 0.0
    %1986 = vmatpush1.msra.mxu0 0.0
    %1987 = vmatprep.subr.mxu0 0.0
    %1988 = vmatpush1.msra.mxu0 0.0
    %1989 = vmatprep.subr.mxu0 0.0
    %1990 = vmatpush1.msra.mxu0 0.0
    %1991 = vmatprep.subr.mxu0 0.0
    %1992 = vmatpush1.msra.mxu0 0.0
    %1993 = vmatprep.subr.mxu0 0.0
    %1994 = vmatpush1.msra.mxu0 0.0
    %1995 = vmatprep.subr.mxu0 0.0
    %1996 = vmatpush1.msra.mxu0 0.0
    %1997 = vmatprep.subr.mxu0 0.0
    %1998 = vmatpush1.msra.mxu0 0.0
    %1999 = vmatprep.subr.mxu0 0.0
    %2000 = vmatpush1.msra.mxu0 0.0
    %2001 = vmatprep.subr.mxu0 0.0
    %2002 = vmatpush1.msra.mxu0 0.0
    %2003 = vmatprep.subr.mxu0 0.0
    %2004 = vmatpush1.msra.mxu0 0.0
    %2005 = vmatprep.subr.mxu0 0.0
    %2006 = vmatpush1.msra.mxu0 0.0
    %2007 = vmatprep.subr.mxu0 0.0
    %2008 = vmatpush1.msra.mxu0 0.0
    %2009 = vmatprep.subr.mxu0 0.0
    %2010 = vmatpush1.msra.mxu0 0.0
    %2011 = vmatprep.subr.mxu0 0.0
    %2012 = vmatpush1.msra.mxu0 0.0
    %2013 = vmatprep.subr.mxu0 0.0
    %2014 = vmatpush1.msra.mxu0 0.0
    %2015 = vmatprep.subr.mxu0 0.0
    %2016 = vmatpush1.msra.mxu0 0.0
    %2017 = vmatprep.subr.mxu0 0.0
    %2018 = vmatpush1.msra.mxu0 0.0
    %2019 = vmatprep.subr.mxu0 0.0
    %2020 = vmatpush1.msra.mxu0 0.0
    %2021 = vmatprep.subr.mxu0 0.0
    %2022 = vmatpush1.msra.mxu0 0.0
    %2023 = vmatprep.subr.mxu0 0.0
    %2024 = vmatpush1.msra.mxu0 0.0
    %2025 = vmatprep.subr.mxu0 0.0
    %2026 = vmatpush1.msra.mxu0 0.0
    %2027 = vmatprep.subr.mxu0 0.0
    %2028 = vmatpush1.msra.mxu0 0.0
    %2029 = vmatprep.subr.mxu0 0.0
    %2030 = vmatpush1.msra.mxu0 0.0
    %2031 = vmatprep.subr.mxu0 0.0
    %2032 = vmatpush1.msra.mxu0 0.0
    %2033 = vmatprep.subr.mxu0 0.0
    %2034 = vmatpush1.msra.mxu0 0.0
    %2035 = vmatprep.subr.mxu0 0.0
    %2036 = vmatpush1.msra.mxu0 0.0
    %2037 = vmatprep.subr.mxu0 0.0
    %2038 = vmatpush1.msra.mxu0 0.0
    %2039 = vmatprep.subr.mxu0 0.0
    %2040 = vmatpush1.msra.mxu0 0.0
    %2041 = vmatprep.mubr.f32.mxu0 0.0
    %2042 = vmatmul.mubr.f32.gmra.mrb[0].mxu0 %v1975
    %v2043 = vpop.f32.mrb[0].mxu0
    %v2044 = vadd.f32 0.0, %v2043
    %v2045 = vpop.f32.mrb[0].mxu0
    %2046 = vdwg.mxu0
    %v2048 = vsel %vm281, %v2044, 0
    %2050 = vmatprep.subr.mxu0 0.0
    %2051 = vmatpush1.msra.mxu0 %v388
    %2052 = vmatprep.subr.mxu0 0.0
    %2053 = vmatpush1.msra.mxu0 %v389
    %2054 = vmatprep.subr.mxu0 0.0
    %2055 = vmatpush1.msra.mxu0 %v390
    %2056 = vmatprep.subr.mxu0 0.0
    %2057 = vmatpush1.msra.mxu0 %v391
    %2058 = vmatprep.subr.mxu0 0.0
    %2059 = vmatpush1.msra.mxu0 0.0
    %2060 = vmatprep.subr.mxu0 0.0
    %2061 = vmatpush1.msra.mxu0 0.0
    %2062 = vmatprep.subr.mxu0 0.0
    %2063 = vmatpush1.msra.mxu0 0.0
    %2064 = vmatprep.subr.mxu0 0.0
    %2065 = vmatpush1.msra.mxu0 0.0
    %2066 = vmatprep.subr.mxu0 0.0
    %2067 = vmatpush1.msra.mxu0 0.0
    %2068 = vmatprep.subr.mxu0 0.0
    %2069 = vmatpush1.msra.mxu0 0.0
    %2070 = vmatprep.subr.mxu0 0.0
    %2071 = vmatpush1.msra.mxu0 0.0
    %2072 = vmatprep.subr.mxu0 0.0
    %2073 = vmatpush1.msra.mxu0 0.0
    %2074 = vmatprep.subr.mxu0 0.0
    %2075 = vmatpush1.msra.mxu0 0.0
    %2076 = vmatprep.subr.mxu0 0.0
    %2077 = vmatpush1.msra.mxu0 0.0
    %2078 = vmatprep.subr.mxu0 0.0
    %2079 = vmatpush1.msra.mxu0 0.0
    %2080 = vmatprep.subr.mxu0 0.0
    %2081 = vmatpush1.msra.mxu0 0.0
    %2082 = vmatprep.subr.mxu0 0.0
    %2083 = vmatpush1.msra.mxu0 0.0
    %2084 = vmatprep.subr.mxu0 0.0
    %2085 = vmatpush1.msra.mxu0 0.0
    %2086 = vmatprep.subr.mxu0 0.0
    %2087 = vmatpush1.msra.mxu0 0.0
    %2088 = vmatprep.subr.mxu0 0.0
    %2089 = vmatpush1.msra.mxu0 0.0
    %2090 = vmatprep.subr.mxu0 0.0
    %2091 = vmatpush1.msra.mxu0 0.0
    %2092 = vmatprep.subr.mxu0 0.0
    %2093 = vmatpush1.msra.mxu0 0.0
    %2094 = vmatprep.subr.mxu0 0.0
    %2095 = vmatpush1.msra.mxu0 0.0
    %2096 = vmatprep.subr.mxu0 0.0
    %2097 = vmatpush1.msra.mxu0 0.0
    %2098 = vmatprep.subr.mxu0 0.0
    %2099 = vmatpush1.msra.mxu0 0.0
    %2100 = vmatprep.subr.mxu0 0.0
    %2101 = vmatpush1.msra.mxu0 0.0
    %2102 = vmatprep.subr.mxu0 0.0
    %2103 = vmatpush1.msra.mxu0 0.0
    %2104 = vmatprep.subr.mxu0 0.0
    %2105 = vmatpush1.msra.mxu0 0.0
    %2106 = vmatprep.subr.mxu0 0.0
    %2107 = vmatpush1.msra.mxu0 0.0
    %2108 = vmatprep.subr.mxu0 0.0
    %2109 = vmatpush1.msra.mxu0 0.0
    %2110 = vmatprep.subr.mxu0 0.0
    %2111 = vmatpush1.msra.mxu0 0.0
    %2112 = vmatprep.subr.mxu0 0.0
    %2113 = vmatpush1.msra.mxu0 0.0
    %2114 = vmatprep.mubr.f32.mxu0 0.0
    %2115 = vmatmul.mubr.f32.gmra.mrb[0].mxu0 %v2048
    %v2116 = vpop.f32.mrb[0].mxu0
    %v2117 = vadd.f32 0.0, %v2116
    %v2118 = vpop.f32.mrb[0].mxu0
    %2119 = vdwg.mxu0
    %2120 = vmatprep.subr.mxu0 0.0
    %2121 = vmatpush1.msra.mxu0 %v384
    %2122 = vmatprep.subr.mxu0 0.0
    %2123 = vmatpush1.msra.mxu0 %v385
    %2124 = vmatprep.subr.mxu0 0.0
    %2125 = vmatpush1.msra.mxu0 %v386
    %2126 = vmatprep.subr.mxu0 0.0
    %2127 = vmatpush1.msra.mxu0 %v387
    %2128 = vmatprep.subr.mxu0 0.0
    %2129 = vmatpush1.msra.mxu0 0.0
    %2130 = vmatprep.subr.mxu0 0.0
    %2131 = vmatpush1.msra.mxu0 0.0
    %2132 = vmatprep.subr.mxu0 0.0
    %2133 = vmatpush1.msra.mxu0 0.0
    %2134 = vmatprep.subr.mxu0 0.0
    %2135 = vmatpush1.msra.mxu0 0.0
    %2136 = vmatprep.subr.mxu0 0.0
    %2137 = vmatpush1.msra.mxu0 0.0
    %2138 = vmatprep.subr.mxu0 0.0
    %2139 = vmatpush1.msra.mxu0 0.0
    %2140 = vmatprep.subr.mxu0 0.0
    %2141 = vmatpush1.msra.mxu0 0.0
    %2142 = vmatprep.subr.mxu0 0.0
    %2143 = vmatpush1.msra.mxu0 0.0
    %2144 = vmatprep.subr.mxu0 0.0
    %2145 = vmatpush1.msra.mxu0 0.0
    %2146 = vmatprep.subr.mxu0 0.0
    %2147 = vmatpush1.msra.mxu0 0.0
    %2148 = vmatprep.subr.mxu0 0.0
    %2149 = vmatpush1.msra.mxu0 0.0
    %2150 = vmatprep.subr.mxu0 0.0
    %2151 = vmatpush1.msra.mxu0 0.0
    %2152 = vmatprep.subr.mxu0 0.0
    %2153 = vmatpush1.msra.mxu0 0.0
    %2154 = vmatprep.subr.mxu0 0.0
    %2155 = vmatpush1.msra.mxu0 0.0
    %2156 = vmatprep.subr.mxu0 0.0
    %2157 = vmatpush1.msra.mxu0 0.0
    %2158 = vmatprep.subr.mxu0 0.0
    %2159 = vmatpush1.msra.mxu0 0.0
    %2160 = vmatprep.subr.mxu0 0.0
    %2161 = vmatpush1.msra.mxu0 0.0
    %2162 = vmatprep.subr.mxu0 0.0
    %2163 = vmatpush1.msra.mxu0 0.0
    %2164 = vmatprep.subr.mxu0 0.0
    %2165 = vmatpush1.msra.mxu0 0.0
    %2166 = vmatprep.subr.mxu0 0.0
    %2167 = vmatpush1.msra.mxu0 0.0
    %2168 = vmatprep.subr.mxu0 0.0
    %2169 = vmatpush1.msra.mxu0 0.0
    %2170 = vmatprep.subr.mxu0 0.0
    %2171 = vmatpush1.msra.mxu0 0.0
    %2172 = vmatprep.subr.mxu0 0.0
    %2173 = vmatpush1.msra.mxu0 0.0
    %2174 = vmatprep.subr.mxu0 0.0
    %2175 = vmatpush1.msra.mxu0 0.0
    %2176 = vmatprep.subr.mxu0 0.0
    %2177 = vmatpush1.msra.mxu0 0.0
    %2178 = vmatprep.subr.mxu0 0.0
    %2179 = vmatpush1.msra.mxu0 0.0
    %2180 = vmatprep.subr.mxu0 0.0
    %2181 = vmatpush1.msra.mxu0 0.0
    %2182 = vmatprep.subr.mxu0 0.0
    %2183 = vmatpush1.msra.mxu0 0.0
    %2184 = vmatprep.mubr.f32.mxu0 0.0
    %2185 = vmatmul.mubr.f32.gmra.mrb[0].mxu0 %v1888
    %v2186 = vpop.f32.mrb[0].mxu0
    %v2187 = vadd.f32 %v2117, %v2186
    %v2188 = vpop.f32.mrb[0].mxu0
    %2189 = vdwg.mxu0
    %v2190 = vadd.f32 %v2187, %v540
    %v2191 = vmul.f32 %v2190, 0.5
    %v2192 = vtanh.pop %v2191
    %v2193 = vadd.f32 %v2192, 1.0
    %v2194 = vmul.f32 %v2193, 0.5
    %v2195 = vtanh.pop %v2190
    %v2196 = vmul.f32 %v2194, %v1878
    %2198 = vrot.lane.b32.xlu0 %v2195, 64
    %v2199 = vpop.permute.xlu0 %2198
    %v2201 = vmul.f32 %v2194, %v2199
    %2203 = vrot.lane.b32.xlu0 %v2201, 32
    %v2204 = vpop.permute.xlu0 %2203
    %v2206 = vadd.f32 %v2196, %v2204
    %v2207 = vtanh.pop %v2206
    %2209 = vrot.lane.b32.xlu0 %v2207, 64
    %v2210 = vpop.permute.xlu0 %2209
    %v2212 = vmul.f32 %v2194, %v2210
    %2214 = vrot.lane.b32.xlu0 %v2212, 32
    %v2215 = vpop.permute.xlu0 %2214
    %v2216 = vsel %vm281, %v2215, 0
    %2218 = vmatprep.subr.mxu0 0.0
    %2219 = vmatpush1.xpose.msra.mxu0 %v571
    %2220 = vmatprep.subr.mxu0 0.0
    %2221 = vmatpush1.xpose.msra.mxu0 %v574
    %2222 = vmatprep.subr.mxu0 0.0
    %2223 = vmatpush1.xpose.msra.mxu0 0.0
    %2224 = vmatprep.subr.mxu0 0.0
    %2225 = vmatpush1.xpose.msra.mxu0 0.0
    %2226 = vmatprep.subr.mxu0 0.0
    %2227 = vmatpush1.xpose.msra.mxu0 0.0
    %2228 = vmatprep.subr.mxu0 0.0
    %2229 = vmatpush1.xpose.msra.mxu0 0.0
    %2230 = vmatprep.subr.mxu0 0.0
    %2231 = vmatpush1.xpose.msra.mxu0 0.0
    %2232 = vmatprep.subr.mxu0 0.0
    %2233 = vmatpush1.xpose.msra.mxu0 0.0
    %2234 = vmatprep.subr.mxu0 0.0
    %2235 = vmatpush1.xpose.msra.mxu0 0.0
    %2236 = vmatprep.subr.mxu0 0.0
    %2237 = vmatpush1.xpose.msra.mxu0 0.0
    %2238 = vmatprep.subr.mxu0 0.0
    %2239 = vmatpush1.xpose.msra.mxu0 0.0
    %2240 = vmatprep.subr.mxu0 0.0
    %2241 = vmatpush1.xpose.msra.mxu0 0.0
    %2242 = vmatprep.subr.mxu0 0.0
    %2243 = vmatpush1.xpose.msra.mxu0 0.0
    %2244 = vmatprep.subr.mxu0 0.0
    %2245 = vmatpush1.xpose.msra.mxu0 0.0
    %2246 = vmatprep.subr.mxu0 0.0
    %2247 = vmatpush1.xpose.msra.mxu0 0.0
    %2248 = vmatprep.subr.mxu0 0.0
    %2249 = vmatpush1.xpose.msra.mxu0 0.0
    %2250 = vmatprep.subr.mxu0 0.0
    %2251 = vmatpush1.xpose.msra.mxu0 0.0
    %2252 = vmatprep.subr.mxu0 0.0
    %2253 = vmatpush1.xpose.msra.mxu0 0.0
    %2254 = vmatprep.subr.mxu0 0.0
    %2255 = vmatpush1.xpose.msra.mxu0 0.0
    %2256 = vmatprep.subr.mxu0 0.0
    %2257 = vmatpush1.xpose.msra.mxu0 0.0
    %2258 = vmatprep.subr.mxu0 0.0
    %2259 = vmatpush1.xpose.msra.mxu0 0.0
    %2260 = vmatprep.subr.mxu0 0.0
    %2261 = vmatpush1.xpose.msra.mxu0 0.0
    %2262 = vmatprep.subr.mxu0 0.0
    %2263 = vmatpush1.xpose.msra.mxu0 0.0
    %2264 = vmatprep.subr.mxu0 0.0
    %2265 = vmatpush1.xpose.msra.mxu0 0.0
    %2266 = vmatprep.subr.mxu0 0.0
    %2267 = vmatpush1.xpose.msra.mxu0 0.0
    %2268 = vmatprep.subr.mxu0 0.0
    %2269 = vmatpush1.xpose.msra.mxu0 0.0
    %2270 = vmatprep.subr.mxu0 0.0
    %2271 = vmatpush1.xpose.msra.mxu0 0.0
    %2272 = vmatprep.subr.mxu0 0.0
    %2273 = vmatpush1.xpose.msra.mxu0 0.0
    %2274 = vmatprep.subr.mxu0 0.0
    %2275 = vmatpush1.xpose.msra.mxu0 0.0
    %2276 = vmatprep.subr.mxu0 0.0
    %2277 = vmatpush1.xpose.msra.mxu0 0.0
    %2278 = vmatprep.subr.mxu0 0.0
    %2279 = vmatpush1.xpose.msra.mxu0 0.0
    %2280 = vmatprep.subr.mxu0 0.0
    %2281 = vmatpush1.xpose.msra.mxu0 0.0
    %2282 = vmatprep.mubr.f32.mxu0 0.0
    %2283 = vmatmul.mubr.f32.gmra.mrb[0].mxu0 %v2216
    %v2284 = vpop.f32.mrb[0].mxu0
    %v2285 = vadd.f32 0.0, %v2284
    %v2286 = vpop.f32.mrb[0].mxu0
    %2287 = vdwg.mxu0
    %v2288 = vsel %vm646, %v2285, -1e+30
    %v2289 = vsel %vm648, %v2288, -inf
    %2290 = vmax.xlane.f32.xlu0 %v2289
    %v2291 = vpop.xlane.xlu0 %2290
    %v2292 = vsub.f32 %v2288, %v2291
    %v2293 = vmul.f32 %v2292, 1.442695
    %v2294 = vpow.pop %v2293
    %v2295 = vmul.f32 %v2294, %v383
    %v2296 = vsel %vm648, %v2295, 0.0
    %2297 = vadd.xlane.f32.xlu0 %v2296
    %v2298 = vpop.xlane.xlu0 %2297
    %v2299 = vmax.f32 %v2298, 1e-30
    %v2300 = vrcp.pop %v2299
    %v2301 = vmul.f32 %v2295, %v2300
    %v2303 = vsel %vm213, %v2301, 0
    %2305 = vmatprep.subr.mxu0 0.0
    %2306 = vmatpush1.msra.mxu0 %v381
    %2307 = vmatprep.subr.mxu0 0.0
    %2308 = vmatpush1.msra.mxu0 %v382
    %2309 = vmatprep.subr.mxu0 0.0
    %2310 = vmatpush1.msra.mxu0 0.0
    %2311 = vmatprep.subr.mxu0 0.0
    %2312 = vmatpush1.msra.mxu0 0.0
    %2313 = vmatprep.subr.mxu0 0.0
    %2314 = vmatpush1.msra.mxu0 0.0
    %2315 = vmatprep.subr.mxu0 0.0
    %2316 = vmatpush1.msra.mxu0 0.0
    %2317 = vmatprep.subr.mxu0 0.0
    %2318 = vmatpush1.msra.mxu0 0.0
    %2319 = vmatprep.subr.mxu0 0.0
    %2320 = vmatpush1.msra.mxu0 0.0
    %2321 = vmatprep.subr.mxu0 0.0
    %2322 = vmatpush1.msra.mxu0 0.0
    %2323 = vmatprep.subr.mxu0 0.0
    %2324 = vmatpush1.msra.mxu0 0.0
    %2325 = vmatprep.subr.mxu0 0.0
    %2326 = vmatpush1.msra.mxu0 0.0
    %2327 = vmatprep.subr.mxu0 0.0
    %2328 = vmatpush1.msra.mxu0 0.0
    %2329 = vmatprep.subr.mxu0 0.0
    %2330 = vmatpush1.msra.mxu0 0.0
    %2331 = vmatprep.subr.mxu0 0.0
    %2332 = vmatpush1.msra.mxu0 0.0
    %2333 = vmatprep.subr.mxu0 0.0
    %2334 = vmatpush1.msra.mxu0 0.0
    %2335 = vmatprep.subr.mxu0 0.0
    %2336 = vmatpush1.msra.mxu0 0.0
    %2337 = vmatprep.subr.mxu0 0.0
    %2338 = vmatpush1.msra.mxu0 0.0
    %2339 = vmatprep.subr.mxu0 0.0
    %2340 = vmatpush1.msra.mxu0 0.0
    %2341 = vmatprep.subr.mxu0 0.0
    %2342 = vmatpush1.msra.mxu0 0.0
    %2343 = vmatprep.subr.mxu0 0.0
    %2344 = vmatpush1.msra.mxu0 0.0
    %2345 = vmatprep.subr.mxu0 0.0
    %2346 = vmatpush1.msra.mxu0 0.0
    %2347 = vmatprep.subr.mxu0 0.0
    %2348 = vmatpush1.msra.mxu0 0.0
    %2349 = vmatprep.subr.mxu0 0.0
    %2350 = vmatpush1.msra.mxu0 0.0
    %2351 = vmatprep.subr.mxu0 0.0
    %2352 = vmatpush1.msra.mxu0 0.0
    %2353 = vmatprep.subr.mxu0 0.0
    %2354 = vmatpush1.msra.mxu0 0.0
    %2355 = vmatprep.subr.mxu0 0.0
    %2356 = vmatpush1.msra.mxu0 0.0
    %2357 = vmatprep.subr.mxu0 0.0
    %2358 = vmatpush1.msra.mxu0 0.0
    %2359 = vmatprep.subr.mxu0 0.0
    %2360 = vmatpush1.msra.mxu0 0.0
    %2361 = vmatprep.subr.mxu0 0.0
    %2362 = vmatpush1.msra.mxu0 0.0
    %2363 = vmatprep.subr.mxu0 0.0
    %2364 = vmatpush1.msra.mxu0 0.0
    %2365 = vmatprep.subr.mxu0 0.0
    %2366 = vmatpush1.msra.mxu0 0.0
    %2367 = vmatprep.subr.mxu0 0.0
    %2368 = vmatpush1.msra.mxu0 0.0
    %2369 = vmatprep.mubr.f32.mxu0 0.0
    %2370 = vmatmul.mubr.f32.gmra.mrb[0].mxu0 %v2303
    %v2371 = vpop.f32.mrb[0].mxu0
    %v2372 = vadd.f32 0.0, %v2371
    %v2373 = vpop.f32.mrb[0].mxu0
    %2374 = vdwg.mxu0
    %v2376 = vsel %vm281, %v2372, 0
    %2378 = vmatprep.subr.mxu0 0.0
    %2379 = vmatpush1.msra.mxu0 %v388
    %2380 = vmatprep.subr.mxu0 0.0
    %2381 = vmatpush1.msra.mxu0 %v389
    %2382 = vmatprep.subr.mxu0 0.0
    %2383 = vmatpush1.msra.mxu0 %v390
    %2384 = vmatprep.subr.mxu0 0.0
    %2385 = vmatpush1.msra.mxu0 %v391
    %2386 = vmatprep.subr.mxu0 0.0
    %2387 = vmatpush1.msra.mxu0 0.0
    %2388 = vmatprep.subr.mxu0 0.0
    %2389 = vmatpush1.msra.mxu0 0.0
    %2390 = vmatprep.subr.mxu0 0.0
    %2391 = vmatpush1.msra.mxu0 0.0
    %2392 = vmatprep.subr.mxu0 0.0
    %2393 = vmatpush1.msra.mxu0 0.0
    %2394 = vmatprep.subr.mxu0 0.0
    %2395 = vmatpush1.msra.mxu0 0.0
    %2396 = vmatprep.subr.mxu0 0.0
    %2397 = vmatpush1.msra.mxu0 0.0
    %2398 = vmatprep.subr.mxu0 0.0
    %2399 = vmatpush1.msra.mxu0 0.0
    %2400 = vmatprep.subr.mxu0 0.0
    %2401 = vmatpush1.msra.mxu0 0.0
    %2402 = vmatprep.subr.mxu0 0.0
    %2403 = vmatpush1.msra.mxu0 0.0
    %2404 = vmatprep.subr.mxu0 0.0
    %2405 = vmatpush1.msra.mxu0 0.0
    %2406 = vmatprep.subr.mxu0 0.0
    %2407 = vmatpush1.msra.mxu0 0.0
    %2408 = vmatprep.subr.mxu0 0.0
    %2409 = vmatpush1.msra.mxu0 0.0
    %2410 = vmatprep.subr.mxu0 0.0
    %2411 = vmatpush1.msra.mxu0 0.0
    %2412 = vmatprep.subr.mxu0 0.0
    %2413 = vmatpush1.msra.mxu0 0.0
    %2414 = vmatprep.subr.mxu0 0.0
    %2415 = vmatpush1.msra.mxu0 0.0
    %2416 = vmatprep.subr.mxu0 0.0
    %2417 = vmatpush1.msra.mxu0 0.0
    %2418 = vmatprep.subr.mxu0 0.0
    %2419 = vmatpush1.msra.mxu0 0.0
    %2420 = vmatprep.subr.mxu0 0.0
    %2421 = vmatpush1.msra.mxu0 0.0
    %2422 = vmatprep.subr.mxu0 0.0
    %2423 = vmatpush1.msra.mxu0 0.0
    %2424 = vmatprep.subr.mxu0 0.0
    %2425 = vmatpush1.msra.mxu0 0.0
    %2426 = vmatprep.subr.mxu0 0.0
    %2427 = vmatpush1.msra.mxu0 0.0
    %2428 = vmatprep.subr.mxu0 0.0
    %2429 = vmatpush1.msra.mxu0 0.0
    %2430 = vmatprep.subr.mxu0 0.0
    %2431 = vmatpush1.msra.mxu0 0.0
    %2432 = vmatprep.subr.mxu0 0.0
    %2433 = vmatpush1.msra.mxu0 0.0
    %2434 = vmatprep.subr.mxu0 0.0
    %2435 = vmatpush1.msra.mxu0 0.0
    %2436 = vmatprep.subr.mxu0 0.0
    %2437 = vmatpush1.msra.mxu0 0.0
    %2438 = vmatprep.subr.mxu0 0.0
    %2439 = vmatpush1.msra.mxu0 0.0
    %2440 = vmatprep.subr.mxu0 0.0
    %2441 = vmatpush1.msra.mxu0 0.0
    %2442 = vmatprep.mubr.f32.mxu0 0.0
    %2443 = vmatmul.mubr.f32.gmra.mrb[0].mxu0 %v2376
    %v2444 = vpop.f32.mrb[0].mxu0
    %v2445 = vadd.f32 0.0, %v2444
    %v2446 = vpop.f32.mrb[0].mxu0
    %2447 = vdwg.mxu0
    %2448 = vmatprep.subr.mxu0 0.0
    %2449 = vmatpush1.msra.mxu0 %v384
    %2450 = vmatprep.subr.mxu0 0.0
    %2451 = vmatpush1.msra.mxu0 %v385
    %2452 = vmatprep.subr.mxu0 0.0
    %2453 = vmatpush1.msra.mxu0 %v386
    %2454 = vmatprep.subr.mxu0 0.0
    %2455 = vmatpush1.msra.mxu0 %v387
    %2456 = vmatprep.subr.mxu0 0.0
    %2457 = vmatpush1.msra.mxu0 0.0
    %2458 = vmatprep.subr.mxu0 0.0
    %2459 = vmatpush1.msra.mxu0 0.0
    %2460 = vmatprep.subr.mxu0 0.0
    %2461 = vmatpush1.msra.mxu0 0.0
    %2462 = vmatprep.subr.mxu0 0.0
    %2463 = vmatpush1.msra.mxu0 0.0
    %2464 = vmatprep.subr.mxu0 0.0
    %2465 = vmatpush1.msra.mxu0 0.0
    %2466 = vmatprep.subr.mxu0 0.0
    %2467 = vmatpush1.msra.mxu0 0.0
    %2468 = vmatprep.subr.mxu0 0.0
    %2469 = vmatpush1.msra.mxu0 0.0
    %2470 = vmatprep.subr.mxu0 0.0
    %2471 = vmatpush1.msra.mxu0 0.0
    %2472 = vmatprep.subr.mxu0 0.0
    %2473 = vmatpush1.msra.mxu0 0.0
    %2474 = vmatprep.subr.mxu0 0.0
    %2475 = vmatpush1.msra.mxu0 0.0
    %2476 = vmatprep.subr.mxu0 0.0
    %2477 = vmatpush1.msra.mxu0 0.0
    %2478 = vmatprep.subr.mxu0 0.0
    %2479 = vmatpush1.msra.mxu0 0.0
    %2480 = vmatprep.subr.mxu0 0.0
    %2481 = vmatpush1.msra.mxu0 0.0
    %2482 = vmatprep.subr.mxu0 0.0
    %2483 = vmatpush1.msra.mxu0 0.0
    %2484 = vmatprep.subr.mxu0 0.0
    %2485 = vmatpush1.msra.mxu0 0.0
    %2486 = vmatprep.subr.mxu0 0.0
    %2487 = vmatpush1.msra.mxu0 0.0
    %2488 = vmatprep.subr.mxu0 0.0
    %2489 = vmatpush1.msra.mxu0 0.0
    %2490 = vmatprep.subr.mxu0 0.0
    %2491 = vmatpush1.msra.mxu0 0.0
    %2492 = vmatprep.subr.mxu0 0.0
    %2493 = vmatpush1.msra.mxu0 0.0
    %2494 = vmatprep.subr.mxu0 0.0
    %2495 = vmatpush1.msra.mxu0 0.0
    %2496 = vmatprep.subr.mxu0 0.0
    %2497 = vmatpush1.msra.mxu0 0.0
    %2498 = vmatprep.subr.mxu0 0.0
    %2499 = vmatpush1.msra.mxu0 0.0
    %2500 = vmatprep.subr.mxu0 0.0
    %2501 = vmatpush1.msra.mxu0 0.0
    %2502 = vmatprep.subr.mxu0 0.0
    %2503 = vmatpush1.msra.mxu0 0.0
    %2504 = vmatprep.subr.mxu0 0.0
    %2505 = vmatpush1.msra.mxu0 0.0
    %2506 = vmatprep.subr.mxu0 0.0
    %2507 = vmatpush1.msra.mxu0 0.0
    %2508 = vmatprep.subr.mxu0 0.0
    %2509 = vmatpush1.msra.mxu0 0.0
    %2510 = vmatprep.subr.mxu0 0.0
    %2511 = vmatpush1.msra.mxu0 0.0
    %2512 = vmatprep.mubr.f32.mxu0 0.0
    %2513 = vmatmul.mubr.f32.gmra.mrb[0].mxu0 %v2216
    %v2514 = vpop.f32.mrb[0].mxu0
    %v2515 = vadd.f32 %v2445, %v2514
    %v2516 = vpop.f32.mrb[0].mxu0
    %2517 = vdwg.mxu0
    %v2518 = vadd.f32 %v2515, %v540
    %v2519 = vmul.f32 %v2518, 0.5
    %v2520 = vtanh.pop %v2519
    %v2521 = vadd.f32 %v2520, 1.0
    %v2522 = vmul.f32 %v2521, 0.5
    %v2523 = vtanh.pop %v2518
    %v2524 = vmul.f32 %v2522, %v2206
    %2526 = vrot.lane.b32.xlu0 %v2523, 64
    %v2527 = vpop.permute.xlu0 %2526
    %v2529 = vmul.f32 %v2522, %v2527
    %2531 = vrot.lane.b32.xlu0 %v2529, 32
    %v2532 = vpop.permute.xlu0 %2531
    %v2534 = vadd.f32 %v2524, %v2532
    %v2535 = vtanh.pop %v2534
    %2537 = vrot.lane.b32.xlu0 %v2535, 64
    %v2538 = vpop.permute.xlu0 %2537
    %v2540 = vmul.f32 %v2522, %v2538
    %2542 = vrot.lane.b32.xlu0 %v2540, 32
    %v2543 = vpop.permute.xlu0 %2542
    %v2544 = vsel %vm281, %v2543, 0
    %2546 = vmatprep.subr.mxu0 0.0
    %2547 = vmatpush1.xpose.msra.mxu0 %v571
    %2548 = vmatprep.subr.mxu0 0.0
    %2549 = vmatpush1.xpose.msra.mxu0 %v574
    %2550 = vmatprep.subr.mxu0 0.0
    %2551 = vmatpush1.xpose.msra.mxu0 0.0
    %2552 = vmatprep.subr.mxu0 0.0
    %2553 = vmatpush1.xpose.msra.mxu0 0.0
    %2554 = vmatprep.subr.mxu0 0.0
    %2555 = vmatpush1.xpose.msra.mxu0 0.0
    %2556 = vmatprep.subr.mxu0 0.0
    %2557 = vmatpush1.xpose.msra.mxu0 0.0
    %2558 = vmatprep.subr.mxu0 0.0
    %2559 = vmatpush1.xpose.msra.mxu0 0.0
    %2560 = vmatprep.subr.mxu0 0.0
    %2561 = vmatpush1.xpose.msra.mxu0 0.0
    %2562 = vmatprep.subr.mxu0 0.0
    %2563 = vmatpush1.xpose.msra.mxu0 0.0
    %2564 = vmatprep.subr.mxu0 0.0
    %2565 = vmatpush1.xpose.msra.mxu0 0.0
    %2566 = vmatprep.subr.mxu0 0.0
    %2567 = vmatpush1.xpose.msra.mxu0 0.0
    %2568 = vmatprep.subr.mxu0 0.0
    %2569 = vmatpush1.xpose.msra.mxu0 0.0
    %2570 = vmatprep.subr.mxu0 0.0
    %2571 = vmatpush1.xpose.msra.mxu0 0.0
    %2572 = vmatprep.subr.mxu0 0.0
    %2573 = vmatpush1.xpose.msra.mxu0 0.0
    %2574 = vmatprep.subr.mxu0 0.0
    %2575 = vmatpush1.xpose.msra.mxu0 0.0
    %2576 = vmatprep.subr.mxu0 0.0
    %2577 = vmatpush1.xpose.msra.mxu0 0.0
    %2578 = vmatprep.subr.mxu0 0.0
    %2579 = vmatpush1.xpose.msra.mxu0 0.0
    %2580 = vmatprep.subr.mxu0 0.0
    %2581 = vmatpush1.xpose.msra.mxu0 0.0
    %2582 = vmatprep.subr.mxu0 0.0
    %2583 = vmatpush1.xpose.msra.mxu0 0.0
    %2584 = vmatprep.subr.mxu0 0.0
    %2585 = vmatpush1.xpose.msra.mxu0 0.0
    %2586 = vmatprep.subr.mxu0 0.0
    %2587 = vmatpush1.xpose.msra.mxu0 0.0
    %2588 = vmatprep.subr.mxu0 0.0
    %2589 = vmatpush1.xpose.msra.mxu0 0.0
    %2590 = vmatprep.subr.mxu0 0.0
    %2591 = vmatpush1.xpose.msra.mxu0 0.0
    %2592 = vmatprep.subr.mxu0 0.0
    %2593 = vmatpush1.xpose.msra.mxu0 0.0
    %2594 = vmatprep.subr.mxu0 0.0
    %2595 = vmatpush1.xpose.msra.mxu0 0.0
    %2596 = vmatprep.subr.mxu0 0.0
    %2597 = vmatpush1.xpose.msra.mxu0 0.0
    %2598 = vmatprep.subr.mxu0 0.0
    %2599 = vmatpush1.xpose.msra.mxu0 0.0
    %2600 = vmatprep.subr.mxu0 0.0
    %2601 = vmatpush1.xpose.msra.mxu0 0.0
    %2602 = vmatprep.subr.mxu0 0.0
    %2603 = vmatpush1.xpose.msra.mxu0 0.0
    %2604 = vmatprep.subr.mxu0 0.0
    %2605 = vmatpush1.xpose.msra.mxu0 0.0
    %2606 = vmatprep.subr.mxu0 0.0
    %2607 = vmatpush1.xpose.msra.mxu0 0.0
    %2608 = vmatprep.subr.mxu0 0.0
    %2609 = vmatpush1.xpose.msra.mxu0 0.0
    %2610 = vmatprep.mubr.f32.mxu0 0.0
    %2611 = vmatmul.mubr.f32.gmra.mrb[0].mxu0 %v2544
    %v2612 = vpop.f32.mrb[0].mxu0
    %v2613 = vadd.f32 0.0, %v2612
    %v2614 = vpop.f32.mrb[0].mxu0
    %2615 = vdwg.mxu0
    %v2616 = vsel %vm646, %v2613, -1e+30
    %v2617 = vsel %vm648, %v2616, -inf
    %2618 = vmax.xlane.f32.xlu0 %v2617
    %v2619 = vpop.xlane.xlu0 %2618
    %v2620 = vsub.f32 %v2616, %v2619
    %v2621 = vmul.f32 %v2620, 1.442695
    %v2622 = vpow.pop %v2621
    %v2623 = vmul.f32 %v2622, %v383
    %v2624 = vsel %vm648, %v2623, 0.0
    %2625 = vadd.xlane.f32.xlu0 %v2624
    %v2626 = vpop.xlane.xlu0 %2625
    %v2627 = vmax.f32 %v2626, 1e-30
    %v2628 = vrcp.pop %v2627
    %v2629 = vmul.f32 %v2623, %v2628
    %v2631 = vsel %vm213, %v2629, 0
    %2633 = vmatprep.subr.mxu0 0.0
    %2634 = vmatpush1.msra.mxu0 %v381
    %2635 = vmatprep.subr.mxu0 0.0
    %2636 = vmatpush1.msra.mxu0 %v382
    %2637 = vmatprep.subr.mxu0 0.0
    %2638 = vmatpush1.msra.mxu0 0.0
    %2639 = vmatprep.subr.mxu0 0.0
    %2640 = vmatpush1.msra.mxu0 0.0
    %2641 = vmatprep.subr.mxu0 0.0
    %2642 = vmatpush1.msra.mxu0 0.0
    %2643 = vmatprep.subr.mxu0 0.0
    %2644 = vmatpush1.msra.mxu0 0.0
    %2645 = vmatprep.subr.mxu0 0.0
    %2646 = vmatpush1.msra.mxu0 0.0
    %2647 = vmatprep.subr.mxu0 0.0
    %2648 = vmatpush1.msra.mxu0 0.0
    %2649 = vmatprep.subr.mxu0 0.0
    %2650 = vmatpush1.msra.mxu0 0.0
    %2651 = vmatprep.subr.mxu0 0.0
    %2652 = vmatpush1.msra.mxu0 0.0
    %2653 = vmatprep.subr.mxu0 0.0
    %2654 = vmatpush1.msra.mxu0 0.0
    %2655 = vmatprep.subr.mxu0 0.0
    %2656 = vmatpush1.msra.mxu0 0.0
    %2657 = vmatprep.subr.mxu0 0.0
    %2658 = vmatpush1.msra.mxu0 0.0
    %2659 = vmatprep.subr.mxu0 0.0
    %2660 = vmatpush1.msra.mxu0 0.0
    %2661 = vmatprep.subr.mxu0 0.0
    %2662 = vmatpush1.msra.mxu0 0.0
    %2663 = vmatprep.subr.mxu0 0.0
    %2664 = vmatpush1.msra.mxu0 0.0
    %2665 = vmatprep.subr.mxu0 0.0
    %2666 = vmatpush1.msra.mxu0 0.0
    %2667 = vmatprep.subr.mxu0 0.0
    %2668 = vmatpush1.msra.mxu0 0.0
    %2669 = vmatprep.subr.mxu0 0.0
    %2670 = vmatpush1.msra.mxu0 0.0
    %2671 = vmatprep.subr.mxu0 0.0
    %2672 = vmatpush1.msra.mxu0 0.0
    %2673 = vmatprep.subr.mxu0 0.0
    %2674 = vmatpush1.msra.mxu0 0.0
    %2675 = vmatprep.subr.mxu0 0.0
    %2676 = vmatpush1.msra.mxu0 0.0
    %2677 = vmatprep.subr.mxu0 0.0
    %2678 = vmatpush1.msra.mxu0 0.0
    %2679 = vmatprep.subr.mxu0 0.0
    %2680 = vmatpush1.msra.mxu0 0.0
    %2681 = vmatprep.subr.mxu0 0.0
    %2682 = vmatpush1.msra.mxu0 0.0
    %2683 = vmatprep.subr.mxu0 0.0
    %2684 = vmatpush1.msra.mxu0 0.0
    %2685 = vmatprep.subr.mxu0 0.0
    %2686 = vmatpush1.msra.mxu0 0.0
    %2687 = vmatprep.subr.mxu0 0.0
    %2688 = vmatpush1.msra.mxu0 0.0
    %2689 = vmatprep.subr.mxu0 0.0
    %2690 = vmatpush1.msra.mxu0 0.0
    %2691 = vmatprep.subr.mxu0 0.0
    %2692 = vmatpush1.msra.mxu0 0.0
    %2693 = vmatprep.subr.mxu0 0.0
    %2694 = vmatpush1.msra.mxu0 0.0
    %2695 = vmatprep.subr.mxu0 0.0
    %2696 = vmatpush1.msra.mxu0 0.0
    %2697 = vmatprep.mubr.f32.mxu0 0.0
    %2698 = vmatmul.mubr.f32.gmra.mrb[0].mxu0 %v2631
    %v2699 = vpop.f32.mrb[0].mxu0
    %v2700 = vadd.f32 0.0, %v2699
    %v2701 = vpop.f32.mrb[0].mxu0
    %2702 = vdwg.mxu0
    %v2704 = vsel %vm281, %v2700, 0
    %2706 = vmatprep.subr.mxu0 0.0
    %2707 = vmatpush1.msra.mxu0 %v388
    %2708 = vmatprep.subr.mxu0 0.0
    %2709 = vmatpush1.msra.mxu0 %v389
    %2710 = vmatprep.subr.mxu0 0.0
    %2711 = vmatpush1.msra.mxu0 %v390
    %2712 = vmatprep.subr.mxu0 0.0
    %2713 = vmatpush1.msra.mxu0 %v391
    %2714 = vmatprep.subr.mxu0 0.0
    %2715 = vmatpush1.msra.mxu0 0.0
    %2716 = vmatprep.subr.mxu0 0.0
    %2717 = vmatpush1.msra.mxu0 0.0
    %2718 = vmatprep.subr.mxu0 0.0
    %2719 = vmatpush1.msra.mxu0 0.0
    %2720 = vmatprep.subr.mxu0 0.0
    %2721 = vmatpush1.msra.mxu0 0.0
    %2722 = vmatprep.subr.mxu0 0.0
    %2723 = vmatpush1.msra.mxu0 0.0
    %2724 = vmatprep.subr.mxu0 0.0
    %2725 = vmatpush1.msra.mxu0 0.0
    %2726 = vmatprep.subr.mxu0 0.0
    %2727 = vmatpush1.msra.mxu0 0.0
    %2728 = vmatprep.subr.mxu0 0.0
    %2729 = vmatpush1.msra.mxu0 0.0
    %2730 = vmatprep.subr.mxu0 0.0
    %2731 = vmatpush1.msra.mxu0 0.0
    %2732 = vmatprep.subr.mxu0 0.0
    %2733 = vmatpush1.msra.mxu0 0.0
    %2734 = vmatprep.subr.mxu0 0.0
    %2735 = vmatpush1.msra.mxu0 0.0
    %2736 = vmatprep.subr.mxu0 0.0
    %2737 = vmatpush1.msra.mxu0 0.0
    %2738 = vmatprep.subr.mxu0 0.0
    %2739 = vmatpush1.msra.mxu0 0.0
    %2740 = vmatprep.subr.mxu0 0.0
    %2741 = vmatpush1.msra.mxu0 0.0
    %2742 = vmatprep.subr.mxu0 0.0
    %2743 = vmatpush1.msra.mxu0 0.0
    %2744 = vmatprep.subr.mxu0 0.0
    %2745 = vmatpush1.msra.mxu0 0.0
    %2746 = vmatprep.subr.mxu0 0.0
    %2747 = vmatpush1.msra.mxu0 0.0
    %2748 = vmatprep.subr.mxu0 0.0
    %2749 = vmatpush1.msra.mxu0 0.0
    %2750 = vmatprep.subr.mxu0 0.0
    %2751 = vmatpush1.msra.mxu0 0.0
    %2752 = vmatprep.subr.mxu0 0.0
    %2753 = vmatpush1.msra.mxu0 0.0
    %2754 = vmatprep.subr.mxu0 0.0
    %2755 = vmatpush1.msra.mxu0 0.0
    %2756 = vmatprep.subr.mxu0 0.0
    %2757 = vmatpush1.msra.mxu0 0.0
    %2758 = vmatprep.subr.mxu0 0.0
    %2759 = vmatpush1.msra.mxu0 0.0
    %2760 = vmatprep.subr.mxu0 0.0
    %2761 = vmatpush1.msra.mxu0 0.0
    %2762 = vmatprep.subr.mxu0 0.0
    %2763 = vmatpush1.msra.mxu0 0.0
    %2764 = vmatprep.subr.mxu0 0.0
    %2765 = vmatpush1.msra.mxu0 0.0
    %2766 = vmatprep.subr.mxu0 0.0
    %2767 = vmatpush1.msra.mxu0 0.0
    %2768 = vmatprep.subr.mxu0 0.0
    %2769 = vmatpush1.msra.mxu0 0.0
    %2770 = vmatprep.mubr.f32.mxu0 0.0
    %2771 = vmatmul.mubr.f32.gmra.mrb[0].mxu0 %v2704
    %v2772 = vpop.f32.mrb[0].mxu0
    %v2773 = vadd.f32 0.0, %v2772
    %v2774 = vpop.f32.mrb[0].mxu0
    %2775 = vdwg.mxu0
    %2776 = vmatprep.subr.mxu0 0.0
    %2777 = vmatpush1.msra.mxu0 %v384
    %2778 = vmatprep.subr.mxu0 0.0
    %2779 = vmatpush1.msra.mxu0 %v385
    %2780 = vmatprep.subr.mxu0 0.0
    %2781 = vmatpush1.msra.mxu0 %v386
    %2782 = vmatprep.subr.mxu0 0.0
    %2783 = vmatpush1.msra.mxu0 %v387
    %2784 = vmatprep.subr.mxu0 0.0
    %2785 = vmatpush1.msra.mxu0 0.0
    %2786 = vmatprep.subr.mxu0 0.0
    %2787 = vmatpush1.msra.mxu0 0.0
    %2788 = vmatprep.subr.mxu0 0.0
    %2789 = vmatpush1.msra.mxu0 0.0
    %2790 = vmatprep.subr.mxu0 0.0
    %2791 = vmatpush1.msra.mxu0 0.0
    %2792 = vmatprep.subr.mxu0 0.0
    %2793 = vmatpush1.msra.mxu0 0.0
    %2794 = vmatprep.subr.mxu0 0.0
    %2795 = vmatpush1.msra.mxu0 0.0
    %2796 = vmatprep.subr.mxu0 0.0
    %2797 = vmatpush1.msra.mxu0 0.0
    %2798 = vmatprep.subr.mxu0 0.0
    %2799 = vmatpush1.msra.mxu0 0.0
    %2800 = vmatprep.subr.mxu0 0.0
    %2801 = vmatpush1.msra.mxu0 0.0
    %2802 = vmatprep.subr.mxu0 0.0
    %2803 = vmatpush1.msra.mxu0 0.0
    %2804 = vmatprep.subr.mxu0 0.0
    %2805 = vmatpush1.msra.mxu0 0.0
    %2806 = vmatprep.subr.mxu0 0.0
    %2807 = vmatpush1.msra.mxu0 0.0
    %2808 = vmatprep.subr.mxu0 0.0
    %2809 = vmatpush1.msra.mxu0 0.0
    %2810 = vmatprep.subr.mxu0 0.0
    %2811 = vmatpush1.msra.mxu0 0.0
    %2812 = vmatprep.subr.mxu0 0.0
    %2813 = vmatpush1.msra.mxu0 0.0
    %2814 = vmatprep.subr.mxu0 0.0
    %2815 = vmatpush1.msra.mxu0 0.0
    %2816 = vmatprep.subr.mxu0 0.0
    %2817 = vmatpush1.msra.mxu0 0.0
    %2818 = vmatprep.subr.mxu0 0.0
    %2819 = vmatpush1.msra.mxu0 0.0
    %2820 = vmatprep.subr.mxu0 0.0
    %2821 = vmatpush1.msra.mxu0 0.0
    %2822 = vmatprep.subr.mxu0 0.0
    %2823 = vmatpush1.msra.mxu0 0.0
    %2824 = vmatprep.subr.mxu0 0.0
    %2825 = vmatpush1.msra.mxu0 0.0
    %2826 = vmatprep.subr.mxu0 0.0
    %2827 = vmatpush1.msra.mxu0 0.0
    %2828 = vmatprep.subr.mxu0 0.0
    %2829 = vmatpush1.msra.mxu0 0.0
    %2830 = vmatprep.subr.mxu0 0.0
    %2831 = vmatpush1.msra.mxu0 0.0
    %2832 = vmatprep.subr.mxu0 0.0
    %2833 = vmatpush1.msra.mxu0 0.0
    %2834 = vmatprep.subr.mxu0 0.0
    %2835 = vmatpush1.msra.mxu0 0.0
    %2836 = vmatprep.subr.mxu0 0.0
    %2837 = vmatpush1.msra.mxu0 0.0
    %2838 = vmatprep.subr.mxu0 0.0
    %2839 = vmatpush1.msra.mxu0 0.0
    %2840 = vmatprep.mubr.f32.mxu0 0.0
    %2841 = vmatmul.mubr.f32.gmra.mrb[0].mxu0 %v2544
    %v2842 = vpop.f32.mrb[0].mxu0
    %v2843 = vadd.f32 %v2773, %v2842
    %v2844 = vpop.f32.mrb[0].mxu0
    %2845 = vdwg.mxu0
    %v2846 = vadd.f32 %v2843, %v540
    %v2847 = vmul.f32 %v2846, 0.5
    %v2848 = vtanh.pop %v2847
    %v2849 = vadd.f32 %v2848, 1.0
    %v2850 = vmul.f32 %v2849, 0.5
    %v2851 = vtanh.pop %v2846
    %v2852 = vmul.f32 %v2850, %v2534
    %2854 = vrot.lane.b32.xlu0 %v2851, 64
    %v2855 = vpop.permute.xlu0 %2854
    %v2857 = vmul.f32 %v2850, %v2855
    %2859 = vrot.lane.b32.xlu0 %v2857, 32
    %v2860 = vpop.permute.xlu0 %2859
    %v2862 = vadd.f32 %v2852, %v2860
    %v2863 = vtanh.pop %v2862
    %2865 = vrot.lane.b32.xlu0 %v2863, 64
    %v2866 = vpop.permute.xlu0 %2865
    %v2868 = vmul.f32 %v2850, %v2866
    %2870 = vrot.lane.b32.xlu0 %v2868, 32
    %v2871 = vpop.permute.xlu0 %2870
    %v2872 = vsel %vm281, %v2871, 0
    %2874 = vmatprep.subr.mxu0 0.0
    %2875 = vmatpush1.xpose.msra.mxu0 %v571
    %2876 = vmatprep.subr.mxu0 0.0
    %2877 = vmatpush1.xpose.msra.mxu0 %v574
    %2878 = vmatprep.subr.mxu0 0.0
    %2879 = vmatpush1.xpose.msra.mxu0 0.0
    %2880 = vmatprep.subr.mxu0 0.0
    %2881 = vmatpush1.xpose.msra.mxu0 0.0
    %2882 = vmatprep.subr.mxu0 0.0
    %2883 = vmatpush1.xpose.msra.mxu0 0.0
    %2884 = vmatprep.subr.mxu0 0.0
    %2885 = vmatpush1.xpose.msra.mxu0 0.0
    %2886 = vmatprep.subr.mxu0 0.0
    %2887 = vmatpush1.xpose.msra.mxu0 0.0
    %2888 = vmatprep.subr.mxu0 0.0
    %2889 = vmatpush1.xpose.msra.mxu0 0.0
    %2890 = vmatprep.subr.mxu0 0.0
    %2891 = vmatpush1.xpose.msra.mxu0 0.0
    %2892 = vmatprep.subr.mxu0 0.0
    %2893 = vmatpush1.xpose.msra.mxu0 0.0
    %2894 = vmatprep.subr.mxu0 0.0
    %2895 = vmatpush1.xpose.msra.mxu0 0.0
    %2896 = vmatprep.subr.mxu0 0.0
    %2897 = vmatpush1.xpose.msra.mxu0 0.0
    %2898 = vmatprep.subr.mxu0 0.0
    %2899 = vmatpush1.xpose.msra.mxu0 0.0
    %2900 = vmatprep.subr.mxu0 0.0
    %2901 = vmatpush1.xpose.msra.mxu0 0.0
    %2902 = vmatprep.subr.mxu0 0.0
    %2903 = vmatpush1.xpose.msra.mxu0 0.0
    %2904 = vmatprep.subr.mxu0 0.0
    %2905 = vmatpush1.xpose.msra.mxu0 0.0
    %2906 = vmatprep.subr.mxu0 0.0
    %2907 = vmatpush1.xpose.msra.mxu0 0.0
    %2908 = vmatprep.subr.mxu0 0.0
    %2909 = vmatpush1.xpose.msra.mxu0 0.0
    %2910 = vmatprep.subr.mxu0 0.0
    %2911 = vmatpush1.xpose.msra.mxu0 0.0
    %2912 = vmatprep.subr.mxu0 0.0
    %2913 = vmatpush1.xpose.msra.mxu0 0.0
    %2914 = vmatprep.subr.mxu0 0.0
    %2915 = vmatpush1.xpose.msra.mxu0 0.0
    %2916 = vmatprep.subr.mxu0 0.0
    %2917 = vmatpush1.xpose.msra.mxu0 0.0
    %2918 = vmatprep.subr.mxu0 0.0
    %2919 = vmatpush1.xpose.msra.mxu0 0.0
    %2920 = vmatprep.subr.mxu0 0.0
    %2921 = vmatpush1.xpose.msra.mxu0 0.0
    %2922 = vmatprep.subr.mxu0 0.0
    %2923 = vmatpush1.xpose.msra.mxu0 0.0
    %2924 = vmatprep.subr.mxu0 0.0
    %2925 = vmatpush1.xpose.msra.mxu0 0.0
    %2926 = vmatprep.subr.mxu0 0.0
    %2927 = vmatpush1.xpose.msra.mxu0 0.0
    %2928 = vmatprep.subr.mxu0 0.0
    %2929 = vmatpush1.xpose.msra.mxu0 0.0
    %2930 = vmatprep.subr.mxu0 0.0
    %2931 = vmatpush1.xpose.msra.mxu0 0.0
    %2932 = vmatprep.subr.mxu0 0.0
    %2933 = vmatpush1.xpose.msra.mxu0 0.0
    %2934 = vmatprep.subr.mxu0 0.0
    %2935 = vmatpush1.xpose.msra.mxu0 0.0
    %2936 = vmatprep.subr.mxu0 0.0
    %2937 = vmatpush1.xpose.msra.mxu0 0.0
    %2938 = vmatprep.mubr.f32.mxu0 0.0
    %2939 = vmatmul.mubr.f32.gmra.mrb[0].mxu0 %v2872
    %v2940 = vpop.f32.mrb[0].mxu0
    %v2941 = vadd.f32 0.0, %v2940
    %v2942 = vpop.f32.mrb[0].mxu0
    %2943 = vdwg.mxu0
    %v2944 = vsel %vm646, %v2941, -1e+30
    %v2945 = vsel %vm648, %v2944, -inf
    %2946 = vmax.xlane.f32.xlu0 %v2945
    %v2947 = vpop.xlane.xlu0 %2946
    %v2948 = vsub.f32 %v2944, %v2947
    %v2949 = vmul.f32 %v2948, 1.442695
    %v2950 = vpow.pop %v2949
    %v2951 = vmul.f32 %v2950, %v383
    %v2952 = vsel %vm648, %v2951, 0.0
    %2953 = vadd.xlane.f32.xlu0 %v2952
    %v2954 = vpop.xlane.xlu0 %2953
    %v2955 = vmax.f32 %v2954, 1e-30
    %v2956 = vrcp.pop %v2955
    %v2957 = vmul.f32 %v2951, %v2956
    %v2959 = vsel %vm213, %v2957, 0
    %2961 = vmatprep.subr.mxu0 0.0
    %2962 = vmatpush1.msra.mxu0 %v381
    %2963 = vmatprep.subr.mxu0 0.0
    %2964 = vmatpush1.msra.mxu0 %v382
    %2965 = vmatprep.subr.mxu0 0.0
    %2966 = vmatpush1.msra.mxu0 0.0
    %2967 = vmatprep.subr.mxu0 0.0
    %2968 = vmatpush1.msra.mxu0 0.0
    %2969 = vmatprep.subr.mxu0 0.0
    %2970 = vmatpush1.msra.mxu0 0.0
    %2971 = vmatprep.subr.mxu0 0.0
    %2972 = vmatpush1.msra.mxu0 0.0
    %2973 = vmatprep.subr.mxu0 0.0
    %2974 = vmatpush1.msra.mxu0 0.0
    %2975 = vmatprep.subr.mxu0 0.0
    %2976 = vmatpush1.msra.mxu0 0.0
    %2977 = vmatprep.subr.mxu0 0.0
    %2978 = vmatpush1.msra.mxu0 0.0
    %2979 = vmatprep.subr.mxu0 0.0
    %2980 = vmatpush1.msra.mxu0 0.0
    %2981 = vmatprep.subr.mxu0 0.0
    %2982 = vmatpush1.msra.mxu0 0.0
    %2983 = vmatprep.subr.mxu0 0.0
    %2984 = vmatpush1.msra.mxu0 0.0
    %2985 = vmatprep.subr.mxu0 0.0
    %2986 = vmatpush1.msra.mxu0 0.0
    %2987 = vmatprep.subr.mxu0 0.0
    %2988 = vmatpush1.msra.mxu0 0.0
    %2989 = vmatprep.subr.mxu0 0.0
    %2990 = vmatpush1.msra.mxu0 0.0
    %2991 = vmatprep.subr.mxu0 0.0
    %2992 = vmatpush1.msra.mxu0 0.0
    %2993 = vmatprep.subr.mxu0 0.0
    %2994 = vmatpush1.msra.mxu0 0.0
    %2995 = vmatprep.subr.mxu0 0.0
    %2996 = vmatpush1.msra.mxu0 0.0
    %2997 = vmatprep.subr.mxu0 0.0
    %2998 = vmatpush1.msra.mxu0 0.0
    %2999 = vmatprep.subr.mxu0 0.0
    %3000 = vmatpush1.msra.mxu0 0.0
    %3001 = vmatprep.subr.mxu0 0.0
    %3002 = vmatpush1.msra.mxu0 0.0
    %3003 = vmatprep.subr.mxu0 0.0
    %3004 = vmatpush1.msra.mxu0 0.0
    %3005 = vmatprep.subr.mxu0 0.0
    %3006 = vmatpush1.msra.mxu0 0.0
    %3007 = vmatprep.subr.mxu0 0.0
    %3008 = vmatpush1.msra.mxu0 0.0
    %3009 = vmatprep.subr.mxu0 0.0
    %3010 = vmatpush1.msra.mxu0 0.0
    %3011 = vmatprep.subr.mxu0 0.0
    %3012 = vmatpush1.msra.mxu0 0.0
    %3013 = vmatprep.subr.mxu0 0.0
    %3014 = vmatpush1.msra.mxu0 0.0
    %3015 = vmatprep.subr.mxu0 0.0
    %3016 = vmatpush1.msra.mxu0 0.0
    %3017 = vmatprep.subr.mxu0 0.0
    %3018 = vmatpush1.msra.mxu0 0.0
    %3019 = vmatprep.subr.mxu0 0.0
    %3020 = vmatpush1.msra.mxu0 0.0
    %3021 = vmatprep.subr.mxu0 0.0
    %3022 = vmatpush1.msra.mxu0 0.0
    %3023 = vmatprep.subr.mxu0 0.0
    %3024 = vmatpush1.msra.mxu0 0.0
    %3025 = vmatprep.mubr.f32.mxu0 0.0
    %3026 = vmatmul.mubr.f32.gmra.mrb[0].mxu0 %v2959
    %v3027 = vpop.f32.mrb[0].mxu0
    %v3028 = vadd.f32 0.0, %v3027
    %v3029 = vpop.f32.mrb[0].mxu0
    %3030 = vdwg.mxu0
    %v3032 = vsel %vm281, %v3028, 0
    %3034 = vmatprep.subr.mxu0 0.0
    %3035 = vmatpush1.msra.mxu0 %v388
    %3036 = vmatprep.subr.mxu0 0.0
    %3037 = vmatpush1.msra.mxu0 %v389
    %3038 = vmatprep.subr.mxu0 0.0
    %3039 = vmatpush1.msra.mxu0 %v390
    %3040 = vmatprep.subr.mxu0 0.0
    %3041 = vmatpush1.msra.mxu0 %v391
    %3042 = vmatprep.subr.mxu0 0.0
    %3043 = vmatpush1.msra.mxu0 0.0
    %3044 = vmatprep.subr.mxu0 0.0
    %3045 = vmatpush1.msra.mxu0 0.0
    %3046 = vmatprep.subr.mxu0 0.0
    %3047 = vmatpush1.msra.mxu0 0.0
    %3048 = vmatprep.subr.mxu0 0.0
    %3049 = vmatpush1.msra.mxu0 0.0
    %3050 = vmatprep.subr.mxu0 0.0
    %3051 = vmatpush1.msra.mxu0 0.0
    %3052 = vmatprep.subr.mxu0 0.0
    %3053 = vmatpush1.msra.mxu0 0.0
    %3054 = vmatprep.subr.mxu0 0.0
    %3055 = vmatpush1.msra.mxu0 0.0
    %3056 = vmatprep.subr.mxu0 0.0
    %3057 = vmatpush1.msra.mxu0 0.0
    %3058 = vmatprep.subr.mxu0 0.0
    %3059 = vmatpush1.msra.mxu0 0.0
    %3060 = vmatprep.subr.mxu0 0.0
    %3061 = vmatpush1.msra.mxu0 0.0
    %3062 = vmatprep.subr.mxu0 0.0
    %3063 = vmatpush1.msra.mxu0 0.0
    %3064 = vmatprep.subr.mxu0 0.0
    %3065 = vmatpush1.msra.mxu0 0.0
    %3066 = vmatprep.subr.mxu0 0.0
    %3067 = vmatpush1.msra.mxu0 0.0
    %3068 = vmatprep.subr.mxu0 0.0
    %3069 = vmatpush1.msra.mxu0 0.0
    %3070 = vmatprep.subr.mxu0 0.0
    %3071 = vmatpush1.msra.mxu0 0.0
    %3072 = vmatprep.subr.mxu0 0.0
    %3073 = vmatpush1.msra.mxu0 0.0
    %3074 = vmatprep.subr.mxu0 0.0
    %3075 = vmatpush1.msra.mxu0 0.0
    %3076 = vmatprep.subr.mxu0 0.0
    %3077 = vmatpush1.msra.mxu0 0.0
    %3078 = vmatprep.subr.mxu0 0.0
    %3079 = vmatpush1.msra.mxu0 0.0
    %3080 = vmatprep.subr.mxu0 0.0
    %3081 = vmatpush1.msra.mxu0 0.0
    %3082 = vmatprep.subr.mxu0 0.0
    %3083 = vmatpush1.msra.mxu0 0.0
    %3084 = vmatprep.subr.mxu0 0.0
    %3085 = vmatpush1.msra.mxu0 0.0
    %3086 = vmatprep.subr.mxu0 0.0
    %3087 = vmatpush1.msra.mxu0 0.0
    %3088 = vmatprep.subr.mxu0 0.0
    %3089 = vmatpush1.msra.mxu0 0.0
    %3090 = vmatprep.subr.mxu0 0.0
    %3091 = vmatpush1.msra.mxu0 0.0
    %3092 = vmatprep.subr.mxu0 0.0
    %3093 = vmatpush1.msra.mxu0 0.0
    %3094 = vmatprep.subr.mxu0 0.0
    %3095 = vmatpush1.msra.mxu0 0.0
    %3096 = vmatprep.subr.mxu0 0.0
    %3097 = vmatpush1.msra.mxu0 0.0
    %3098 = vmatprep.mubr.f32.mxu0 0.0
    %3099 = vmatmul.mubr.f32.gmra.mrb[0].mxu0 %v3032
    %v3100 = vpop.f32.mrb[0].mxu0
    %v3101 = vadd.f32 0.0, %v3100
    %v3102 = vpop.f32.mrb[0].mxu0
    %3103 = vdwg.mxu0
    %3104 = vmatprep.subr.mxu0 0.0
    %3105 = vmatpush1.msra.mxu0 %v384
    %3106 = vmatprep.subr.mxu0 0.0
    %3107 = vmatpush1.msra.mxu0 %v385
    %3108 = vmatprep.subr.mxu0 0.0
    %3109 = vmatpush1.msra.mxu0 %v386
    %3110 = vmatprep.subr.mxu0 0.0
    %3111 = vmatpush1.msra.mxu0 %v387
    %3112 = vmatprep.subr.mxu0 0.0
    %3113 = vmatpush1.msra.mxu0 0.0
    %3114 = vmatprep.subr.mxu0 0.0
    %3115 = vmatpush1.msra.mxu0 0.0
    %3116 = vmatprep.subr.mxu0 0.0
    %3117 = vmatpush1.msra.mxu0 0.0
    %3118 = vmatprep.subr.mxu0 0.0
    %3119 = vmatpush1.msra.mxu0 0.0
    %3120 = vmatprep.subr.mxu0 0.0
    %3121 = vmatpush1.msra.mxu0 0.0
    %3122 = vmatprep.subr.mxu0 0.0
    %3123 = vmatpush1.msra.mxu0 0.0
    %3124 = vmatprep.subr.mxu0 0.0
    %3125 = vmatpush1.msra.mxu0 0.0
    %3126 = vmatprep.subr.mxu0 0.0
    %3127 = vmatpush1.msra.mxu0 0.0
    %3128 = vmatprep.subr.mxu0 0.0
    %3129 = vmatpush1.msra.mxu0 0.0
    %3130 = vmatprep.subr.mxu0 0.0
    %3131 = vmatpush1.msra.mxu0 0.0
    %3132 = vmatprep.subr.mxu0 0.0
    %3133 = vmatpush1.msra.mxu0 0.0
    %3134 = vmatprep.subr.mxu0 0.0
    %3135 = vmatpush1.msra.mxu0 0.0
    %3136 = vmatprep.subr.mxu0 0.0
    %3137 = vmatpush1.msra.mxu0 0.0
    %3138 = vmatprep.subr.mxu0 0.0
    %3139 = vmatpush1.msra.mxu0 0.0
    %3140 = vmatprep.subr.mxu0 0.0
    %3141 = vmatpush1.msra.mxu0 0.0
    %3142 = vmatprep.subr.mxu0 0.0
    %3143 = vmatpush1.msra.mxu0 0.0
    %3144 = vmatprep.subr.mxu0 0.0
    %3145 = vmatpush1.msra.mxu0 0.0
    %3146 = vmatprep.subr.mxu0 0.0
    %3147 = vmatpush1.msra.mxu0 0.0
    %3148 = vmatprep.subr.mxu0 0.0
    %3149 = vmatpush1.msra.mxu0 0.0
    %3150 = vmatprep.subr.mxu0 0.0
    %3151 = vmatpush1.msra.mxu0 0.0
    %3152 = vmatprep.subr.mxu0 0.0
    %3153 = vmatpush1.msra.mxu0 0.0
    %3154 = vmatprep.subr.mxu0 0.0
    %3155 = vmatpush1.msra.mxu0 0.0
    %3156 = vmatprep.subr.mxu0 0.0
    %3157 = vmatpush1.msra.mxu0 0.0
    %3158 = vmatprep.subr.mxu0 0.0
    %3159 = vmatpush1.msra.mxu0 0.0
    %3160 = vmatprep.subr.mxu0 0.0
    %3161 = vmatpush1.msra.mxu0 0.0
    %3162 = vmatprep.subr.mxu0 0.0
    %3163 = vmatpush1.msra.mxu0 0.0
    %3164 = vmatprep.subr.mxu0 0.0
    %3165 = vmatpush1.msra.mxu0 0.0
    %3166 = vmatprep.subr.mxu0 0.0
    %3167 = vmatpush1.msra.mxu0 0.0
    %3168 = vmatprep.mubr.f32.mxu0 0.0
    %3169 = vmatmul.mubr.f32.gmra.mrb[0].mxu0 %v2872
    %v3170 = vpop.f32.mrb[0].mxu0
    %v3171 = vadd.f32 %v3101, %v3170
    %v3172 = vpop.f32.mrb[0].mxu0
    %3173 = vdwg.mxu0
    %v3174 = vadd.f32 %v3171, %v540
    %v3175 = vmul.f32 %v3174, 0.5
    %v3176 = vtanh.pop %v3175
    %v3177 = vadd.f32 %v3176, 1.0
    %v3178 = vmul.f32 %v3177, 0.5
    %v3179 = vtanh.pop %v3174
    %v3180 = vmul.f32 %v3178, %v2862
    %3182 = vrot.lane.b32.xlu0 %v3179, 64
    %v3183 = vpop.permute.xlu0 %3182
    %v3185 = vmul.f32 %v3178, %v3183
    %3187 = vrot.lane.b32.xlu0 %v3185, 32
    %v3188 = vpop.permute.xlu0 %3187
    %v3190 = vadd.f32 %v3180, %v3188
    %v3191 = vtanh.pop %v3190
    %3193 = vrot.lane.b32.xlu0 %v3191, 64
    %v3194 = vpop.permute.xlu0 %3193
    %v3196 = vmul.f32 %v3178, %v3194
    %3198 = vrot.lane.b32.xlu0 %v3196, 32
    %v3199 = vpop.permute.xlu0 %3198
    %v3200 = vsel %vm281, %v3199, 0
    %3202 = vmatprep.subr.mxu0 0.0
    %3203 = vmatpush1.xpose.msra.mxu0 %v571
    %3204 = vmatprep.subr.mxu0 0.0
    %3205 = vmatpush1.xpose.msra.mxu0 %v574
    %3206 = vmatprep.subr.mxu0 0.0
    %3207 = vmatpush1.xpose.msra.mxu0 0.0
    %3208 = vmatprep.subr.mxu0 0.0
    %3209 = vmatpush1.xpose.msra.mxu0 0.0
    %3210 = vmatprep.subr.mxu0 0.0
    %3211 = vmatpush1.xpose.msra.mxu0 0.0
    %3212 = vmatprep.subr.mxu0 0.0
    %3213 = vmatpush1.xpose.msra.mxu0 0.0
    %3214 = vmatprep.subr.mxu0 0.0
    %3215 = vmatpush1.xpose.msra.mxu0 0.0
    %3216 = vmatprep.subr.mxu0 0.0
    %3217 = vmatpush1.xpose.msra.mxu0 0.0
    %3218 = vmatprep.subr.mxu0 0.0
    %3219 = vmatpush1.xpose.msra.mxu0 0.0
    %3220 = vmatprep.subr.mxu0 0.0
    %3221 = vmatpush1.xpose.msra.mxu0 0.0
    %3222 = vmatprep.subr.mxu0 0.0
    %3223 = vmatpush1.xpose.msra.mxu0 0.0
    %3224 = vmatprep.subr.mxu0 0.0
    %3225 = vmatpush1.xpose.msra.mxu0 0.0
    %3226 = vmatprep.subr.mxu0 0.0
    %3227 = vmatpush1.xpose.msra.mxu0 0.0
    %3228 = vmatprep.subr.mxu0 0.0
    %3229 = vmatpush1.xpose.msra.mxu0 0.0
    %3230 = vmatprep.subr.mxu0 0.0
    %3231 = vmatpush1.xpose.msra.mxu0 0.0
    %3232 = vmatprep.subr.mxu0 0.0
    %3233 = vmatpush1.xpose.msra.mxu0 0.0
    %3234 = vmatprep.subr.mxu0 0.0
    %3235 = vmatpush1.xpose.msra.mxu0 0.0
    %3236 = vmatprep.subr.mxu0 0.0
    %3237 = vmatpush1.xpose.msra.mxu0 0.0
    %3238 = vmatprep.subr.mxu0 0.0
    %3239 = vmatpush1.xpose.msra.mxu0 0.0
    %3240 = vmatprep.subr.mxu0 0.0
    %3241 = vmatpush1.xpose.msra.mxu0 0.0
    %3242 = vmatprep.subr.mxu0 0.0
    %3243 = vmatpush1.xpose.msra.mxu0 0.0
    %3244 = vmatprep.subr.mxu0 0.0
    %3245 = vmatpush1.xpose.msra.mxu0 0.0
    %3246 = vmatprep.subr.mxu0 0.0
    %3247 = vmatpush1.xpose.msra.mxu0 0.0
    %3248 = vmatprep.subr.mxu0 0.0
    %3249 = vmatpush1.xpose.msra.mxu0 0.0
    %3250 = vmatprep.subr.mxu0 0.0
    %3251 = vmatpush1.xpose.msra.mxu0 0.0
    %3252 = vmatprep.subr.mxu0 0.0
    %3253 = vmatpush1.xpose.msra.mxu0 0.0
    %3254 = vmatprep.subr.mxu0 0.0
    %3255 = vmatpush1.xpose.msra.mxu0 0.0
    %3256 = vmatprep.subr.mxu0 0.0
    %3257 = vmatpush1.xpose.msra.mxu0 0.0
    %3258 = vmatprep.subr.mxu0 0.0
    %3259 = vmatpush1.xpose.msra.mxu0 0.0
    %3260 = vmatprep.subr.mxu0 0.0
    %3261 = vmatpush1.xpose.msra.mxu0 0.0
    %3262 = vmatprep.subr.mxu0 0.0
    %3263 = vmatpush1.xpose.msra.mxu0 0.0
    %3264 = vmatprep.subr.mxu0 0.0
    %3265 = vmatpush1.xpose.msra.mxu0 0.0
    %3266 = vmatprep.mubr.f32.mxu0 0.0
    %3267 = vmatmul.mubr.f32.gmra.mrb[0].mxu0 %v3200
    %v3268 = vpop.f32.mrb[0].mxu0
    %v3269 = vadd.f32 0.0, %v3268
    %v3270 = vpop.f32.mrb[0].mxu0
    %3271 = vdwg.mxu0
    %v3272 = vsel %vm646, %v3269, -1e+30
    %v3273 = vsel %vm648, %v3272, -inf
    %3274 = vmax.xlane.f32.xlu0 %v3273
    %v3275 = vpop.xlane.xlu0 %3274
    %v3276 = vsub.f32 %v3272, %v3275
    %v3277 = vmul.f32 %v3276, 1.442695
    %v3278 = vpow.pop %v3277
    %v3279 = vmul.f32 %v3278, %v383
    %v3280 = vsel %vm648, %v3279, 0.0
    %3281 = vadd.xlane.f32.xlu0 %v3280
    %v3282 = vpop.xlane.xlu0 %3281
    %v3283 = vmax.f32 %v3282, 1e-30
    %v3284 = vrcp.pop %v3283
    %v3285 = vmul.f32 %v3279, %v3284
    %v3287 = vsel %vm213, %v3285, 0
    %3289 = vmatprep.subr.mxu0 0.0
    %3290 = vmatpush1.msra.mxu0 %v381
    %3291 = vmatprep.subr.mxu0 0.0
    %3292 = vmatpush1.msra.mxu0 %v382
    %3293 = vmatprep.subr.mxu0 0.0
    %3294 = vmatpush1.msra.mxu0 0.0
    %3295 = vmatprep.subr.mxu0 0.0
    %3296 = vmatpush1.msra.mxu0 0.0
    %3297 = vmatprep.subr.mxu0 0.0
    %3298 = vmatpush1.msra.mxu0 0.0
    %3299 = vmatprep.subr.mxu0 0.0
    %3300 = vmatpush1.msra.mxu0 0.0
    %3301 = vmatprep.subr.mxu0 0.0
    %3302 = vmatpush1.msra.mxu0 0.0
    %3303 = vmatprep.subr.mxu0 0.0
    %3304 = vmatpush1.msra.mxu0 0.0
    %3305 = vmatprep.subr.mxu0 0.0
    %3306 = vmatpush1.msra.mxu0 0.0
    %3307 = vmatprep.subr.mxu0 0.0
    %3308 = vmatpush1.msra.mxu0 0.0
    %3309 = vmatprep.subr.mxu0 0.0
    %3310 = vmatpush1.msra.mxu0 0.0
    %3311 = vmatprep.subr.mxu0 0.0
    %3312 = vmatpush1.msra.mxu0 0.0
    %3313 = vmatprep.subr.mxu0 0.0
    %3314 = vmatpush1.msra.mxu0 0.0
    %3315 = vmatprep.subr.mxu0 0.0
    %3316 = vmatpush1.msra.mxu0 0.0
    %3317 = vmatprep.subr.mxu0 0.0
    %3318 = vmatpush1.msra.mxu0 0.0
    %3319 = vmatprep.subr.mxu0 0.0
    %3320 = vmatpush1.msra.mxu0 0.0
    %3321 = vmatprep.subr.mxu0 0.0
    %3322 = vmatpush1.msra.mxu0 0.0
    %3323 = vmatprep.subr.mxu0 0.0
    %3324 = vmatpush1.msra.mxu0 0.0
    %3325 = vmatprep.subr.mxu0 0.0
    %3326 = vmatpush1.msra.mxu0 0.0
    %3327 = vmatprep.subr.mxu0 0.0
    %3328 = vmatpush1.msra.mxu0 0.0
    %3329 = vmatprep.subr.mxu0 0.0
    %3330 = vmatpush1.msra.mxu0 0.0
    %3331 = vmatprep.subr.mxu0 0.0
    %3332 = vmatpush1.msra.mxu0 0.0
    %3333 = vmatprep.subr.mxu0 0.0
    %3334 = vmatpush1.msra.mxu0 0.0
    %3335 = vmatprep.subr.mxu0 0.0
    %3336 = vmatpush1.msra.mxu0 0.0
    %3337 = vmatprep.subr.mxu0 0.0
    %3338 = vmatpush1.msra.mxu0 0.0
    %3339 = vmatprep.subr.mxu0 0.0
    %3340 = vmatpush1.msra.mxu0 0.0
    %3341 = vmatprep.subr.mxu0 0.0
    %3342 = vmatpush1.msra.mxu0 0.0
    %3343 = vmatprep.subr.mxu0 0.0
    %3344 = vmatpush1.msra.mxu0 0.0
    %3345 = vmatprep.subr.mxu0 0.0
    %3346 = vmatpush1.msra.mxu0 0.0
    %3347 = vmatprep.subr.mxu0 0.0
    %3348 = vmatpush1.msra.mxu0 0.0
    %3349 = vmatprep.subr.mxu0 0.0
    %3350 = vmatpush1.msra.mxu0 0.0
    %3351 = vmatprep.subr.mxu0 0.0
    %3352 = vmatpush1.msra.mxu0 0.0
    %3353 = vmatprep.mubr.f32.mxu0 0.0
    %3354 = vmatmul.mubr.f32.gmra.mrb[0].mxu0 %v3287
    %v3355 = vpop.f32.mrb[0].mxu0
    %v3356 = vadd.f32 0.0, %v3355
    %v3357 = vpop.f32.mrb[0].mxu0
    %3358 = vdwg.mxu0
    %v3360 = vsel %vm281, %v3356, 0
    %3362 = vmatprep.subr.mxu0 0.0
    %3363 = vmatpush1.msra.mxu0 %v388
    %3364 = vmatprep.subr.mxu0 0.0
    %3365 = vmatpush1.msra.mxu0 %v389
    %3366 = vmatprep.subr.mxu0 0.0
    %3367 = vmatpush1.msra.mxu0 %v390
    %3368 = vmatprep.subr.mxu0 0.0
    %3369 = vmatpush1.msra.mxu0 %v391
    %3370 = vmatprep.subr.mxu0 0.0
    %3371 = vmatpush1.msra.mxu0 0.0
    %3372 = vmatprep.subr.mxu0 0.0
    %3373 = vmatpush1.msra.mxu0 0.0
    %3374 = vmatprep.subr.mxu0 0.0
    %3375 = vmatpush1.msra.mxu0 0.0
    %3376 = vmatprep.subr.mxu0 0.0
    %3377 = vmatpush1.msra.mxu0 0.0
    %3378 = vmatprep.subr.mxu0 0.0
    %3379 = vmatpush1.msra.mxu0 0.0
    %3380 = vmatprep.subr.mxu0 0.0
    %3381 = vmatpush1.msra.mxu0 0.0
    %3382 = vmatprep.subr.mxu0 0.0
    %3383 = vmatpush1.msra.mxu0 0.0
    %3384 = vmatprep.subr.mxu0 0.0
    %3385 = vmatpush1.msra.mxu0 0.0
    %3386 = vmatprep.subr.mxu0 0.0
    %3387 = vmatpush1.msra.mxu0 0.0
    %3388 = vmatprep.subr.mxu0 0.0
    %3389 = vmatpush1.msra.mxu0 0.0
    %3390 = vmatprep.subr.mxu0 0.0
    %3391 = vmatpush1.msra.mxu0 0.0
    %3392 = vmatprep.subr.mxu0 0.0
    %3393 = vmatpush1.msra.mxu0 0.0
    %3394 = vmatprep.subr.mxu0 0.0
    %3395 = vmatpush1.msra.mxu0 0.0
    %3396 = vmatprep.subr.mxu0 0.0
    %3397 = vmatpush1.msra.mxu0 0.0
    %3398 = vmatprep.subr.mxu0 0.0
    %3399 = vmatpush1.msra.mxu0 0.0
    %3400 = vmatprep.subr.mxu0 0.0
    %3401 = vmatpush1.msra.mxu0 0.0
    %3402 = vmatprep.subr.mxu0 0.0
    %3403 = vmatpush1.msra.mxu0 0.0
    %3404 = vmatprep.subr.mxu0 0.0
    %3405 = vmatpush1.msra.mxu0 0.0
    %3406 = vmatprep.subr.mxu0 0.0
    %3407 = vmatpush1.msra.mxu0 0.0
    %3408 = vmatprep.subr.mxu0 0.0
    %3409 = vmatpush1.msra.mxu0 0.0
    %3410 = vmatprep.subr.mxu0 0.0
    %3411 = vmatpush1.msra.mxu0 0.0
    %3412 = vmatprep.subr.mxu0 0.0
    %3413 = vmatpush1.msra.mxu0 0.0
    %3414 = vmatprep.subr.mxu0 0.0
    %3415 = vmatpush1.msra.mxu0 0.0
    %3416 = vmatprep.subr.mxu0 0.0
    %3417 = vmatpush1.msra.mxu0 0.0
    %3418 = vmatprep.subr.mxu0 0.0
    %3419 = vmatpush1.msra.mxu0 0.0
    %3420 = vmatprep.subr.mxu0 0.0
    %3421 = vmatpush1.msra.mxu0 0.0
    %3422 = vmatprep.subr.mxu0 0.0
    %3423 = vmatpush1.msra.mxu0 0.0
    %3424 = vmatprep.subr.mxu0 0.0
    %3425 = vmatpush1.msra.mxu0 0.0
    %3426 = vmatprep.mubr.f32.mxu0 0.0
    %3427 = vmatmul.mubr.f32.gmra.mrb[0].mxu0 %v3360
    %v3428 = vpop.f32.mrb[0].mxu0
    %v3429 = vadd.f32 0.0, %v3428
    %v3430 = vpop.f32.mrb[0].mxu0
    %3431 = vdwg.mxu0
    %3432 = vmatprep.subr.mxu0 0.0
    %3433 = vmatpush1.msra.mxu0 %v384
    %3434 = vmatprep.subr.mxu0 0.0
    %3435 = vmatpush1.msra.mxu0 %v385
    %3436 = vmatprep.subr.mxu0 0.0
    %3437 = vmatpush1.msra.mxu0 %v386
    %3438 = vmatprep.subr.mxu0 0.0
    %3439 = vmatpush1.msra.mxu0 %v387
    %3440 = vmatprep.subr.mxu0 0.0
    %3441 = vmatpush1.msra.mxu0 0.0
    %3442 = vmatprep.subr.mxu0 0.0
    %3443 = vmatpush1.msra.mxu0 0.0
    %3444 = vmatprep.subr.mxu0 0.0
    %3445 = vmatpush1.msra.mxu0 0.0
    %3446 = vmatprep.subr.mxu0 0.0
    %3447 = vmatpush1.msra.mxu0 0.0
    %3448 = vmatprep.subr.mxu0 0.0
    %3449 = vmatpush1.msra.mxu0 0.0
    %3450 = vmatprep.subr.mxu0 0.0
    %3451 = vmatpush1.msra.mxu0 0.0
    %3452 = vmatprep.subr.mxu0 0.0
    %3453 = vmatpush1.msra.mxu0 0.0
    %3454 = vmatprep.subr.mxu0 0.0
    %3455 = vmatpush1.msra.mxu0 0.0
    %3456 = vmatprep.subr.mxu0 0.0
    %3457 = vmatpush1.msra.mxu0 0.0
    %3458 = vmatprep.subr.mxu0 0.0
    %3459 = vmatpush1.msra.mxu0 0.0
    %3460 = vmatprep.subr.mxu0 0.0
    %3461 = vmatpush1.msra.mxu0 0.0
    %3462 = vmatprep.subr.mxu0 0.0
    %3463 = vmatpush1.msra.mxu0 0.0
    %3464 = vmatprep.subr.mxu0 0.0
    %3465 = vmatpush1.msra.mxu0 0.0
    %3466 = vmatprep.subr.mxu0 0.0
    %3467 = vmatpush1.msra.mxu0 0.0
    %3468 = vmatprep.subr.mxu0 0.0
    %3469 = vmatpush1.msra.mxu0 0.0
    %3470 = vmatprep.subr.mxu0 0.0
    %3471 = vmatpush1.msra.mxu0 0.0
    %3472 = vmatprep.subr.mxu0 0.0
    %3473 = vmatpush1.msra.mxu0 0.0
    %3474 = vmatprep.subr.mxu0 0.0
    %3475 = vmatpush1.msra.mxu0 0.0
    %3476 = vmatprep.subr.mxu0 0.0
    %3477 = vmatpush1.msra.mxu0 0.0
    %3478 = vmatprep.subr.mxu0 0.0
    %3479 = vmatpush1.msra.mxu0 0.0
    %3480 = vmatprep.subr.mxu0 0.0
    %3481 = vmatpush1.msra.mxu0 0.0
    %3482 = vmatprep.subr.mxu0 0.0
    %3483 = vmatpush1.msra.mxu0 0.0
    %3484 = vmatprep.subr.mxu0 0.0
    %3485 = vmatpush1.msra.mxu0 0.0
    %3486 = vmatprep.subr.mxu0 0.0
    %3487 = vmatpush1.msra.mxu0 0.0
    %3488 = vmatprep.subr.mxu0 0.0
    %3489 = vmatpush1.msra.mxu0 0.0
    %3490 = vmatprep.subr.mxu0 0.0
    %3491 = vmatpush1.msra.mxu0 0.0
    %3492 = vmatprep.subr.mxu0 0.0
    %3493 = vmatpush1.msra.mxu0 0.0
    %3494 = vmatprep.subr.mxu0 0.0
    %3495 = vmatpush1.msra.mxu0 0.0
    %3496 = vmatprep.mubr.f32.mxu0 0.0
    %3497 = vmatmul.mubr.f32.gmra.mrb[0].mxu0 %v3200
    %v3498 = vpop.f32.mrb[0].mxu0
    %v3499 = vadd.f32 %v3429, %v3498
    %v3500 = vpop.f32.mrb[0].mxu0
    %3501 = vdwg.mxu0
    %v3502 = vadd.f32 %v3499, %v540
    %v3503 = vmul.f32 %v3502, 0.5
    %v3504 = vtanh.pop %v3503
    %v3505 = vadd.f32 %v3504, 1.0
    %v3506 = vmul.f32 %v3505, 0.5
    %v3507 = vtanh.pop %v3502
    %v3508 = vmul.f32 %v3506, %v3190
    %3510 = vrot.lane.b32.xlu0 %v3507, 64
    %v3511 = vpop.permute.xlu0 %3510
    %v3513 = vmul.f32 %v3506, %v3511
    %3515 = vrot.lane.b32.xlu0 %v3513, 32
    %v3516 = vpop.permute.xlu0 %3515
    %v3518 = vadd.f32 %v3508, %v3516
    %v3519 = vtanh.pop %v3518
    %3521 = vrot.lane.b32.xlu0 %v3519, 64
    %v3522 = vpop.permute.xlu0 %3521
    %v3524 = vmul.f32 %v3506, %v3522
    %3526 = vrot.lane.b32.xlu0 %v3524, 32
    %v3527 = vpop.permute.xlu0 %3526
    %v3528 = vsel %vm281, %v3527, 0
    %3530 = vmatprep.subr.mxu0 0.0
    %3531 = vmatpush1.xpose.msra.mxu0 %v571
    %3532 = vmatprep.subr.mxu0 0.0
    %3533 = vmatpush1.xpose.msra.mxu0 %v574
    %3534 = vmatprep.subr.mxu0 0.0
    %3535 = vmatpush1.xpose.msra.mxu0 0.0
    %3536 = vmatprep.subr.mxu0 0.0
    %3537 = vmatpush1.xpose.msra.mxu0 0.0
    %3538 = vmatprep.subr.mxu0 0.0
    %3539 = vmatpush1.xpose.msra.mxu0 0.0
    %3540 = vmatprep.subr.mxu0 0.0
    %3541 = vmatpush1.xpose.msra.mxu0 0.0
    %3542 = vmatprep.subr.mxu0 0.0
    %3543 = vmatpush1.xpose.msra.mxu0 0.0
    %3544 = vmatprep.subr.mxu0 0.0
    %3545 = vmatpush1.xpose.msra.mxu0 0.0
    %3546 = vmatprep.subr.mxu0 0.0
    %3547 = vmatpush1.xpose.msra.mxu0 0.0
    %3548 = vmatprep.subr.mxu0 0.0
    %3549 = vmatpush1.xpose.msra.mxu0 0.0
    %3550 = vmatprep.subr.mxu0 0.0
    %3551 = vmatpush1.xpose.msra.mxu0 0.0
    %3552 = vmatprep.subr.mxu0 0.0
    %3553 = vmatpush1.xpose.msra.mxu0 0.0
    %3554 = vmatprep.subr.mxu0 0.0
    %3555 = vmatpush1.xpose.msra.mxu0 0.0
    %3556 = vmatprep.subr.mxu0 0.0
    %3557 = vmatpush1.xpose.msra.mxu0 0.0
    %3558 = vmatprep.subr.mxu0 0.0
    %3559 = vmatpush1.xpose.msra.mxu0 0.0
    %3560 = vmatprep.subr.mxu0 0.0
    %3561 = vmatpush1.xpose.msra.mxu0 0.0
    %3562 = vmatprep.subr.mxu0 0.0
    %3563 = vmatpush1.xpose.msra.mxu0 0.0
    %3564 = vmatprep.subr.mxu0 0.0
    %3565 = vmatpush1.xpose.msra.mxu0 0.0
    %3566 = vmatprep.subr.mxu0 0.0
    %3567 = vmatpush1.xpose.msra.mxu0 0.0
    %3568 = vmatprep.subr.mxu0 0.0
    %3569 = vmatpush1.xpose.msra.mxu0 0.0
    %3570 = vmatprep.subr.mxu0 0.0
    %3571 = vmatpush1.xpose.msra.mxu0 0.0
    %3572 = vmatprep.subr.mxu0 0.0
    %3573 = vmatpush1.xpose.msra.mxu0 0.0
    %3574 = vmatprep.subr.mxu0 0.0
    %3575 = vmatpush1.xpose.msra.mxu0 0.0
    %3576 = vmatprep.subr.mxu0 0.0
    %3577 = vmatpush1.xpose.msra.mxu0 0.0
    %3578 = vmatprep.subr.mxu0 0.0
    %3579 = vmatpush1.xpose.msra.mxu0 0.0
    %3580 = vmatprep.subr.mxu0 0.0
    %3581 = vmatpush1.xpose.msra.mxu0 0.0
    %3582 = vmatprep.subr.mxu0 0.0
    %3583 = vmatpush1.xpose.msra.mxu0 0.0
    %3584 = vmatprep.subr.mxu0 0.0
    %3585 = vmatpush1.xpose.msra.mxu0 0.0
    %3586 = vmatprep.subr.mxu0 0.0
    %3587 = vmatpush1.xpose.msra.mxu0 0.0
    %3588 = vmatprep.subr.mxu0 0.0
    %3589 = vmatpush1.xpose.msra.mxu0 0.0
    %3590 = vmatprep.subr.mxu0 0.0
    %3591 = vmatpush1.xpose.msra.mxu0 0.0
    %3592 = vmatprep.subr.mxu0 0.0
    %3593 = vmatpush1.xpose.msra.mxu0 0.0
    %3594 = vmatprep.mubr.f32.mxu0 0.0
    %3595 = vmatmul.mubr.f32.gmra.mrb[0].mxu0 %v3528
    %v3596 = vpop.f32.mrb[0].mxu0
    %v3597 = vadd.f32 0.0, %v3596
    %v3598 = vpop.f32.mrb[0].mxu0
    %3599 = vdwg.mxu0
    %v3600 = vsel %vm646, %v3597, -1e+30
    %v3601 = vsel %vm648, %v3600, -inf
    %3602 = vmax.xlane.f32.xlu0 %v3601
    %v3603 = vpop.xlane.xlu0 %3602
    %v3604 = vsub.f32 %v3600, %v3603
    %v3605 = vmul.f32 %v3604, 1.442695
    %v3606 = vpow.pop %v3605
    %v3607 = vmul.f32 %v3606, %v383
    %v3608 = vsel %vm648, %v3607, 0.0
    %3609 = vadd.xlane.f32.xlu0 %v3608
    %v3610 = vpop.xlane.xlu0 %3609
    %v3611 = vmax.f32 %v3610, 1e-30
    %v3612 = vrcp.pop %v3611
    %v3613 = vmul.f32 %v3607, %v3612
    %v3615 = vsel %vm213, %v3613, 0
    %3617 = vmatprep.subr.mxu0 0.0
    %3618 = vmatpush1.msra.mxu0 %v381
    %3619 = vmatprep.subr.mxu0 0.0
    %3620 = vmatpush1.msra.mxu0 %v382
    %3621 = vmatprep.subr.mxu0 0.0
    %3622 = vmatpush1.msra.mxu0 0.0
    %3623 = vmatprep.subr.mxu0 0.0
    %3624 = vmatpush1.msra.mxu0 0.0
    %3625 = vmatprep.subr.mxu0 0.0
    %3626 = vmatpush1.msra.mxu0 0.0
    %3627 = vmatprep.subr.mxu0 0.0
    %3628 = vmatpush1.msra.mxu0 0.0
    %3629 = vmatprep.subr.mxu0 0.0
    %3630 = vmatpush1.msra.mxu0 0.0
    %3631 = vmatprep.subr.mxu0 0.0
    %3632 = vmatpush1.msra.mxu0 0.0
    %3633 = vmatprep.subr.mxu0 0.0
    %3634 = vmatpush1.msra.mxu0 0.0
    %3635 = vmatprep.subr.mxu0 0.0
    %3636 = vmatpush1.msra.mxu0 0.0
    %3637 = vmatprep.subr.mxu0 0.0
    %3638 = vmatpush1.msra.mxu0 0.0
    %3639 = vmatprep.subr.mxu0 0.0
    %3640 = vmatpush1.msra.mxu0 0.0
    %3641 = vmatprep.subr.mxu0 0.0
    %3642 = vmatpush1.msra.mxu0 0.0
    %3643 = vmatprep.subr.mxu0 0.0
    %3644 = vmatpush1.msra.mxu0 0.0
    %3645 = vmatprep.subr.mxu0 0.0
    %3646 = vmatpush1.msra.mxu0 0.0
    %3647 = vmatprep.subr.mxu0 0.0
    %3648 = vmatpush1.msra.mxu0 0.0
    %3649 = vmatprep.subr.mxu0 0.0
    %3650 = vmatpush1.msra.mxu0 0.0
    %3651 = vmatprep.subr.mxu0 0.0
    %3652 = vmatpush1.msra.mxu0 0.0
    %3653 = vmatprep.subr.mxu0 0.0
    %3654 = vmatpush1.msra.mxu0 0.0
    %3655 = vmatprep.subr.mxu0 0.0
    %3656 = vmatpush1.msra.mxu0 0.0
    %3657 = vmatprep.subr.mxu0 0.0
    %3658 = vmatpush1.msra.mxu0 0.0
    %3659 = vmatprep.subr.mxu0 0.0
    %3660 = vmatpush1.msra.mxu0 0.0
    %3661 = vmatprep.subr.mxu0 0.0
    %3662 = vmatpush1.msra.mxu0 0.0
    %3663 = vmatprep.subr.mxu0 0.0
    %3664 = vmatpush1.msra.mxu0 0.0
    %3665 = vmatprep.subr.mxu0 0.0
    %3666 = vmatpush1.msra.mxu0 0.0
    %3667 = vmatprep.subr.mxu0 0.0
    %3668 = vmatpush1.msra.mxu0 0.0
    %3669 = vmatprep.subr.mxu0 0.0
    %3670 = vmatpush1.msra.mxu0 0.0
    %3671 = vmatprep.subr.mxu0 0.0
    %3672 = vmatpush1.msra.mxu0 0.0
    %3673 = vmatprep.subr.mxu0 0.0
    %3674 = vmatpush1.msra.mxu0 0.0
    %3675 = vmatprep.subr.mxu0 0.0
    %3676 = vmatpush1.msra.mxu0 0.0
    %3677 = vmatprep.subr.mxu0 0.0
    %3678 = vmatpush1.msra.mxu0 0.0
    %3679 = vmatprep.subr.mxu0 0.0
    %3680 = vmatpush1.msra.mxu0 0.0
    %3681 = vmatprep.mubr.f32.mxu0 0.0
    %3682 = vmatmul.mubr.f32.gmra.mrb[0].mxu0 %v3615
    %v3683 = vpop.f32.mrb[0].mxu0
    %v3684 = vadd.f32 0.0, %v3683
    %v3685 = vpop.f32.mrb[0].mxu0
    %3686 = vdwg.mxu0
    %v3687 = vld [vmem:[#allocation11] sm:$0xff]
    %v3688 = vld [vmem:[#allocation11 + $0x8] sm:$0xff]
    %v3689 = vld [vmem:[#allocation11 + $0x10] sm:$0xff]
    %v3690 = vld [vmem:[#allocation11 + $0x18] sm:$0xff]
    %v3691 = vld [vmem:[#allocation13] sm:$0xff]
    %v3692 = vld [vmem:[#allocation13 + $0x8] sm:$0xff]
    %v3693 = vld [vmem:[#allocation13 + $0x10] sm:$0xff]
    %v3694 = vld [vmem:[#allocation13 + $0x18] sm:$0xff]
    %v3696 = vsel %vm281, %v3684, 0
    %3698 = vmatprep.subr.mxu0 0.0
    %3699 = vmatpush1.msra.mxu0 %v3691
    %3700 = vmatprep.subr.mxu0 0.0
    %3701 = vmatpush1.msra.mxu0 %v3692
    %3702 = vmatprep.subr.mxu0 0.0
    %3703 = vmatpush1.msra.mxu0 %v3693
    %3704 = vmatprep.subr.mxu0 0.0
    %3705 = vmatpush1.msra.mxu0 %v3694
    %3706 = vmatprep.subr.mxu0 0.0
    %3707 = vmatpush1.msra.mxu0 0.0
    %3708 = vmatprep.subr.mxu0 0.0
    %3709 = vmatpush1.msra.mxu0 0.0
    %3710 = vmatprep.subr.mxu0 0.0
    %3711 = vmatpush1.msra.mxu0 0.0
    %3712 = vmatprep.subr.mxu0 0.0
    %3713 = vmatpush1.msra.mxu0 0.0
    %3714 = vmatprep.subr.mxu0 0.0
    %3715 = vmatpush1.msra.mxu0 0.0
    %3716 = vmatprep.subr.mxu0 0.0
    %3717 = vmatpush1.msra.mxu0 0.0
    %3718 = vmatprep.subr.mxu0 0.0
    %3719 = vmatpush1.msra.mxu0 0.0
    %3720 = vmatprep.subr.mxu0 0.0
    %3721 = vmatpush1.msra.mxu0 0.0
    %3722 = vmatprep.subr.mxu0 0.0
    %3723 = vmatpush1.msra.mxu0 0.0
    %3724 = vmatprep.subr.mxu0 0.0
    %3725 = vmatpush1.msra.mxu0 0.0
    %3726 = vmatprep.subr.mxu0 0.0
    %3727 = vmatpush1.msra.mxu0 0.0
    %3728 = vmatprep.subr.mxu0 0.0
    %3729 = vmatpush1.msra.mxu0 0.0
    %3730 = vmatprep.subr.mxu0 0.0
    %3731 = vmatpush1.msra.mxu0 0.0
    %3732 = vmatprep.subr.mxu0 0.0
    %3733 = vmatpush1.msra.mxu0 0.0
    %3734 = vmatprep.subr.mxu0 0.0
    %3735 = vmatpush1.msra.mxu0 0.0
    %3736 = vmatprep.subr.mxu0 0.0
    %3737 = vmatpush1.msra.mxu0 0.0
    %3738 = vmatprep.subr.mxu0 0.0
    %3739 = vmatpush1.msra.mxu0 0.0
    %3740 = vmatprep.subr.mxu0 0.0
    %3741 = vmatpush1.msra.mxu0 0.0
    %3742 = vmatprep.subr.mxu0 0.0
    %3743 = vmatpush1.msra.mxu0 0.0
    %3744 = vmatprep.subr.mxu0 0.0
    %3745 = vmatpush1.msra.mxu0 0.0
    %3746 = vmatprep.subr.mxu0 0.0
    %3747 = vmatpush1.msra.mxu0 0.0
    %3748 = vmatprep.subr.mxu0 0.0
    %3749 = vmatpush1.msra.mxu0 0.0
    %3750 = vmatprep.subr.mxu0 0.0
    %3751 = vmatpush1.msra.mxu0 0.0
    %3752 = vmatprep.subr.mxu0 0.0
    %3753 = vmatpush1.msra.mxu0 0.0
    %3754 = vmatprep.subr.mxu0 0.0
    %3755 = vmatpush1.msra.mxu0 0.0
    %3756 = vmatprep.subr.mxu0 0.0
    %3757 = vmatpush1.msra.mxu0 0.0
    %3758 = vmatprep.subr.mxu0 0.0
    %3759 = vmatpush1.msra.mxu0 0.0
    %3760 = vmatprep.subr.mxu0 0.0
    %3761 = vmatpush1.msra.mxu0 0.0
    %3762 = vmatprep.mubr.f32.mxu0 0.0
    %3763 = vmatmul.mubr.f32.gmra.mrb[0].mxu0 %v3696
    %v3764 = vpop.f32.mrb[0].mxu0
    %v3765 = vadd.f32 0.0, %v3764
    %v3766 = vpop.f32.mrb[0].mxu0
    %3767 = vdwg.mxu0
    %3768 = vmatprep.subr.mxu0 0.0
    %3769 = vmatpush1.msra.mxu0 %v3687
    %3770 = vmatprep.subr.mxu0 0.0
    %3771 = vmatpush1.msra.mxu0 %v3688
    %3772 = vmatprep.subr.mxu0 0.0
    %3773 = vmatpush1.msra.mxu0 %v3689
    %3774 = vmatprep.subr.mxu0 0.0
    %3775 = vmatpush1.msra.mxu0 %v3690
    %3776 = vmatprep.subr.mxu0 0.0
    %3777 = vmatpush1.msra.mxu0 0.0
    %3778 = vmatprep.subr.mxu0 0.0
    %3779 = vmatpush1.msra.mxu0 0.0
    %3780 = vmatprep.subr.mxu0 0.0
    %3781 = vmatpush1.msra.mxu0 0.0
    %3782 = vmatprep.subr.mxu0 0.0
    %3783 = vmatpush1.msra.mxu0 0.0
    %3784 = vmatprep.subr.mxu0 0.0
    %3785 = vmatpush1.msra.mxu0 0.0
    %3786 = vmatprep.subr.mxu0 0.0
    %3787 = vmatpush1.msra.mxu0 0.0
    %3788 = vmatprep.subr.mxu0 0.0
    %3789 = vmatpush1.msra.mxu0 0.0
    %3790 = vmatprep.subr.mxu0 0.0
    %3791 = vmatpush1.msra.mxu0 0.0
    %3792 = vmatprep.subr.mxu0 0.0
    %3793 = vmatpush1.msra.mxu0 0.0
    %3794 = vmatprep.subr.mxu0 0.0
    %3795 = vmatpush1.msra.mxu0 0.0
    %3796 = vmatprep.subr.mxu0 0.0
    %3797 = vmatpush1.msra.mxu0 0.0
    %3798 = vmatprep.subr.mxu0 0.0
    %3799 = vmatpush1.msra.mxu0 0.0
    %3800 = vmatprep.subr.mxu0 0.0
    %3801 = vmatpush1.msra.mxu0 0.0
    %3802 = vmatprep.subr.mxu0 0.0
    %3803 = vmatpush1.msra.mxu0 0.0
    %3804 = vmatprep.subr.mxu0 0.0
    %3805 = vmatpush1.msra.mxu0 0.0
    %3806 = vmatprep.subr.mxu0 0.0
    %3807 = vmatpush1.msra.mxu0 0.0
    %3808 = vmatprep.subr.mxu0 0.0
    %3809 = vmatpush1.msra.mxu0 0.0
    %3810 = vmatprep.subr.mxu0 0.0
    %3811 = vmatpush1.msra.mxu0 0.0
    %3812 = vmatprep.subr.mxu0 0.0
    %3813 = vmatpush1.msra.mxu0 0.0
    %3814 = vmatprep.subr.mxu0 0.0
    %3815 = vmatpush1.msra.mxu0 0.0
    %3816 = vmatprep.subr.mxu0 0.0
    %3817 = vmatpush1.msra.mxu0 0.0
    %3818 = vmatprep.subr.mxu0 0.0
    %3819 = vmatpush1.msra.mxu0 0.0
    %3820 = vmatprep.subr.mxu0 0.0
    %3821 = vmatpush1.msra.mxu0 0.0
    %3822 = vmatprep.subr.mxu0 0.0
    %3823 = vmatpush1.msra.mxu0 0.0
    %3824 = vmatprep.subr.mxu0 0.0
    %3825 = vmatpush1.msra.mxu0 0.0
    %3826 = vmatprep.subr.mxu0 0.0
    %3827 = vmatpush1.msra.mxu0 0.0
    %3828 = vmatprep.subr.mxu0 0.0
    %3829 = vmatpush1.msra.mxu0 0.0
    %3830 = vmatprep.subr.mxu0 0.0
    %3831 = vmatpush1.msra.mxu0 0.0
    %3832 = vmatprep.mubr.f32.mxu0 0.0
    %3833 = vmatmul.mubr.f32.gmra.mrb[0].mxu0 %v3528
    %v3834 = vpop.f32.mrb[0].mxu0
    %v3835 = vadd.f32 %v3765, %v3834
    %v3836 = vpop.f32.mrb[0].mxu0
    %3837 = vdwg.mxu0
    %v3838 = vld [vmem:[%s12] sm:$0x1]
    %v3840 = vlaneseq
    %v3841 = vshrl.u32 %v3840, 7
    %v3842 = vsub.s32 0, %v3841
    %v3843 = vrot.slane %v3838, %v3842
    %v3845 = vadd.f32 %v3835, %v3843
    %vm3846 = vcmp.ge.f32.partialorder %v3845, 0.0
    %v3847 = vmul.f32 %v3845, 0.01
    %v3848 = vsel %vm3846, %v3845, %v3847
    %v3849 = vld [vmem:[%s13] sm:$0xff]
    %v3850 = vld [vmem:[%s13 + $0x8] sm:$0xff]
    %v3851 = vld [vmem:[%s13 + $0x10] sm:$0xff]
    %v3852 = vld [vmem:[%s13 + $0x18] sm:$0xff]
    %v3853 = vld [vmem:[%s14] sm:$0x1]
    %v3855 = vlaneseq
    %v3856 = vshrl.u32 %v3855, 7
    %v3857 = vsub.s32 0, %v3856
    %v3858 = vrot.slane %v3853, %v3857
    %v3861 = vsel %vm281, %v3848, 0
    %3863 = vmatprep.subr.mxu0 0.0
    %3864 = vmatpush1.msra.mxu0 %v3849
    %3865 = vmatprep.subr.mxu0 0.0
    %3866 = vmatpush1.msra.mxu0 %v3850
    %3867 = vmatprep.subr.mxu0 0.0
    %3868 = vmatpush1.msra.mxu0 %v3851
    %3869 = vmatprep.subr.mxu0 0.0
    %3870 = vmatpush1.msra.mxu0 %v3852
    %3871 = vmatprep.subr.mxu0 0.0
    %3872 = vmatpush1.msra.mxu0 0.0
    %3873 = vmatprep.subr.mxu0 0.0
    %3874 = vmatpush1.msra.mxu0 0.0
    %3875 = vmatprep.subr.mxu0 0.0
    %3876 = vmatpush1.msra.mxu0 0.0
    %3877 = vmatprep.subr.mxu0 0.0
    %3878 = vmatpush1.msra.mxu0 0.0
    %3879 = vmatprep.subr.mxu0 0.0
    %3880 = vmatpush1.msra.mxu0 0.0
    %3881 = vmatprep.subr.mxu0 0.0
    %3882 = vmatpush1.msra.mxu0 0.0
    %3883 = vmatprep.subr.mxu0 0.0
    %3884 = vmatpush1.msra.mxu0 0.0
    %3885 = vmatprep.subr.mxu0 0.0
    %3886 = vmatpush1.msra.mxu0 0.0
    %3887 = vmatprep.subr.mxu0 0.0
    %3888 = vmatpush1.msra.mxu0 0.0
    %3889 = vmatprep.subr.mxu0 0.0
    %3890 = vmatpush1.msra.mxu0 0.0
    %3891 = vmatprep.subr.mxu0 0.0
    %3892 = vmatpush1.msra.mxu0 0.0
    %3893 = vmatprep.subr.mxu0 0.0
    %3894 = vmatpush1.msra.mxu0 0.0
    %3895 = vmatprep.subr.mxu0 0.0
    %3896 = vmatpush1.msra.mxu0 0.0
    %3897 = vmatprep.subr.mxu0 0.0
    %3898 = vmatpush1.msra.mxu0 0.0
    %3899 = vmatprep.subr.mxu0 0.0
    %3900 = vmatpush1.msra.mxu0 0.0
    %3901 = vmatprep.subr.mxu0 0.0
    %3902 = vmatpush1.msra.mxu0 0.0
    %3903 = vmatprep.subr.mxu0 0.0
    %3904 = vmatpush1.msra.mxu0 0.0
    %3905 = vmatprep.subr.mxu0 0.0
    %3906 = vmatpush1.msra.mxu0 0.0
    %3907 = vmatprep.subr.mxu0 0.0
    %3908 = vmatpush1.msra.mxu0 0.0
    %3909 = vmatprep.subr.mxu0 0.0
    %3910 = vmatpush1.msra.mxu0 0.0
    %3911 = vmatprep.subr.mxu0 0.0
    %3912 = vmatpush1.msra.mxu0 0.0
    %3913 = vmatprep.subr.mxu0 0.0
    %3914 = vmatpush1.msra.mxu0 0.0
    %3915 = vmatprep.subr.mxu0 0.0
    %3916 = vmatpush1.msra.mxu0 0.0
    %3917 = vmatprep.subr.mxu0 0.0
    %3918 = vmatpush1.msra.mxu0 0.0
    %3919 = vmatprep.subr.mxu0 0.0
    %3920 = vmatpush1.msra.mxu0 0.0
    %3921 = vmatprep.subr.mxu0 0.0
    %3922 = vmatpush1.msra.mxu0 0.0
    %3923 = vmatprep.subr.mxu0 0.0
    %3924 = vmatpush1.msra.mxu0 0.0
    %3925 = vmatprep.subr.mxu0 0.0
    %3926 = vmatpush1.msra.mxu0 0.0
    %3927 = vmatprep.mubr.f32.mxu0 0.0
    %3928 = vmatmul.mubr.f32.gmra.mrb[0].mxu0 %v3861
    %v3929 = vpop.f32.mrb[0].mxu0
    %v3930 = vadd.f32 %v3858, %v3929
    %v3931 = vpop.f32.mrb[0].mxu0
    %3932 = vdwg.mxu0
    %vm3933 = vcmask 25600
    %3934 = vst.msk [vmem:[#allocation14] sm:$0x3] %vm3933, %v3930
    // Predicated region
    $region90: #{tpu_custom_call.1} parent=1 // pred_check
      _
    $region91: #{tpu_custom_call.1} parent=1 // pred_check_branch
      %3936 = sbr.rel (0) target = $region93
    $region92: #{tpu_custom_call.1} parent=1 // pred_region
      %s3938 = ssub.s32 32, 32
      %3939 = vsyncadd [#allocation4], %s3938
      %s3941 = sshll.u32 [#allocation14], 4
      %s3942 = int_to_ptr.vmem [resolvable:$true] %s3941
      %3944 = dma.vmem_to_hbm [thread:$0]  %s3942, 32, %s15, [#allocation4]
    $region93: #{tpu_custom_call.1} parent=1 // pred_fallthru
      _
    // Predicated region
    $region94: #{tpu_custom_call.1} parent=1 // pred_check
      _
    $region95: #{tpu_custom_call.1} parent=1 // pred_check_branch
      %3946 = sbr.rel (0) target = $region97
    $region96: #{tpu_custom_call.1} parent=1 // pred_region
      %3947 = dma.done [#allocation4], 32
    $region97: #{tpu_custom_call.1} parent=1 // pred_fallthru
      _
    %3948 = vsyncpa [#allocation3], 1
    %3949 = vsyncpa [#allocation6], 1
    %3950 = vsyncpa [#allocation9], 1
    %3951 = vsyncpa [#allocation12], 1
    %3952 = vsyncpa [#allocation4], 1

</llo_original>
